<compile_context>
chip_gen: v6e
topology: v6e:2x2x1
jax: 0.10.0
libtpu: 0.0.40
codegen_flags: <defaults>
</compile_context>

<pallas_src>
import math

import jax
import jax.numpy as jnp
import numpy as np
from jax.experimental import pallas as pl
from jax.experimental.pallas import tpu as pltpu

LANE = 128


def _round_up(x, m):
    return ((x + m - 1) // m) * m


# ----------------------------- Pallas kernel --------------------------------

def _cross_attn_kernel(x_ref, kvsrc_ref, res_ref,
                       wq_ref, wk_ref, wv_ref, wo_ref, bo_ref,
                       o_ref,
                       q_scr, k_scr, v_scr, m_scr, l_scr, acc_scr):
    f32 = jnp.float32
    bf16 = jnp.bfloat16

    i = pl.program_id(1)                 # query-tile index
    j = pl.program_id(2)                 # key-tile index (innermost)
    nj = pl.num_programs(2)
    tk = kvsrc_ref.shape[1]
    koff = pl.multiple_of(j * tk, tk)

    # ---- K/V projection: once per (batch, key tile), cached for all i ------
    @pl.when(i == 0)
    def _():
        rg = kvsrc_ref[0]                                           # (TK, Cp) bf16
        k_scr[pl.ds(koff, tk), :] = jnp.dot(
            rg, wk_ref[...], preferred_element_type=f32).astype(bf16)
        v_scr[pl.ds(koff, tk), :] = jnp.dot(
            rg, wv_ref[...], preferred_element_type=f32).astype(bf16)

    # ---- Q projection + softmax state init: once per query tile ------------
    @pl.when(j == 0)
    def _():
        q_scr[...] = jnp.dot(x_ref[0], wq_ref[...],
                             preferred_element_type=f32).astype(bf16)
        m_scr[...] = jnp.full(m_scr.shape, -jnp.inf, f32)
        l_scr[...] = jnp.zeros(l_scr.shape, f32)
        acc_scr[...] = jnp.zeros(acc_scr.shape, f32)

    # ---- online-softmax update for this (query tile, key tile) -------------
    k = k_scr[pl.ds(koff, tk), :]                                   # (TK, Ip) bf16
    v = v_scr[pl.ds(koff, tk), :]                                   # (TK, Ip) bf16
    s = jax.lax.dot_general(q_scr[...], k, (((1,), (1,)), ((), ())),
                            preferred_element_type=f32)             # (TQ, TK)
    m_new = jnp.maximum(m_scr[...], jnp.max(s, axis=-1, keepdims=True))
    alpha = jnp.exp(m_scr[...] - m_new)
    p = jnp.exp(s - m_new)
    l_scr[...] = alpha * l_scr[...] + jnp.sum(p, axis=-1, keepdims=True)
    acc_scr[...] = alpha * acc_scr[...] + jnp.dot(
        p.astype(bf16), v, preferred_element_type=f32)               # (TQ, Ip)
    m_scr[...] = m_new

    # ---- finalize: normalize, output projection, bias, residual ------------
    @pl.when(j == nj - 1)
    def _():
        o = acc_scr[...] * (1.0 / l_scr[...])        # exact f32 normalization
        out = jnp.dot(o.astype(bf16), wo_ref[...],
                      preferred_element_type=f32) + bo_ref[...]      # (TQ, Cp)
        o_ref[0] = out + res_ref[0]


# ------------------------------ wrappers -------------------------------------

def _pick_tile(n, is_v5e):
    if (not is_v5e) and n % 256 == 0:
        return 256              # v6e/v7x: match the 2x256^2 MXU
    if n % 128 == 0:
        return 128              # v5e (4x128^2) or small N
    return n


def _is_v5e():
    try:
        kind = jax.devices()[0].device_kind.lower()
    except Exception:
        return False
    return ('v5 lite' in kind) or ('v5e' in kind) or ('v5lite' in kind)


def cross_attention_rows(pp, x_aug, rg_aug, rg_res):
    """Core fused kernel on row layout.
    x_aug, rg_aug : (B, N, Cp) bf16, ones column at index C (bias fold).
    rg_res        : (B, N, Cp) f32, plain zero-padded rgbd (residual).
    Returns (B, N, Cp) f32 padded rows."""
    B, N, Cp = rg_res.shape
    Ip = pp['wq'].shape[1]

    is_v5e = _is_v5e()
    TQ = _pick_tile(N, is_v5e)
    TK = _pick_tile(N, is_v5e)
    # keep at least one grid step per TensorCore on megacore parts (B axis is
    # the only "parallel" axis; B >= 2 in this benchmark).

    grid = (B, N // TQ, N // TK)

    return pl.pallas_call(
        _cross_attn_kernel,
        out_shape=jax.ShapeDtypeStruct((B, N, Cp), jnp.float32),
        grid=grid,
        in_specs=[
            pl.BlockSpec((1, TQ, Cp), lambda b, i, j: (b, i, 0)),   # x (queries, bf16)
            pl.BlockSpec((1, TK, Cp), lambda b, i, j: (b, j, 0)),   # rgbd K/V source (bf16)
            pl.BlockSpec((1, TQ, Cp), lambda b, i, j: (b, i, 0)),   # rgbd residual (f32)
            pl.BlockSpec((Cp, Ip), lambda b, i, j: (0, 0)),         # wq (+bq row)
            pl.BlockSpec((Cp, Ip), lambda b, i, j: (0, 0)),         # wk (+bk row)
            pl.BlockSpec((Cp, Ip), lambda b, i, j: (0, 0)),         # wv (+bv row)
            pl.BlockSpec((Ip, Cp), lambda b, i, j: (0, 0)),         # wo
            pl.BlockSpec((1, Cp), lambda b, i, j: (0, 0)),          # bo (f32, exact)
        ],
        out_specs=pl.BlockSpec((1, TQ, Cp), lambda b, i, j: (b, i, 0)),
        scratch_shapes=[
            pltpu.VMEM((TQ, Ip), jnp.bfloat16),    # Q cache (per query tile)
            pltpu.VMEM((N, Ip), jnp.bfloat16),     # K cache (per batch)
            pltpu.VMEM((N, Ip), jnp.bfloat16),     # V cache (per batch)
            pltpu.VMEM((TQ, 1), jnp.float32),      # running max
            pltpu.VMEM((TQ, 1), jnp.float32),      # running denominator
            pltpu.VMEM((TQ, Ip), jnp.float32),     # output accumulator
        ],
        compiler_params=pltpu.CompilerParams(
            dimension_semantics=("parallel", "arbitrary", "arbitrary"),
            vmem_limit_bytes=48 * 1024 * 1024),
    )(x_aug, rg_aug, rg_res, pp['wq'], pp['wk'], pp['wv'], pp['wo'], pp['bo'])


def cross_attention_forward(pp, rgbd, x):
    """NCHW convenience wrapper matching the PyTorch module signature.
    TODO(synk): in a real pipeline keep the surrounding model in the padded
    (B, N, Cp) rows layout and call cross_attention_rows directly, so the
    transpose/pad/slice layout passes below disappear."""
    assert rgbd.shape == x.shape
    B, C, H, W = rgbd.shape
    N = H * W
    Cp, Ip = pp['wq'].shape

    def rows(t):
        return jnp.transpose(t, (0, 2, 3, 1)).reshape(B, N, C).astype(jnp.float32)

    x_rows = rows(x)
    rg_rows = rows(rgbd)

    # ones column (bias fold) rides in the existing lane padding; cast the
    # GEMM-only streams to bf16 once here.
    ones = jnp.ones((B, N, 1), jnp.float32)

    def aug_bf16(r):
        a = jnp.concatenate([r, ones], axis=-1)
        return jnp.pad(a, ((0, 0), (0, 0), (0, Cp - C - 1))).astype(jnp.bfloat16)

    x_aug = aug_bf16(x_rows)
    rg_aug = aug_bf16(rg_rows)
    rg_res = jnp.pad(rg_rows, ((0, 0), (0, 0), (0, Cp - C)))        # f32 residual

    out = cross_attention_rows(pp, x_aug, rg_aug, rg_res)

    out = out[:, :, :C].reshape(B, H, W, C)
    return jnp.transpose(out, (0, 3, 1, 2))


# ------------------------------ parameters -----------------------------------

def make_params(key, in_channels, zero_out_conv=True):
    """Logical (unpadded, f32) params; conv weights stored in GEMM layout
    (Cin, Cout).  PyTorch-default uniform init for q/k/v; the module's
    constant-zero init for out_conv unless zero_out_conv=False."""
    inter = in_channels // 2
    ks = jax.random.split(key, 8)

    def conv_init(kw, kb, cin, cout):
        bound = 1.0 / math.sqrt(cin)
        w = jax.random.uniform(kw, (cin, cout), jnp.float32, -bound, bound)
        b = jax.random.uniform(kb, (cout,), jnp.float32, -bound, bound)
        return w, b

    wq, bq = conv_init(ks[0], ks[1], in_channels, inter)
    wk, bk = conv_init(ks[2], ks[3], in_channels, inter)
    wv, bv = conv_init(ks[4], ks[5], in_channels, inter)
    if zero_out_conv:
        wo = jnp.zeros((inter, in_channels), jnp.float32)
        bo = jnp.zeros((in_channels,), jnp.float32)
    else:
        wo, bo = conv_init(ks[6], ks[7], inter, in_channels)
    return dict(wq=wq, bq=bq, wk=wk, bk=bk, wv=wv, bv=bv, wo=wo, bo=bo)


def pad_params(params, in_channels, lane=LANE):
    """One-time param prep: fold q/k/v biases into the weights (extra row at
    index C, matched by the ones column in the activations), zero-pad channel
    dims to multiples of 128 and store MXU operands in bf16."""
    C = in_channels
    I = C // 2
    Cp = _round_up(C + 1, lane)      # +1 for the folded-bias ones column
    Ip = _round_up(I, lane)

    def fold_w(w, b):
        wb = jnp.concatenate([w, b.reshape(1, -1)], axis=0)         # (C+1, I)
        return jnp.pad(wb, ((0, Cp - wb.shape[0]),
                            (0, Ip - wb.shape[1]))).astype(jnp.bfloat16)

    wq = fold_w(params['wq'], params['bq'])
    wk = fold_w(params['wk'], params['bk'])
    wv = fold_w(params['wv'], params['bv'])
    wo = jnp.pad(params['wo'], ((0, Ip - I), (0, Cp - C))).astype(jnp.bfloat16)
    bo = jnp.pad(params['bo'], (0, Cp - C)).reshape(1, Cp).astype(jnp.float32)
    return dict(wq=wq, wk=wk, wv=wv, wo=wo, bo=bo)


# --------------------------- pure-JAX reference -------------------------------

def cross_attention_reference(params, rgbd, x):
    B, C, H, W = rgbd.shape
    N = H * W
    hp = jax.lax.Precision.HIGHEST
    xr = jnp.transpose(x, (0, 2, 3, 1)).reshape(B, N, C)
    rr = jnp.transpose(rgbd, (0, 2, 3, 1)).reshape(B, N, C)
    q = jnp.einsum('bnc,ci->bni', xr, params['wq'], precision=hp) + params['bq']
    k = jnp.einsum('bnc,ci->bni', rr, params['wk'], precision=hp) + params['bk']
    v = jnp.einsum('bnc,ci->bni', rr, params['wv'], precision=hp) + params['bv']
    att = jax.nn.softmax(jnp.einsum('bqi,bki->bqk', q, k, precision=hp), axis=-1)
    o = jnp.einsum('bqk,bki->bqi', att, v, precision=hp)
    out = jnp.einsum('bqi,ic->bqc', o, params['wo'], precision=hp) + params['bo']
    out = rr + out
    return jnp.transpose(out.reshape(B, H, W, C), (0, 3, 1, 2))


# ---------------------------------- main --------------------------------------

if __name__ == "__main__":
    in_channels = 32
    B, H, W = 2, 16, 16
    key = jax.random.PRNGKey(0)
    kr, kx, kp1, kp2 = jax.random.split(key, 4)
    rgbd = jax.random.normal(kr, (B, in_channels, H, W), jnp.float32)
    x = jax.random.normal(kx, (B, in_channels, H, W), jnp.float32)

    fwd = jax.jit(cross_attention_forward)

    # (1) Faithful to the module's init: out_conv weight & bias are zero,
    #     so forward(rgbd, x) == rgbd.
    params0 = make_params(kp1, in_channels, zero_out_conv=True)
    out0 = jax.block_until_ready(fwd(pad_params(params0, in_channels), rgbd, x))
    assert out0.shape == (B, in_channels, H, W)
    ref0 = cross_attention_reference(params0, rgbd, x)
    np.testing.assert_allclose(np.asarray(out0), np.asarray(ref0),
                               atol=5e-2, rtol=5e-2)

    # (2) Non-zero out_conv to numerically exercise the full attention path.
    params1 = make_params(kp2, in_channels, zero_out_conv=False)
    out1 = jax.block_until_ready(fwd(pad_params(params1, in_channels), rgbd, x))
    ref1 = cross_attention_reference(params1, rgbd, x)
    np.testing.assert_allclose(np.asarray(out1), np.asarray(ref1),
                               atol=5e-2, rtol=5e-2)

    print("KERNEL_OK")
</pallas_src>

<mosaic_0001>
module attributes {stable_mosaic.version = 11 : i64} {
  func.func @_cross_attn_kernel(%arg0: i32, %arg1: i32, %arg2: i32, %arg3: memref<1x256x128xbf16, #tpu.memory_space<vmem>>, %arg4: memref<1x256x128xbf16, #tpu.memory_space<vmem>>, %arg5: memref<1x256x128xf32, #tpu.memory_space<vmem>>, %arg6: memref<128x128xbf16, #tpu.memory_space<vmem>>, %arg7: memref<128x128xbf16, #tpu.memory_space<vmem>>, %arg8: memref<128x128xbf16, #tpu.memory_space<vmem>>, %arg9: memref<128x128xbf16, #tpu.memory_space<vmem>>, %arg10: memref<1x128xf32, #tpu.memory_space<vmem>>, %arg11: memref<1x256x128xf32, #tpu.memory_space<vmem>>, %arg12: memref<256x128xbf16, #tpu.memory_space<vmem>>, %arg13: memref<256x128xbf16, #tpu.memory_space<vmem>>, %arg14: memref<256x128xbf16, #tpu.memory_space<vmem>>, %arg15: memref<256x1xf32, #tpu.memory_space<vmem>>, %arg16: memref<256x1xf32, #tpu.memory_space<vmem>>, %arg17: memref<256x128xf32, #tpu.memory_space<vmem>>) attributes {dimension_semantics = [#tpu.dimension_semantics<parallel>, #tpu.dimension_semantics<arbitrary>, #tpu.dimension_semantics<arbitrary>], iteration_bounds = array<i64: 2, 1, 1>, scalar_prefetch = 0 : i64, scratch_operands = 6 : i64, tpu.core_type = #tpu.core_type<tc>, window_params = [{transform_indices = @transform_0, window_bounds = array<i64: 1, 256, 128>}, {transform_indices = @transform_1, window_bounds = array<i64: 1, 256, 128>}, {transform_indices = @transform_2, window_bounds = array<i64: 1, 256, 128>}, {pipeline_mode = #tpu.pipeline_mode<synchronous>, transform_indices = @transform_3, window_bounds = array<i64: 128, 128>}, {pipeline_mode = #tpu.pipeline_mode<synchronous>, transform_indices = @transform_4, window_bounds = array<i64: 128, 128>}, {pipeline_mode = #tpu.pipeline_mode<synchronous>, transform_indices = @transform_5, window_bounds = array<i64: 128, 128>}, {pipeline_mode = #tpu.pipeline_mode<synchronous>, transform_indices = @transform_6, window_bounds = array<i64: 128, 128>}, {pipeline_mode = #tpu.pipeline_mode<synchronous>, transform_indices = @transform_7, window_bounds = array<i64: 1, 128>}, {transform_indices = @transform_8, window_bounds = array<i64: 1, 256, 128>}]} {
    %c256_i32 = arith.constant 256 : i32
    %0 = arith.muli %arg2, %c256_i32 : i32
    %1 = tpu.assume_multiple %0, 256 : i32
    %c0_i32 = arith.constant 0 : i32
    %2 = arith.cmpi eq, %arg1, %c0_i32 : i32
    %3 = arith.extui %2 : i1 to i32
    %c0_i32_0 = arith.constant 0 : i32
    %4 = arith.cmpi ne, %3, %c0_i32_0 : i32
    scf.if %4 {
      %c0_25 = arith.constant 0 : index
      %c0_26 = arith.constant 0 : index
      %c0_27 = arith.constant 0 : index
      %41 = vector.load %arg4[%c0_25, %c0_26, %c0_27] : memref<1x256x128xbf16, #tpu.memory_space<vmem>>, vector<1x256x128xbf16>
      %42 = vector.shape_cast %41 : vector<1x256x128xbf16> to vector<256x128xbf16>
      %c0_28 = arith.constant 0 : index
      %c0_29 = arith.constant 0 : index
      %43 = vector.load %arg7[%c0_28, %c0_29] : memref<128x128xbf16, #tpu.memory_space<vmem>>, vector<128x128xbf16>
      %cst_30 = arith.constant dense<0.000000e+00> : vector<256x128xf32>
      %44 = tpu.matmul %42, %43, %cst_30 {dimension_numbers = #tpu.dot_dimension_numbers<[1], [0], [0], [1], [0, 0, 1, 1], [], []>} : vector<256x128xbf16>, vector<128x128xbf16>, vector<256x128xf32> -> vector<256x128xf32>
      %45 = arith.truncf %44 : vector<256x128xf32> to vector<256x128xbf16>
      %46 = arith.index_cast %1 : i32 to index
      %c0_31 = arith.constant 0 : index
      %47 = vector.load %arg13[%46, %c0_31] : memref<256x128xbf16, #tpu.memory_space<vmem>>, vector<256x128xbf16>
      tpu.vector_store %arg13[%46, %c0_31], %45 {strides = array<i32>} : memref<256x128xbf16, #tpu.memory_space<vmem>>, vector<256x128xbf16>,
      %c0_32 = arith.constant 0 : index
      %c0_33 = arith.constant 0 : index
      %48 = vector.load %arg8[%c0_32, %c0_33] : memref<128x128xbf16, #tpu.memory_space<vmem>>, vector<128x128xbf16>
      %cst_34 = arith.constant dense<0.000000e+00> : vector<256x128xf32>
      %49 = tpu.matmul %42, %48, %cst_34 {dimension_numbers = #tpu.dot_dimension_numbers<[1], [0], [0], [1], [0, 0, 1, 1], [], []>} : vector<256x128xbf16>, vector<128x128xbf16>, vector<256x128xf32> -> vector<256x128xf32>
      %50 = arith.truncf %49 : vector<256x128xf32> to vector<256x128xbf16>
      %51 = arith.index_cast %1 : i32 to index
      %c0_35 = arith.constant 0 : index
      %52 = vector.load %arg14[%51, %c0_35] : memref<256x128xbf16, #tpu.memory_space<vmem>>, vector<256x128xbf16>
      tpu.vector_store %arg14[%51, %c0_35], %50 {strides = array<i32>} : memref<256x128xbf16, #tpu.memory_space<vmem>>, vector<256x128xbf16>,
    } else {
    }
    %c0_i32_1 = arith.constant 0 : i32
    %5 = arith.cmpi eq, %arg2, %c0_i32_1 : i32
    %6 = arith.extui %5 : i1 to i32
    %c0_i32_2 = arith.constant 0 : i32
    %7 = arith.cmpi ne, %6, %c0_i32_2 : i32
    scf.if %7 {
      %c0_25 = arith.constant 0 : index
      %c0_26 = arith.constant 0 : index
      %c0_27 = arith.constant 0 : index
      %41 = vector.load %arg3[%c0_25, %c0_26, %c0_27] : memref<1x256x128xbf16, #tpu.memory_space<vmem>>, vector<1x256x128xbf16>
      %42 = vector.shape_cast %41 : vector<1x256x128xbf16> to vector<256x128xbf16>
      %c0_28 = arith.constant 0 : index
      %c0_29 = arith.constant 0 : index
      %43 = vector.load %arg6[%c0_28, %c0_29] : memref<128x128xbf16, #tpu.memory_space<vmem>>, vector<128x128xbf16>
      %cst_30 = arith.constant dense<0.000000e+00> : vector<256x128xf32>
      %44 = tpu.matmul %42, %43, %cst_30 {dimension_numbers = #tpu.dot_dimension_numbers<[1], [0], [0], [1], [0, 0, 1, 1], [], []>} : vector<256x128xbf16>, vector<128x128xbf16>, vector<256x128xf32> -> vector<256x128xf32>
      %45 = arith.truncf %44 : vector<256x128xf32> to vector<256x128xbf16>
      %c0_31 = arith.constant 0 : index
      %c0_32 = arith.constant 0 : index
      %46 = vector.load %arg12[%c0_31, %c0_32] : memref<256x128xbf16, #tpu.memory_space<vmem>>, vector<256x128xbf16>
      tpu.vector_store %arg12[%c0_31, %c0_32], %45 {strides = array<i32>} : memref<256x128xbf16, #tpu.memory_space<vmem>>, vector<256x128xbf16>,
      %cst_33 = arith.constant 0xFF800000 : f32
      %47 = vector.broadcast %cst_33 : f32 to vector<256x1xf32>
      %c0_34 = arith.constant 0 : index
      %c0_35 = arith.constant 0 : index
      %48 = vector.load %arg15[%c0_34, %c0_35] : memref<256x1xf32, #tpu.memory_space<vmem>>, vector<256x1xf32>
      tpu.vector_store %arg15[%c0_34, %c0_35], %47 {strides = array<i32>} : memref<256x1xf32, #tpu.memory_space<vmem>>, vector<256x1xf32>,
      %cst_36 = arith.constant 0.000000e+00 : f32
      %49 = vector.broadcast %cst_36 : f32 to vector<256x1xf32>
      %c0_37 = arith.constant 0 : index
      %c0_38 = arith.constant 0 : index
      %50 = vector.load %arg16[%c0_37, %c0_38] : memref<256x1xf32, #tpu.memory_space<vmem>>, vector<256x1xf32>
      tpu.vector_store %arg16[%c0_37, %c0_38], %49 {strides = array<i32>} : memref<256x1xf32, #tpu.memory_space<vmem>>, vector<256x1xf32>,
      %cst_39 = arith.constant 0.000000e+00 : f32
      %51 = vector.broadcast %cst_39 : f32 to vector<256x128xf32>
      %c0_40 = arith.constant 0 : index
      %c0_41 = arith.constant 0 : index
      %52 = vector.load %arg17[%c0_40, %c0_41] : memref<256x128xf32, #tpu.memory_space<vmem>>, vector<256x128xf32>
      tpu.vector_store %arg17[%c0_40, %c0_41], %51 {strides = array<i32>} : memref<256x128xf32, #tpu.memory_space<vmem>>, vector<256x128xf32>,
    } else {
    }
    %8 = arith.index_cast %1 : i32 to index
    %c0 = arith.constant 0 : index
    %9 = vector.load %arg13[%8, %c0] : memref<256x128xbf16, #tpu.memory_space<vmem>>, vector<256x128xbf16>
    %10 = arith.index_cast %1 : i32 to index
    %c0_3 = arith.constant 0 : index
    %11 = vector.load %arg14[%10, %c0_3] : memref<256x128xbf16, #tpu.memory_space<vmem>>, vector<256x128xbf16>
    %c0_4 = arith.constant 0 : index
    %c0_5 = arith.constant 0 : index
    %12 = vector.load %arg12[%c0_4, %c0_5] : memref<256x128xbf16, #tpu.memory_space<vmem>>, vector<256x128xbf16>
    %cst = arith.constant dense<0.000000e+00> : vector<256x256xf32>
    %13 = tpu.matmul %12, %9, %cst {dimension_numbers = #tpu.dot_dimension_numbers<[1], [1], [0], [0], [0, 0, 1, 0], [], []>} : vector<256x128xbf16>, vector<256x128xbf16>, vector<256x256xf32> -> vector<256x256xf32>
    %c0_6 = arith.constant 0 : index
    %c0_7 = arith.constant 0 : index
    %14 = vector.load %arg15[%c0_6, %c0_7] : memref<256x1xf32, #tpu.memory_space<vmem>>, vector<256x1xf32>
    %cst_8 = arith.constant dense<0xFF800000> : vector<256xf32>
    %15 = vector.multi_reduction <maximumf>, %13, %cst_8 [1] : vector<256x256xf32> to vector<256xf32>
    %16 = vector.shape_cast %15 : vector<256xf32> to vector<256x1xf32>
    %17 = arith.maximumf %14, %16 : vector<256x1xf32>
    %c0_9 = arith.constant 0 : index
    %c0_10 = arith.constant 0 : index
    %18 = vector.load %arg15[%c0_9, %c0_10] : memref<256x1xf32, #tpu.memory_space<vmem>>, vector<256x1xf32>
    %19 = arith.subf %18, %17 : vector<256x1xf32>
    %20 = math.exp %19 : vector<256x1xf32>
    %21 = vector.broadcast %17 : vector<256x1xf32> to vector<256x256xf32>
    %22 = arith.subf %13, %21 : vector<256x256xf32>
    %23 = math.exp %22 : vector<256x256xf32>
    %c0_11 = arith.constant 0 : index
    %c0_12 = arith.constant 0 : index
    %24 = vector.load %arg16[%c0_11, %c0_12] : memref<256x1xf32, #tpu.memory_space<vmem>>, vector<256x1xf32>
    %25 = arith.mulf %20, %24 : vector<256x1xf32>
    %cst_13 = arith.constant dense<0.000000e+00> : vector<256xf32>
    %26 = vector.multi_reduction <add>, %23, %cst_13 [1] : vector<256x256xf32> to vector<256xf32>
    %27 = vector.shape_cast %26 : vector<256xf32> to vector<256x1xf32>
    %28 = arith.addf %25, %27 : vector<256x1xf32>
    %c0_14 = arith.constant 0 : index
    %c0_15 = arith.constant 0 : index
    %29 = vector.load %arg16[%c0_14, %c0_15] : memref<256x1xf32, #tpu.memory_space<vmem>>, vector<256x1xf32>
    tpu.vector_store %arg16[%c0_14, %c0_15], %28 {strides = array<i32>} : memref<256x1xf32, #tpu.memory_space<vmem>>, vector<256x1xf32>,
    %c0_16 = arith.constant 0 : index
    %c0_17 = arith.constant 0 : index
    %30 = vector.load %arg17[%c0_16, %c0_17] : memref<256x128xf32, #tpu.memory_space<vmem>>, vector<256x128xf32>
    %31 = vector.broadcast %20 : vector<256x1xf32> to vector<256x128xf32>
    %32 = arith.mulf %31, %30 : vector<256x128xf32>
    %33 = arith.truncf %23 : vector<256x256xf32> to vector<256x256xbf16>
    %cst_18 = arith.constant dense<0.000000e+00> : vector<256x128xf32>
    %34 = tpu.matmul %33, %11, %cst_18 {dimension_numbers = #tpu.dot_dimension_numbers<[1], [0], [0], [1], [0, 0, 1, 1], [], []>} : vector<256x256xbf16>, vector<256x128xbf16>, vector<256x128xf32> -> vector<256x128xf32>
    %35 = arith.addf %32, %34 : vector<256x128xf32>
    %c0_19 = arith.constant 0 : index
    %c0_20 = arith.constant 0 : index
    %36 = vector.load %arg17[%c0_19, %c0_20] : memref<256x128xf32, #tpu.memory_space<vmem>>, vector<256x128xf32>
    tpu.vector_store %arg17[%c0_19, %c0_20], %35 {strides = array<i32>} : memref<256x128xf32, #tpu.memory_space<vmem>>, vector<256x128xf32>,
    %c0_21 = arith.constant 0 : index
    %c0_22 = arith.constant 0 : index
    %37 = vector.load %arg15[%c0_21, %c0_22] : memref<256x1xf32, #tpu.memory_space<vmem>>, vector<256x1xf32>
    tpu.vector_store %arg15[%c0_21, %c0_22], %17 {strides = array<i32>} : memref<256x1xf32, #tpu.memory_space<vmem>>, vector<256x1xf32>,
    %c0_i32_23 = arith.constant 0 : i32
    %38 = arith.cmpi eq, %arg2, %c0_i32_23 : i32
    %39 = arith.extui %38 : i1 to i32
    %c0_i32_24 = arith.constant 0 : i32
    %40 = arith.cmpi ne, %39, %c0_i32_24 : i32
    scf.if %40 {
      %c0_25 = arith.constant 0 : index
      %c0_26 = arith.constant 0 : index
      %41 = vector.load %arg17[%c0_25, %c0_26] : memref<256x128xf32, #tpu.memory_space<vmem>>, vector<256x128xf32>
      %c0_27 = arith.constant 0 : index
      %c0_28 = arith.constant 0 : index
      %42 = vector.load %arg16[%c0_27, %c0_28] : memref<256x1xf32, #tpu.memory_space<vmem>>, vector<256x1xf32>
      %cst_29 = arith.constant 1.000000e+00 : f32
      %43 = vector.broadcast %cst_29 : f32 to vector<256x1xf32>
      %44 = arith.divf %43, %42 : vector<256x1xf32>
      %45 = vector.broadcast %44 : vector<256x1xf32> to vector<256x128xf32>
      %46 = arith.mulf %41, %45 : vector<256x128xf32>
      %47 = arith.truncf %46 : vector<256x128xf32> to vector<256x128xbf16>
      %c0_30 = arith.constant 0 : index
      %c0_31 = arith.constant 0 : index
      %48 = vector.load %arg9[%c0_30, %c0_31] : memref<128x128xbf16, #tpu.memory_space<vmem>>, vector<128x128xbf16>
      %cst_32 = arith.constant dense<0.000000e+00> : vector<256x128xf32>
      %49 = tpu.matmul %47, %48, %cst_32 {dimension_numbers = #tpu.dot_dimension_numbers<[1], [0], [0], [1], [0, 0, 1, 1], [], []>} : vector<256x128xbf16>, vector<128x128xbf16>, vector<256x128xf32> -> vector<256x128xf32>
      %c0_33 = arith.constant 0 : index
      %c0_34 = arith.constant 0 : index
      %50 = vector.load %arg10[%c0_33, %c0_34] : memref<1x128xf32, #tpu.memory_space<vmem>>, vector<1x128xf32>
      %51 = vector.broadcast %50 : vector<1x128xf32> to vector<256x128xf32>
      %52 = arith.addf %49, %51 : vector<256x128xf32>
      %c0_35 = arith.constant 0 : index
      %c0_36 = arith.constant 0 : index
      %c0_37 = arith.constant 0 : index
      %53 = vector.load %arg5[%c0_35, %c0_36, %c0_37] : memref<1x256x128xf32, #tpu.memory_space<vmem>>, vector<1x256x128xf32>
      %54 = vector.shape_cast %53 : vector<1x256x128xf32> to vector<256x128xf32>
      %55 = arith.addf %52, %54 : vector<256x128xf32>
      %c0_38 = arith.constant 0 : index
      %c0_39 = arith.constant 0 : index
      %c0_40 = arith.constant 0 : index
      %56 = vector.load %arg11[%c0_38, %c0_39, %c0_40] : memref<1x256x128xf32, #tpu.memory_space<vmem>>, vector<1x256x128xf32>
      %57 = vector.shape_cast %56 : vector<1x256x128xf32> to vector<256x128xf32>
      %58 = vector.shape_cast %55 : vector<256x128xf32> to vector<1x256x128xf32>
      tpu.vector_store %arg11[%c0_38, %c0_39, %c0_40], %58 {strides = array<i32>} : memref<1x256x128xf32, #tpu.memory_space<vmem>>, vector<1x256x128xf32>,
    } else {
    }
    return
  }
  func.func @transform_0(%arg0: i32, %arg1: i32, %arg2: i32) -> (i32, i32, i32) {
    %c0_i32 = arith.constant 0 : i32
    %c0_i32_0 = arith.constant 0 : i32
    return %arg0, %arg1, %c0_i32 : i32, i32, i32
  }
  func.func @transform_1(%arg0: i32, %arg1: i32, %arg2: i32) -> (i32, i32, i32) {
    %c0_i32 = arith.constant 0 : i32
    %c0_i32_0 = arith.constant 0 : i32
    return %arg0, %arg2, %c0_i32 : i32, i32, i32
  }
  func.func @transform_2(%arg0: i32, %arg1: i32, %arg2: i32) -> (i32, i32, i32) {
    %c0_i32 = arith.constant 0 : i32
    %c0_i32_0 = arith.constant 0 : i32
    return %arg0, %arg1, %c0_i32 : i32, i32, i32
  }
  func.func @transform_3(%arg0: i32, %arg1: i32, %arg2: i32) -> (i32, i32) {
    %c0_i32 = arith.constant 0 : i32
    %c0_i32_0 = arith.constant 0 : i32
    %c0_i32_1 = arith.constant 0 : i32
    return %c0_i32, %c0_i32_0 : i32, i32
  }
  func.func @transform_4(%arg0: i32, %arg1: i32, %arg2: i32) -> (i32, i32) {
    %c0_i32 = arith.constant 0 : i32
    %c0_i32_0 = arith.constant 0 : i32
    %c0_i32_1 = arith.constant 0 : i32
    return %c0_i32, %c0_i32_0 : i32, i32
  }
  func.func @transform_5(%arg0: i32, %arg1: i32, %arg2: i32) -> (i32, i32) {
    %c0_i32 = arith.constant 0 : i32
    %c0_i32_0 = arith.constant 0 : i32
    %c0_i32_1 = arith.constant 0 : i32
    return %c0_i32, %c0_i32_0 : i32, i32
  }
  func.func @transform_6(%arg0: i32, %arg1: i32, %arg2: i32) -> (i32, i32) {
    %c0_i32 = arith.constant 0 : i32
    %c0_i32_0 = arith.constant 0 : i32
    %c0_i32_1 = arith.constant 0 : i32
    return %c0_i32, %c0_i32_0 : i32, i32
  }
  func.func @transform_7(%arg0: i32, %arg1: i32, %arg2: i32) -> (i32, i32) {
    %c0_i32 = arith.constant 0 : i32
    %c0_i32_0 = arith.constant 0 : i32
    %c0_i32_1 = arith.constant 0 : i32
    return %c0_i32, %c0_i32_0 : i32, i32
  }
  func.func @transform_8(%arg0: i32, %arg1: i32, %arg2: i32) -> (i32, i32, i32) {
    %c0_i32 = arith.constant 0 : i32
    %c0_i32_0 = arith.constant 0 : i32
    return %arg0, %arg1, %c0_i32 : i32, i32, i32
  }
}

</mosaic_0001>

<llo_original>
// kernel: cross_attention_forward.1
$region0: #{cross_attention_forward.1}
  #allocation0 [shape = 'u32[]', space=smem, size = 0x4, offset = 0x4, fixed_abs, tag = 'smem constant byte address 0x4 - core index']
  #allocation1 [shape = 'u32[144,128]{1,0:T(1,128)}', space=vmem, size = 0x12000, scoped, tag = 'internal scratch']
  #allocation2 [shape = 'bf16[256,128]{1,0:T(8,128)(2,1)}', space=vmem, size = 0x10000, scoped, tag = 'scratch operand']
  #allocation3 [shape = 'bf16[256,128]{1,0:T(8,128)(2,1)}', space=vmem, size = 0x10000, scoped, tag = 'scratch operand']
  #allocation4 [shape = 'bf16[256,128]{1,0:T(8,128)(2,1)}', space=vmem, size = 0x10000, scoped, tag = 'scratch operand']
  #allocation5 [shape = 'f32[256,1]{1,0:T(8,128)}', space=vmem, size = 0x20000, scoped, tag = 'scratch operand']
  #allocation6 [shape = 'f32[256,1]{1,0:T(8,128)}', space=vmem, size = 0x20000, scoped, tag = 'scratch operand']
  #allocation7 [shape = 'f32[256,128]{1,0:T(8,128)}', space=vmem, size = 0x20000, scoped, tag = 'scratch operand']
  %s0 = inlined_call_operand.vmem [shape: bf16[2,256,128], index: 0, kind: input, shape index: {}]
  %s1 = inlined_call_operand.vmem [shape: bf16[2,256,128], index: 1, kind: input, shape index: {}]
  %s2 = inlined_call_operand.vmem [shape: f32[2,256,128], index: 2, kind: input, shape index: {}]
  %s3 = inlined_call_operand.vmem [shape: bf16[128,128], index: 3, kind: input, shape index: {}]
  %s4 = inlined_call_operand.vmem [shape: bf16[128,128], index: 4, kind: input, shape index: {}]
  %s5 = inlined_call_operand.vmem [shape: bf16[128,128], index: 5, kind: input, shape index: {}]
  %s6 = inlined_call_operand.vmem [shape: bf16[128,128], index: 6, kind: input, shape index: {}]
  %s7 = inlined_call_operand.vmem [shape: f32[1,128], index: 7, kind: input, shape index: {}]
  %s8 = inlined_call_operand.hbm [shape: f32[2,256,128], index: 8, kind: output, shape index: {}]
  %s9 = sld [smem:[#allocation0]]
  $region77: #{cross_attention_forward.1} parent=0
    _
  %s11 = ssub.s32 1, %s9
  %s12 = scalar_select 0, %s11, %s9
  $region1: #{cross_attention_forward.1} parent=0
    #allocation8 [shape = 'u8[262144]{0}', space=vmem, size = 0x40000, scoped, tag = 'output window, operand 0']
    #allocation9 [shape = 's32[2]{0}', space=sflag, size = 0x8, scoped, tag = 'scoped memory for cross_attention_forward.1']
    %13 = vsyncpa [#allocation9], 0
    %s14 = scalar_lea.sflag [#allocation9], 1
    %15 = vsyncpa %s14, 0
    loop: start=0, step=1, limit=4
    $region2: #{cross_attention_forward.1} parent=1 // loop_pre_header
      _
    $region3: #{cross_attention_forward.1} parent=1 // loop_header
      %s17 = sphi 0, %s21
      %p18 = scmp.ge.s32.totalorder %s17, 4
      %s24 = sphi 0, %s43
      %s25 = sphi 0, %s39
      %s26 = sphi 0, %s35
      %s27 = sphi 0, %s24
      %s28 = sphi 0, %s25
      %s29 = sphi 0, %s26
      %s30 = sphi 0, %s27
      %s31 = sphi 0, %s28
      %s32 = sphi 0, %s29
      %s48 = sphi 0, %s50
      %s51 = sphi 0, %s48
      %s52 = sphi 0, %s51
      %s68 = sphi 0, %s52
      %s76 = sphi 0, %s78
      %s79 = sphi 0, %s76
      %s80 = sphi 0, %s79
      %s96 = sphi 0, %s80
      %s104 = sphi 0, %s106
      %s107 = sphi 0, %s104
      %s108 = sphi 0, %s107
      %s124 = sphi 0, %s108
      %s128 = sphi 0, %s128
      %s130 = sphi 0, %s128
      %s131 = sphi 0, %s130
      %s145 = sphi 0, %s131
      %s149 = sphi 0, %s149
      %s151 = sphi 0, %s149
      %s152 = sphi 0, %s151
      %s166 = sphi 0, %s152
      %s170 = sphi 0, %s170
      %s172 = sphi 0, %s170
      %s173 = sphi 0, %s172
      %s187 = sphi 0, %s173
      %s191 = sphi 0, %s191
      %s193 = sphi 0, %s191
      %s194 = sphi 0, %s193
      %s208 = sphi 0, %s194
      %s212 = sphi 0, %s212
      %s214 = sphi 0, %s212
      %s215 = sphi 0, %s214
      %s229 = sphi 0, %s215
      %s237 = sphi 0, %s239
      %s240 = sphi 0, %s237
      %s241 = sphi 0, %s240
      %s257 = sphi 0, %s241
    $region4: #{cross_attention_forward.1} parent=1 // loop_header_branch
      %20 = sbr.rel (%p18) target = $region8
    $region5: #{cross_attention_forward.1} parent=1 // loop_body
      %s22 = ssub.s32 %s17, 1
      %s23 = ssub.s32 %s17, 2
      %s33 = sadd.s32 1, %s26
      %p34 = scmp.ge.s32.totalorder %s33, 1
      %s35 = scalar_select %p34, 0, %s33
      %s36 = sadd.s32 1, %s25
      %s37 = scalar_select %p34, %s36, %s25
      %p38 = scmp.ge.s32.totalorder %s37, 1
      %s39 = scalar_select %p38, 0, %s37
      %s40 = sadd.s32 1, %s24
      %s41 = scalar_select %p38, %s40, %s24
      %p42 = scmp.ge.s32.totalorder %s41, 2
      %s43 = scalar_select %p42, 0, %s41
      %s44 = ssub.s32 %s24, %s43
      %s45 = ssub.s32 %s25, %s39
      %s46 = sor.u32 %s44, %s45
      %p47 = scmp.eq.s32.totalorder %s46, 0
      %s49 = sadd.s32 %s48, 1
      %s50 = scalar_select %p47, %s48, %s49
      %p53 = pneg %p47
      %p54 = scmp.eq.s32.totalorder %s17, 1
      %p55 = por %p53, %p54
      %p56 = scmp.ne.s32.totalorder %s48, %s51
      %p57 = scmp.eq.s32.totalorder %s17, 0
      %p58 = por %p56, %p57
      %p59 = scmp.ne.s32.totalorder %s48, %s51
      %p60 = scmp.eq.s32.totalorder %s22, 1
      %p61 = por %p59, %p60
      %p62 = scmp.ne.s32.totalorder %s51, %s52
      %p63 = scmp.eq.s32.totalorder %s22, 0
      %p64 = por %p62, %p63
      %p65 = scmp.ne.s32.totalorder %s51, %s52
      %p66 = scmp.eq.s32.totalorder %s23, 1
      %p67 = por %p65, %p66
      %p69 = scmp.ne.s32.totalorder %s52, %s68
      %p70 = scmp.eq.s32.totalorder %s23, 0
      %p71 = por %p69, %p70
      %s72 = ssub.s32 %s24, %s43
      %s73 = ssub.s32 %s26, %s35
      %s74 = sor.u32 %s72, %s73
      %p75 = scmp.eq.s32.totalorder %s74, 0
      %s77 = sadd.s32 %s76, 1
      %s78 = scalar_select %p75, %s76, %s77
      %p81 = pneg %p75
      %p82 = scmp.eq.s32.totalorder %s17, 1
      %p83 = por %p81, %p82
      %p84 = scmp.ne.s32.totalorder %s76, %s79
      %p85 = scmp.eq.s32.totalorder %s17, 0
      %p86 = por %p84, %p85
      %p87 = scmp.ne.s32.totalorder %s76, %s79
      %p88 = scmp.eq.s32.totalorder %s22, 1
      %p89 = por %p87, %p88
      %p90 = scmp.ne.s32.totalorder %s79, %s80
      %p91 = scmp.eq.s32.totalorder %s22, 0
      %p92 = por %p90, %p91
      %p93 = scmp.ne.s32.totalorder %s79, %s80
      %p94 = scmp.eq.s32.totalorder %s23, 1
      %p95 = por %p93, %p94
      %p97 = scmp.ne.s32.totalorder %s80, %s96
      %p98 = scmp.eq.s32.totalorder %s23, 0
      %p99 = por %p97, %p98
      %s100 = ssub.s32 %s24, %s43
      %s101 = ssub.s32 %s25, %s39
      %s102 = sor.u32 %s100, %s101
      %p103 = scmp.eq.s32.totalorder %s102, 0
      %s105 = sadd.s32 %s104, 1
      %s106 = scalar_select %p103, %s104, %s105
      %p109 = pneg %p103
      %p110 = scmp.eq.s32.totalorder %s17, 1
      %p111 = por %p109, %p110
      %p112 = scmp.ne.s32.totalorder %s104, %s107
      %p113 = scmp.eq.s32.totalorder %s17, 0
      %p114 = por %p112, %p113
      %p115 = scmp.ne.s32.totalorder %s104, %s107
      %p116 = scmp.eq.s32.totalorder %s22, 1
      %p117 = por %p115, %p116
      %p118 = scmp.ne.s32.totalorder %s107, %s108
      %p119 = scmp.eq.s32.totalorder %s22, 0
      %p120 = por %p118, %p119
      %p121 = scmp.ne.s32.totalorder %s107, %s108
      %p122 = scmp.eq.s32.totalorder %s23, 1
      %p123 = por %p121, %p122
      %p125 = scmp.ne.s32.totalorder %s108, %s124
      %p126 = scmp.eq.s32.totalorder %s23, 0
      %p127 = por %p125, %p126
      %s129 = sadd.s32 %s128, 1
      %p132 = scmp.eq.s32.totalorder %s17, 1
      %p133 = scmp.ne.s32.totalorder %s128, %s130
      %p134 = scmp.eq.s32.totalorder %s17, 0
      %p135 = por %p133, %p134
      %p136 = scmp.ne.s32.totalorder %s128, %s130
      %p137 = scmp.eq.s32.totalorder %s22, 1
      %p138 = por %p136, %p137
      %p139 = scmp.ne.s32.totalorder %s130, %s131
      %p140 = scmp.eq.s32.totalorder %s22, 0
      %p141 = por %p139, %p140
      %p142 = scmp.ne.s32.totalorder %s130, %s131
      %p143 = scmp.eq.s32.totalorder %s23, 1
      %p144 = por %p142, %p143
      %p146 = scmp.ne.s32.totalorder %s131, %s145
      %p147 = scmp.eq.s32.totalorder %s23, 0
      %p148 = por %p146, %p147
      %s150 = sadd.s32 %s149, 1
      %p153 = scmp.eq.s32.totalorder %s17, 1
      %p154 = scmp.ne.s32.totalorder %s149, %s151
      %p155 = scmp.eq.s32.totalorder %s17, 0
      %p156 = por %p154, %p155
      %p157 = scmp.ne.s32.totalorder %s149, %s151
      %p158 = scmp.eq.s32.totalorder %s22, 1
      %p159 = por %p157, %p158
      %p160 = scmp.ne.s32.totalorder %s151, %s152
      %p161 = scmp.eq.s32.totalorder %s22, 0
      %p162 = por %p160, %p161
      %p163 = scmp.ne.s32.totalorder %s151, %s152
      %p164 = scmp.eq.s32.totalorder %s23, 1
      %p165 = por %p163, %p164
      %p167 = scmp.ne.s32.totalorder %s152, %s166
      %p168 = scmp.eq.s32.totalorder %s23, 0
      %p169 = por %p167, %p168
      %s171 = sadd.s32 %s170, 1
      %p174 = scmp.eq.s32.totalorder %s17, 1
      %p175 = scmp.ne.s32.totalorder %s170, %s172
      %p176 = scmp.eq.s32.totalorder %s17, 0
      %p177 = por %p175, %p176
      %p178 = scmp.ne.s32.totalorder %s170, %s172
      %p179 = scmp.eq.s32.totalorder %s22, 1
      %p180 = por %p178, %p179
      %p181 = scmp.ne.s32.totalorder %s172, %s173
      %p182 = scmp.eq.s32.totalorder %s22, 0
      %p183 = por %p181, %p182
      %p184 = scmp.ne.s32.totalorder %s172, %s173
      %p185 = scmp.eq.s32.totalorder %s23, 1
      %p186 = por %p184, %p185
      %p188 = scmp.ne.s32.totalorder %s173, %s187
      %p189 = scmp.eq.s32.totalorder %s23, 0
      %p190 = por %p188, %p189
      %s192 = sadd.s32 %s191, 1
      %p195 = scmp.eq.s32.totalorder %s17, 1
      %p196 = scmp.ne.s32.totalorder %s191, %s193
      %p197 = scmp.eq.s32.totalorder %s17, 0
      %p198 = por %p196, %p197
      %p199 = scmp.ne.s32.totalorder %s191, %s193
      %p200 = scmp.eq.s32.totalorder %s22, 1
      %p201 = por %p199, %p200
      %p202 = scmp.ne.s32.totalorder %s193, %s194
      %p203 = scmp.eq.s32.totalorder %s22, 0
      %p204 = por %p202, %p203
      %p205 = scmp.ne.s32.totalorder %s193, %s194
      %p206 = scmp.eq.s32.totalorder %s23, 1
      %p207 = por %p205, %p206
      %p209 = scmp.ne.s32.totalorder %s194, %s208
      %p210 = scmp.eq.s32.totalorder %s23, 0
      %p211 = por %p209, %p210
      %s213 = sadd.s32 %s212, 1
      %p216 = scmp.eq.s32.totalorder %s17, 1
      %p217 = scmp.ne.s32.totalorder %s212, %s214
      %p218 = scmp.eq.s32.totalorder %s17, 0
      %p219 = por %p217, %p218
      %p220 = scmp.ne.s32.totalorder %s212, %s214
      %p221 = scmp.eq.s32.totalorder %s22, 1
      %p222 = por %p220, %p221
      %p223 = scmp.ne.s32.totalorder %s214, %s215
      %p224 = scmp.eq.s32.totalorder %s22, 0
      %p225 = por %p223, %p224
      %p226 = scmp.ne.s32.totalorder %s214, %s215
      %p227 = scmp.eq.s32.totalorder %s23, 1
      %p228 = por %p226, %p227
      %p230 = scmp.ne.s32.totalorder %s215, %s229
      %p231 = scmp.eq.s32.totalorder %s23, 0
      %p232 = por %p230, %p231
      %s233 = ssub.s32 %s24, %s43
      %s234 = ssub.s32 %s25, %s39
      %s235 = sor.u32 %s233, %s234
      %p236 = scmp.eq.s32.totalorder %s235, 0
      %s238 = sadd.s32 %s237, 1
      %s239 = scalar_select %p236, %s237, %s238
      %p242 = pneg %p236
      %p243 = scmp.eq.s32.totalorder %s17, 1
      %p244 = por %p242, %p243
      %p245 = scmp.ne.s32.totalorder %s237, %s240
      %p246 = scmp.eq.s32.totalorder %s17, 0
      %p247 = por %p245, %p246
      %p248 = scmp.ne.s32.totalorder %s237, %s240
      %p249 = scmp.eq.s32.totalorder %s22, 1
      %p250 = por %p248, %p249
      %p251 = scmp.ne.s32.totalorder %s240, %s241
      %p252 = scmp.eq.s32.totalorder %s22, 0
      %p253 = por %p251, %p252
      %p254 = scmp.ne.s32.totalorder %s240, %s241
      %p255 = scmp.eq.s32.totalorder %s23, 1
      %p256 = por %p254, %p255
      %p258 = scmp.ne.s32.totalorder %s241, %s257
      %p259 = scmp.eq.s32.totalorder %s23, 0
      %p260 = por %p258, %p259
      %p261 = scmp.le.s32.totalorder 1, %s17
      %p262 = scmp.lt.s32.totalorder %s17, 3
      %p263 = pnand %p261, %p262
      %p264 = pneg %p263
      // Predicated region
      $region9: #{cross_attention_forward.1} parent=5 // pred_check
        _
      $region10: #{cross_attention_forward.1} parent=5 // pred_check_branch
        %266 = sbr.rel (%p263) target = $region12
      $region11: #{cross_attention_forward.1} parent=5 // pred_region
        %s267 = ssub.s32 %s17, 1
        // Predicated region
        $region13: #{cross_attention_forward.1} parent=11 // pred_check
          %p268 = pneg %p141
        $region14: #{cross_attention_forward.1} parent=11 // pred_check_branch
          %270 = sbr.rel (%p268) target = $region16
        $region15: #{cross_attention_forward.1} parent=11 // pred_region
          _
        $region16: #{cross_attention_forward.1} parent=11 // pred_fallthru
          _
        // Predicated region
        $region17: #{cross_attention_forward.1} parent=11 // pred_check
          %p271 = pneg %p162
        $region18: #{cross_attention_forward.1} parent=11 // pred_check_branch
          %273 = sbr.rel (%p271) target = $region20
        $region19: #{cross_attention_forward.1} parent=11 // pred_region
          _
        $region20: #{cross_attention_forward.1} parent=11 // pred_fallthru
          _
        // Predicated region
        $region21: #{cross_attention_forward.1} parent=11 // pred_check
          %p274 = pneg %p183
        $region22: #{cross_attention_forward.1} parent=11 // pred_check_branch
          %276 = sbr.rel (%p274) target = $region24
        $region23: #{cross_attention_forward.1} parent=11 // pred_region
          _
        $region24: #{cross_attention_forward.1} parent=11 // pred_fallthru
          _
        // Predicated region
        $region25: #{cross_attention_forward.1} parent=11 // pred_check
          %p277 = pneg %p204
        $region26: #{cross_attention_forward.1} parent=11 // pred_check_branch
          %279 = sbr.rel (%p277) target = $region28
        $region27: #{cross_attention_forward.1} parent=11 // pred_region
          _
        $region28: #{cross_attention_forward.1} parent=11 // pred_fallthru
          _
        // Predicated region
        $region29: #{cross_attention_forward.1} parent=11 // pred_check
          %p280 = pneg %p225
        $region30: #{cross_attention_forward.1} parent=11 // pred_check_branch
          %282 = sbr.rel (%p280) target = $region32
        $region31: #{cross_attention_forward.1} parent=11 // pred_region
          _
        $region32: #{cross_attention_forward.1} parent=11 // pred_fallthru
          _
      $region12: #{cross_attention_forward.1} parent=5 // pred_fallthru
        _
      %p283 = scmp.lt.s32.totalorder %s17, 2
      // Predicated region
      $region33: #{cross_attention_forward.1} parent=5 // pred_check
        %p284 = pneg %p283
      $region34: #{cross_attention_forward.1} parent=5 // pred_check_branch
        %286 = sbr.rel (%p284) target = $region36
      $region35: #{cross_attention_forward.1} parent=5 // pred_region
        // Predicated region
        $region37: #{cross_attention_forward.1} parent=35 // pred_check
          %p287 = pneg %p58
        $region38: #{cross_attention_forward.1} parent=35 // pred_check_branch
          %289 = sbr.rel (%p287) target = $region40
        $region39: #{cross_attention_forward.1} parent=35 // pred_region
          %s290 = smul.u32 32, %s25
          %p291 = scmp.lt.s32.totalorder %s24, 1
          %s292 = scalar_select %p291, %s24, 1
          %p293 = scmp.lt.s32.totalorder %s290, 31
          %s294 = scalar_select %p293, %s290, 31
          %s295 = smul.addr %s292, 32
          %s296 = sadd.s32 %s294, %s295
          %s297 = smul.addr %s296, 4
          %s298 = scalar_lea.vmem %s0, %s297
          %s299 = smul.u32 32, %s25
        $region40: #{cross_attention_forward.1} parent=35 // pred_fallthru
          _
        // Predicated region
        $region41: #{cross_attention_forward.1} parent=35 // pred_check
          %p300 = pneg %p86
        $region42: #{cross_attention_forward.1} parent=35 // pred_check_branch
          %302 = sbr.rel (%p300) target = $region44
        $region43: #{cross_attention_forward.1} parent=35 // pred_region
          %s303 = smul.u32 32, %s26
          %p304 = scmp.lt.s32.totalorder %s24, 1
          %s305 = scalar_select %p304, %s24, 1
          %p306 = scmp.lt.s32.totalorder %s303, 31
          %s307 = scalar_select %p306, %s303, 31
          %s308 = smul.addr %s305, 32
          %s309 = sadd.s32 %s307, %s308
          %s310 = smul.addr %s309, 4
          %s311 = scalar_lea.vmem %s1, %s310
          %s312 = smul.u32 32, %s26
        $region44: #{cross_attention_forward.1} parent=35 // pred_fallthru
          _
        // Predicated region
        $region45: #{cross_attention_forward.1} parent=35 // pred_check
          %p313 = pneg %p114
        $region46: #{cross_attention_forward.1} parent=35 // pred_check_branch
          %315 = sbr.rel (%p313) target = $region48
        $region47: #{cross_attention_forward.1} parent=35 // pred_region
          %s316 = smul.u32 32, %s25
          %p317 = scmp.lt.s32.totalorder %s24, 1
          %s318 = scalar_select %p317, %s24, 1
          %p319 = scmp.lt.s32.totalorder %s316, 31
          %s320 = scalar_select %p319, %s316, 31
          %s321 = smul.addr %s318, 32
          %s322 = sadd.s32 %s320, %s321
          %s323 = smul.addr %s322, 8
          %s324 = scalar_lea.vmem %s2, %s323
          %s325 = smul.u32 32, %s25
        $region48: #{cross_attention_forward.1} parent=35 // pred_fallthru
          _
      $region36: #{cross_attention_forward.1} parent=5 // pred_fallthru
        _
      %p326 = scmp.le.s32.totalorder 1, %s17
      %p327 = scmp.lt.s32.totalorder %s17, 3
      %p328 = pnand %p326, %p327
      %p329 = pneg %p328
      // Predicated region
      $region49: #{cross_attention_forward.1} parent=5 // pred_check
        _
      $region50: #{cross_attention_forward.1} parent=5 // pred_check_branch
        %331 = sbr.rel (%p328) target = $region52
      $region51: #{cross_attention_forward.1} parent=5 // pred_region
        %s332 = ssub.s32 %s17, 1
        %s333 = smul.u32 32, %s28
        %p334 = scmp.lt.s32.totalorder %s27, 1
        %s335 = scalar_select %p334, %s27, 1
        %p336 = scmp.lt.s32.totalorder %s333, 31
        %s337 = scalar_select %p336, %s333, 31
        %s338 = smul.addr %s335, 32
        %s339 = sadd.s32 %s337, %s338
        %s340 = smul.addr %s339, 4
        %s341 = scalar_lea.vmem %s0, %s340
        %p342 = pneg %p64
        %p343 = pneg %p61
        %s344 = smul.u32 32, %s29
        %p345 = scmp.lt.s32.totalorder %s27, 1
        %s346 = scalar_select %p345, %s27, 1
        %p347 = scmp.lt.s32.totalorder %s344, 31
        %s348 = scalar_select %p347, %s344, 31
        %s349 = smul.addr %s346, 32
        %s350 = sadd.s32 %s348, %s349
        %s351 = smul.addr %s350, 4
        %s352 = scalar_lea.vmem %s1, %s351
        %p353 = pneg %p92
        %p354 = pneg %p89
        %s355 = smul.u32 32, %s28
        %p356 = scmp.lt.s32.totalorder %s27, 1
        %s357 = scalar_select %p356, %s27, 1
        %p358 = scmp.lt.s32.totalorder %s355, 31
        %s359 = scalar_select %p358, %s355, 31
        %s360 = smul.addr %s357, 32
        %s361 = sadd.s32 %s359, %s360
        %s362 = smul.addr %s361, 8
        %s363 = scalar_lea.vmem %s2, %s362
        %p364 = pneg %p120
        %p365 = pneg %p117
        %p366 = pneg %p141
        %p367 = pneg %p138
        %p368 = pneg %p162
        %p369 = pneg %p159
        %p370 = pneg %p183
        %p371 = pneg %p180
        %p372 = pneg %p204
        %p373 = pneg %p201
        %p374 = pneg %p225
        %p375 = pneg %p222
        %p376 = pneg %p253
        %p377 = pneg %p250
        %s378 = sand.u32 %s240, 1
        %s379 = scalar_lea.sflag [#allocation9], %s378
        %s380 = sand.u32 %s240, 1
        %s381 = smul.addr %s380, 256
        %s382 = scalar_lea.vmem [#allocation8], %s381
        %s383 = smul.u32 32, %s28
        %p384 = scmp.lt.s32.totalorder %s27, 1
        %s385 = scalar_select %p384, %s27, 1
        %p386 = scmp.lt.s32.totalorder %s383, 31
        %s387 = scalar_select %p386, %s383, 31
        %s388 = smul.addr %s385, 32
        %s389 = sadd.s32 %s387, %s388
        %s390 = smul.addr %s389, 4
        %s391 = scalar_lea.vmem %s0, %s390
        %s392 = smul.u32 32, %s28
        %s393 = smul.u32 32, %s29
        %p394 = scmp.lt.s32.totalorder %s27, 1
        %s395 = scalar_select %p394, %s27, 1
        %p396 = scmp.lt.s32.totalorder %s393, 31
        %s397 = scalar_select %p396, %s393, 31
        %s398 = smul.addr %s395, 32
        %s399 = sadd.s32 %s397, %s398
        %s400 = smul.addr %s399, 4
        %s401 = scalar_lea.vmem %s1, %s400
        %s402 = smul.u32 32, %s29
        %s403 = smul.u32 32, %s28
        %p404 = scmp.lt.s32.totalorder %s27, 1
        %s405 = scalar_select %p404, %s27, 1
        %p406 = scmp.lt.s32.totalorder %s403, 31
        %s407 = scalar_select %p406, %s403, 31
        %s408 = smul.addr %s405, 32
        %s409 = sadd.s32 %s407, %s408
        %s410 = smul.addr %s409, 8
        %s411 = scalar_lea.vmem %s2, %s410
        %s412 = smul.u32 32, %s28
        %s413 = smul.u32 32, %s28
        %s415 = smul.u32 %s29, 256
        %p416 = scmp.eq.s32.totalorder %s28, 0
        // Predicated region
        $region53: #{cross_attention_forward.1} parent=51 // pred_check
          %p417 = pneg %p416
        $region54: #{cross_attention_forward.1} parent=51 // pred_check_branch
          %419 = sbr.rel (%p417) target = $region56
        $region55: #{cross_attention_forward.1} parent=51 // pred_region
          %v420 = vld [vmem:[%s401] sm:$0xf]
          %v421 = vld [vmem:[%s401 + $0x4] sm:$0xf]
          %v422 = vld [vmem:[%s401 + $0x8] sm:$0xf]
          %v423 = vld [vmem:[%s401 + $0xc] sm:$0xf]
          %v424 = vld [vmem:[%s401 + $0x10] sm:$0xf]
          %v425 = vld [vmem:[%s401 + $0x14] sm:$0xf]
          %v426 = vld [vmem:[%s401 + $0x18] sm:$0xf]
          %v427 = vld [vmem:[%s401 + $0x1c] sm:$0xf]
          %v428 = vld [vmem:[%s401 + $0x20] sm:$0xf]
          %v429 = vld [vmem:[%s401 + $0x24] sm:$0xf]
          %v430 = vld [vmem:[%s401 + $0x28] sm:$0xf]
          %v431 = vld [vmem:[%s401 + $0x2c] sm:$0xf]
          %v432 = vld [vmem:[%s401 + $0x30] sm:$0xf]
          %v433 = vld [vmem:[%s401 + $0x34] sm:$0xf]
          %v434 = vld [vmem:[%s401 + $0x38] sm:$0xf]
          %v435 = vld [vmem:[%s401 + $0x3c] sm:$0xf]
          %v436 = vld [vmem:[%s401 + $0x40] sm:$0xf]
          %v437 = vld [vmem:[%s401 + $0x44] sm:$0xf]
          %v438 = vld [vmem:[%s401 + $0x48] sm:$0xf]
          %v439 = vld [vmem:[%s401 + $0x4c] sm:$0xf]
          %v440 = vld [vmem:[%s401 + $0x50] sm:$0xf]
          %v441 = vld [vmem:[%s401 + $0x54] sm:$0xf]
          %v442 = vld [vmem:[%s401 + $0x58] sm:$0xf]
          %v443 = vld [vmem:[%s401 + $0x5c] sm:$0xf]
          %v444 = vld [vmem:[%s401 + $0x60] sm:$0xf]
          %v445 = vld [vmem:[%s401 + $0x64] sm:$0xf]
          %v446 = vld [vmem:[%s401 + $0x68] sm:$0xf]
          %v447 = vld [vmem:[%s401 + $0x6c] sm:$0xf]
          %v448 = vld [vmem:[%s401 + $0x70] sm:$0xf]
          %v449 = vld [vmem:[%s401 + $0x74] sm:$0xf]
          %v450 = vld [vmem:[%s401 + $0x78] sm:$0xf]
          %v451 = vld [vmem:[%s401 + $0x7c] sm:$0xf]
          %v452 = vld [vmem:[%s4] sm:$0xf]
          %v453 = vld [vmem:[%s4 + $0x4] sm:$0xf]
          %v454 = vld [vmem:[%s4 + $0x8] sm:$0xf]
          %v455 = vld [vmem:[%s4 + $0xc] sm:$0xf]
          %v456 = vld [vmem:[%s4 + $0x10] sm:$0xf]
          %v457 = vld [vmem:[%s4 + $0x14] sm:$0xf]
          %v458 = vld [vmem:[%s4 + $0x18] sm:$0xf]
          %v459 = vld [vmem:[%s4 + $0x1c] sm:$0xf]
          %v460 = vld [vmem:[%s4 + $0x20] sm:$0xf]
          %v461 = vld [vmem:[%s4 + $0x24] sm:$0xf]
          %v462 = vld [vmem:[%s4 + $0x28] sm:$0xf]
          %v463 = vld [vmem:[%s4 + $0x2c] sm:$0xf]
          %v464 = vld [vmem:[%s4 + $0x30] sm:$0xf]
          %v465 = vld [vmem:[%s4 + $0x34] sm:$0xf]
          %v466 = vld [vmem:[%s4 + $0x38] sm:$0xf]
          %v467 = vld [vmem:[%s4 + $0x3c] sm:$0xf]
          %v500 = vunpack.c.l.b16 %v420
          %v501 = vunpack.c.l.b16 %v421
          %v502 = vunpack.c.l.b16 %v422
          %v503 = vunpack.c.l.b16 %v423
          %v504 = vunpack.c.l.b16 %v424
          %v505 = vunpack.c.l.b16 %v425
          %v506 = vunpack.c.l.b16 %v426
          %v507 = vunpack.c.l.b16 %v427
          %v508 = vunpack.c.l.b16 %v428
          %v509 = vunpack.c.l.b16 %v429
          %v510 = vunpack.c.l.b16 %v430
          %v511 = vunpack.c.l.b16 %v431
          %v512 = vunpack.c.l.b16 %v432
          %v513 = vunpack.c.l.b16 %v433
          %v514 = vunpack.c.l.b16 %v434
          %v515 = vunpack.c.l.b16 %v435
          %v516 = vunpack.c.l.b16 %v436
          %v517 = vunpack.c.l.b16 %v437
          %v518 = vunpack.c.l.b16 %v438
          %v519 = vunpack.c.l.b16 %v439
          %v520 = vunpack.c.l.b16 %v440
          %v521 = vunpack.c.l.b16 %v441
          %v522 = vunpack.c.l.b16 %v442
          %v523 = vunpack.c.l.b16 %v443
          %v524 = vunpack.c.l.b16 %v444
          %v525 = vunpack.c.l.b16 %v445
          %v526 = vunpack.c.l.b16 %v446
          %v527 = vunpack.c.l.b16 %v447
          %v528 = vunpack.c.l.b16 %v448
          %v529 = vunpack.c.l.b16 %v449
          %v530 = vunpack.c.l.b16 %v450
          %v531 = vunpack.c.l.b16 %v451
          %v532 = vpack.c.b16 %v501, %v500
          %v533 = vpack.c.b16 %v503, %v502
          %v534 = vpack.c.b16 %v505, %v504
          %v535 = vpack.c.b16 %v507, %v506
          %v536 = vpack.c.b16 %v509, %v508
          %v537 = vpack.c.b16 %v511, %v510
          %v538 = vpack.c.b16 %v513, %v512
          %v539 = vpack.c.b16 %v515, %v514
          %v540 = vpack.c.b16 %v517, %v516
          %v541 = vpack.c.b16 %v519, %v518
          %v542 = vpack.c.b16 %v521, %v520
          %v543 = vpack.c.b16 %v523, %v522
          %v544 = vpack.c.b16 %v525, %v524
          %v545 = vpack.c.b16 %v527, %v526
          %v546 = vpack.c.b16 %v529, %v528
          %v547 = vpack.c.b16 %v531, %v530
          %v580 = vunpack.c.l.b16 %v452
          %v581 = vunpack.c.l.b16 %v453
          %v582 = vunpack.c.l.b16 %v454
          %v583 = vunpack.c.l.b16 %v455
          %v584 = vunpack.c.l.b16 %v456
          %v585 = vunpack.c.l.b16 %v457
          %v586 = vunpack.c.l.b16 %v458
          %v587 = vunpack.c.l.b16 %v459
          %v588 = vunpack.c.l.b16 %v460
          %v589 = vunpack.c.l.b16 %v461
          %v590 = vunpack.c.l.b16 %v462
          %v591 = vunpack.c.l.b16 %v463
          %v592 = vunpack.c.l.b16 %v464
          %v593 = vunpack.c.l.b16 %v465
          %v594 = vunpack.c.l.b16 %v466
          %v595 = vunpack.c.l.b16 %v467
          %v596 = vpack.c.b16 %v581, %v580
          %v597 = vpack.c.b16 %v583, %v582
          %v598 = vpack.c.b16 %v585, %v584
          %v599 = vpack.c.b16 %v587, %v586
          %v600 = vpack.c.b16 %v589, %v588
          %v601 = vpack.c.b16 %v591, %v590
          %v602 = vpack.c.b16 %v593, %v592
          %v603 = vpack.c.b16 %v595, %v594
          %612 = vmatprep.subr.bf16.mxu0 0
          %613 = vmatpush1.bf16.msra.mxu0 %v603
          %614 = vmatprep.subr.bf16.mxu0 0
          %615 = vmatpush1.bf16.msra.mxu0 %v602
          %616 = vmatprep.subr.bf16.mxu0 0
          %617 = vmatpush1.bf16.msra.mxu0 %v601
          %618 = vmatprep.subr.bf16.mxu0 0
          %619 = vmatpush1.bf16.msra.mxu0 %v600
          %620 = vmatprep.subr.bf16.mxu0 0
          %621 = vmatpush1.bf16.msra.mxu0 %v599
          %622 = vmatprep.subr.bf16.mxu0 0
          %623 = vmatpush1.bf16.msra.mxu0 %v598
          %624 = vmatprep.subr.bf16.mxu0 0
          %625 = vmatpush1.bf16.msra.mxu0 %v597
          %626 = vmatprep.subr.bf16.mxu0 0
          %627 = vmatpush1.bf16.msra.mxu0 %v596
          %628 = vmatprep.subr.bf16.mxu0 0
          %629 = vmatpush2.bf16.msra.mxu0 0
          %630 = vmatprep.subr.bf16.mxu0 0
          %631 = vmatpush2.bf16.msra.mxu0 0
          %632 = vmatprep.subr.bf16.mxu0 0
          %633 = vmatpush2.bf16.msra.mxu0 0
          %634 = vmatprep.subr.bf16.mxu0 0
          %635 = vmatpush2.bf16.msra.mxu0 0
          %636 = vmatprep.subr.bf16.mxu0 0
          %637 = vmatpush2.bf16.msra.mxu0 0
          %638 = vmatprep.subr.bf16.mxu0 0
          %639 = vmatpush2.bf16.msra.mxu0 0
          %640 = vmatprep.subr.bf16.mxu0 0
          %641 = vmatpush2.bf16.msra.mxu0 0
          %642 = vmatprep.subr.bf16.mxu0 0
          %643 = vmatpush2.bf16.msra.mxu0 0
          %644 = vmatprep.mubr.bf16.mxu0 0
          %645 = vmatmul.mubr.bf16.gmra.mxu0 %v532
          %v646 = vpop.f32.mrf.mxu0
          %v647 = vadd.f32 0.0, %v646
          %v648 = vpop.f32.mrf.mxu0
          %v649 = vpop.f32.mrf.mxu0
          %v650 = vadd.f32 0.0, %v649
          %v651 = vpop.f32.mrf.mxu0
          %652 = vmatprep.mubr.bf16.mxu0 0
          %653 = vmatmul.mubr.bf16.gmra.mxu0 %v533
          %v654 = vpop.f32.mrf.mxu0
          %v655 = vadd.f32 0.0, %v654
          %v656 = vpop.f32.mrf.mxu0
          %v657 = vpop.f32.mrf.mxu0
          %v658 = vadd.f32 0.0, %v657
          %v659 = vpop.f32.mrf.mxu0
          %660 = vmatprep.mubr.bf16.mxu0 0
          %661 = vmatmul.mubr.bf16.gmra.mxu0 %v534
          %v662 = vpop.f32.mrf.mxu0
          %v663 = vadd.f32 0.0, %v662
          %v664 = vpop.f32.mrf.mxu0
          %v665 = vpop.f32.mrf.mxu0
          %v666 = vadd.f32 0.0, %v665
          %v667 = vpop.f32.mrf.mxu0
          %668 = vmatprep.mubr.bf16.mxu0 0
          %669 = vmatmul.mubr.bf16.gmra.mxu0 %v535
          %v670 = vpop.f32.mrf.mxu0
          %v671 = vadd.f32 0.0, %v670
          %v672 = vpop.f32.mrf.mxu0
          %v673 = vpop.f32.mrf.mxu0
          %v674 = vadd.f32 0.0, %v673
          %v675 = vpop.f32.mrf.mxu0
          %676 = vmatprep.mubr.bf16.mxu0 0
          %677 = vmatmul.mubr.bf16.gmra.mxu0 %v536
          %v678 = vpop.f32.mrf.mxu0
          %v679 = vadd.f32 0.0, %v678
          %v680 = vpop.f32.mrf.mxu0
          %v681 = vpop.f32.mrf.mxu0
          %v682 = vadd.f32 0.0, %v681
          %v683 = vpop.f32.mrf.mxu0
          %684 = vmatprep.mubr.bf16.mxu0 0
          %685 = vmatmul.mubr.bf16.gmra.mxu0 %v537
          %v686 = vpop.f32.mrf.mxu0
          %v687 = vadd.f32 0.0, %v686
          %v688 = vpop.f32.mrf.mxu0
          %v689 = vpop.f32.mrf.mxu0
          %v690 = vadd.f32 0.0, %v689
          %v691 = vpop.f32.mrf.mxu0
          %692 = vmatprep.mubr.bf16.mxu0 0
          %693 = vmatmul.mubr.bf16.gmra.mxu0 %v538
          %v694 = vpop.f32.mrf.mxu0
          %v695 = vadd.f32 0.0, %v694
          %v696 = vpop.f32.mrf.mxu0
          %v697 = vpop.f32.mrf.mxu0
          %v698 = vadd.f32 0.0, %v697
          %v699 = vpop.f32.mrf.mxu0
          %700 = vmatprep.mubr.bf16.mxu0 0
          %701 = vmatmul.mubr.bf16.gmra.mxu0 %v539
          %v702 = vpop.f32.mrf.mxu0
          %v703 = vadd.f32 0.0, %v702
          %v704 = vpop.f32.mrf.mxu0
          %v705 = vpop.f32.mrf.mxu0
          %v706 = vadd.f32 0.0, %v705
          %v707 = vpop.f32.mrf.mxu0
          %708 = vmatprep.mubr.bf16.mxu0 0
          %709 = vmatmul.mubr.bf16.gmra.mxu0 %v540
          %v710 = vpop.f32.mrf.mxu0
          %v711 = vadd.f32 0.0, %v710
          %v712 = vpop.f32.mrf.mxu0
          %v713 = vpop.f32.mrf.mxu0
          %v714 = vadd.f32 0.0, %v713
          %v715 = vpop.f32.mrf.mxu0
          %716 = vmatprep.mubr.bf16.mxu0 0
          %717 = vmatmul.mubr.bf16.gmra.mxu0 %v541
          %v718 = vpop.f32.mrf.mxu0
          %v719 = vadd.f32 0.0, %v718
          %v720 = vpop.f32.mrf.mxu0
          %v721 = vpop.f32.mrf.mxu0
          %v722 = vadd.f32 0.0, %v721
          %v723 = vpop.f32.mrf.mxu0
          %724 = vmatprep.mubr.bf16.mxu0 0
          %725 = vmatmul.mubr.bf16.gmra.mxu0 %v542
          %v726 = vpop.f32.mrf.mxu0
          %v727 = vadd.f32 0.0, %v726
          %v728 = vpop.f32.mrf.mxu0
          %v729 = vpop.f32.mrf.mxu0
          %v730 = vadd.f32 0.0, %v729
          %v731 = vpop.f32.mrf.mxu0
          %732 = vmatprep.mubr.bf16.mxu0 0
          %733 = vmatmul.mubr.bf16.gmra.mxu0 %v543
          %v734 = vpop.f32.mrf.mxu0
          %v735 = vadd.f32 0.0, %v734
          %v736 = vpop.f32.mrf.mxu0
          %v737 = vpop.f32.mrf.mxu0
          %v738 = vadd.f32 0.0, %v737
          %v739 = vpop.f32.mrf.mxu0
          %740 = vmatprep.mubr.bf16.mxu0 0
          %741 = vmatmul.mubr.bf16.gmra.mxu0 %v544
          %v742 = vpop.f32.mrf.mxu0
          %v743 = vadd.f32 0.0, %v742
          %v744 = vpop.f32.mrf.mxu0
          %v745 = vpop.f32.mrf.mxu0
          %v746 = vadd.f32 0.0, %v745
          %v747 = vpop.f32.mrf.mxu0
          %748 = vmatprep.mubr.bf16.mxu0 0
          %749 = vmatmul.mubr.bf16.gmra.mxu0 %v545
          %v750 = vpop.f32.mrf.mxu0
          %v751 = vadd.f32 0.0, %v750
          %v752 = vpop.f32.mrf.mxu0
          %v753 = vpop.f32.mrf.mxu0
          %v754 = vadd.f32 0.0, %v753
          %v755 = vpop.f32.mrf.mxu0
          %756 = vmatprep.mubr.bf16.mxu0 0
          %757 = vmatmul.mubr.bf16.gmra.mxu0 %v546
          %v758 = vpop.f32.mrf.mxu0
          %v759 = vadd.f32 0.0, %v758
          %v760 = vpop.f32.mrf.mxu0
          %v761 = vpop.f32.mrf.mxu0
          %v762 = vadd.f32 0.0, %v761
          %v763 = vpop.f32.mrf.mxu0
          %764 = vmatprep.mubr.bf16.mxu0 0
          %765 = vmatmul.mubr.bf16.gmra.mxu0 %v547
          %v766 = vpop.f32.mrf.mxu0
          %v767 = vadd.f32 0.0, %v766
          %v768 = vpop.f32.mrf.mxu0
          %v769 = vpop.f32.mrf.mxu0
          %v770 = vadd.f32 0.0, %v769
          %v771 = vpop.f32.mrf.mxu0
          %772 = vdwg.mxu0
          %v773 = vpack.c.bf16 %v650, %v647
          %v774 = vpack.c.bf16 %v658, %v655
          %v775 = vpack.c.bf16 %v666, %v663
          %v776 = vpack.c.bf16 %v674, %v671
          %v777 = vpack.c.bf16 %v682, %v679
          %v778 = vpack.c.bf16 %v690, %v687
          %v779 = vpack.c.bf16 %v698, %v695
          %v780 = vpack.c.bf16 %v706, %v703
          %v781 = vpack.c.bf16 %v714, %v711
          %v782 = vpack.c.bf16 %v722, %v719
          %v783 = vpack.c.bf16 %v730, %v727
          %v784 = vpack.c.bf16 %v738, %v735
          %v785 = vpack.c.bf16 %v746, %v743
          %v786 = vpack.c.bf16 %v754, %v751
          %v787 = vpack.c.bf16 %v762, %v759
          %v788 = vpack.c.bf16 %v770, %v767
          %v805 = vunpack.c.l.b16 %v773
          %v806 = vunpack.c.h.b16 %v773
          %v807 = vunpack.c.l.b16 %v774
          %v808 = vunpack.c.h.b16 %v774
          %v809 = vunpack.c.l.b16 %v775
          %v810 = vunpack.c.h.b16 %v775
          %v811 = vunpack.c.l.b16 %v776
          %v812 = vunpack.c.h.b16 %v776
          %v813 = vunpack.c.l.b16 %v777
          %v814 = vunpack.c.h.b16 %v777
          %v815 = vunpack.c.l.b16 %v778
          %v816 = vunpack.c.h.b16 %v778
          %v817 = vunpack.c.l.b16 %v779
          %v818 = vunpack.c.h.b16 %v779
          %v819 = vunpack.c.l.b16 %v780
          %v820 = vunpack.c.h.b16 %v780
          %v821 = vunpack.c.l.b16 %v781
          %v822 = vunpack.c.h.b16 %v781
          %v823 = vunpack.c.l.b16 %v782
          %v824 = vunpack.c.h.b16 %v782
          %v825 = vunpack.c.l.b16 %v783
          %v826 = vunpack.c.h.b16 %v783
          %v827 = vunpack.c.l.b16 %v784
          %v828 = vunpack.c.h.b16 %v784
          %v829 = vunpack.c.l.b16 %v785
          %v830 = vunpack.c.h.b16 %v785
          %v831 = vunpack.c.l.b16 %v786
          %v832 = vunpack.c.h.b16 %v786
          %v833 = vunpack.c.l.b16 %v787
          %v834 = vunpack.c.h.b16 %v787
          %v835 = vunpack.c.l.b16 %v788
          %v836 = vunpack.c.h.b16 %v788
          %v837 = vpack.c.b16 %v805, %v805
          %v838 = vpack.c.b16 %v806, %v806
          %v839 = vpack.c.b16 %v807, %v807
          %v840 = vpack.c.b16 %v808, %v808
          %v841 = vpack.c.b16 %v809, %v809
          %v842 = vpack.c.b16 %v810, %v810
          %v843 = vpack.c.b16 %v811, %v811
          %v844 = vpack.c.b16 %v812, %v812
          %v845 = vpack.c.b16 %v813, %v813
          %v846 = vpack.c.b16 %v814, %v814
          %v847 = vpack.c.b16 %v815, %v815
          %v848 = vpack.c.b16 %v816, %v816
          %v849 = vpack.c.b16 %v817, %v817
          %v850 = vpack.c.b16 %v818, %v818
          %v851 = vpack.c.b16 %v819, %v819
          %v852 = vpack.c.b16 %v820, %v820
          %v853 = vpack.c.b16 %v821, %v821
          %v854 = vpack.c.b16 %v822, %v822
          %v855 = vpack.c.b16 %v823, %v823
          %v856 = vpack.c.b16 %v824, %v824
          %v857 = vpack.c.b16 %v825, %v825
          %v858 = vpack.c.b16 %v826, %v826
          %v859 = vpack.c.b16 %v827, %v827
          %v860 = vpack.c.b16 %v828, %v828
          %v861 = vpack.c.b16 %v829, %v829
          %v862 = vpack.c.b16 %v830, %v830
          %v863 = vpack.c.b16 %v831, %v831
          %v864 = vpack.c.b16 %v832, %v832
          %v865 = vpack.c.b16 %v833, %v833
          %v866 = vpack.c.b16 %v834, %v834
          %v867 = vpack.c.b16 %v835, %v835
          %v868 = vpack.c.b16 %v836, %v836
          %s901 = sshra.s32 %s415, 3
          %s902 = sand.u32 %s415, 7
          %s903 = smul.addr %s901, 4
          %s904 = scalar_lea.vmem [#allocation3], %s903
          %905 = vst [vmem:[%s904] sm:$0xf] %v837
          %906 = vst [vmem:[%s904 + $0x4] sm:$0xf] %v838
          %907 = vst [vmem:[%s904 + $0x8] sm:$0xf] %v839
          %908 = vst [vmem:[%s904 + $0xc] sm:$0xf] %v840
          %909 = vst [vmem:[%s904 + $0x10] sm:$0xf] %v841
          %910 = vst [vmem:[%s904 + $0x14] sm:$0xf] %v842
          %911 = vst [vmem:[%s904 + $0x18] sm:$0xf] %v843
          %912 = vst [vmem:[%s904 + $0x1c] sm:$0xf] %v844
          %913 = vst [vmem:[%s904 + $0x20] sm:$0xf] %v845
          %914 = vst [vmem:[%s904 + $0x24] sm:$0xf] %v846
          %915 = vst [vmem:[%s904 + $0x28] sm:$0xf] %v847
          %916 = vst [vmem:[%s904 + $0x2c] sm:$0xf] %v848
          %917 = vst [vmem:[%s904 + $0x30] sm:$0xf] %v849
          %918 = vst [vmem:[%s904 + $0x34] sm:$0xf] %v850
          %919 = vst [vmem:[%s904 + $0x38] sm:$0xf] %v851
          %920 = vst [vmem:[%s904 + $0x3c] sm:$0xf] %v852
          %921 = vst [vmem:[%s904 + $0x40] sm:$0xf] %v853
          %922 = vst [vmem:[%s904 + $0x44] sm:$0xf] %v854
          %923 = vst [vmem:[%s904 + $0x48] sm:$0xf] %v855
          %924 = vst [vmem:[%s904 + $0x4c] sm:$0xf] %v856
          %925 = vst [vmem:[%s904 + $0x50] sm:$0xf] %v857
          %926 = vst [vmem:[%s904 + $0x54] sm:$0xf] %v858
          %927 = vst [vmem:[%s904 + $0x58] sm:$0xf] %v859
          %928 = vst [vmem:[%s904 + $0x5c] sm:$0xf] %v860
          %929 = vst [vmem:[%s904 + $0x60] sm:$0xf] %v861
          %930 = vst [vmem:[%s904 + $0x64] sm:$0xf] %v862
          %931 = vst [vmem:[%s904 + $0x68] sm:$0xf] %v863
          %932 = vst [vmem:[%s904 + $0x6c] sm:$0xf] %v864
          %933 = vst [vmem:[%s904 + $0x70] sm:$0xf] %v865
          %934 = vst [vmem:[%s904 + $0x74] sm:$0xf] %v866
          %935 = vst [vmem:[%s904 + $0x78] sm:$0xf] %v867
          %936 = vst [vmem:[%s904 + $0x7c] sm:$0xf] %v868
          %v937 = vld [vmem:[%s5] sm:$0xf]
          %v938 = vld [vmem:[%s5 + $0x4] sm:$0xf]
          %v939 = vld [vmem:[%s5 + $0x8] sm:$0xf]
          %v940 = vld [vmem:[%s5 + $0xc] sm:$0xf]
          %v941 = vld [vmem:[%s5 + $0x10] sm:$0xf]
          %v942 = vld [vmem:[%s5 + $0x14] sm:$0xf]
          %v943 = vld [vmem:[%s5 + $0x18] sm:$0xf]
          %v944 = vld [vmem:[%s5 + $0x1c] sm:$0xf]
          %v945 = vld [vmem:[%s5 + $0x20] sm:$0xf]
          %v946 = vld [vmem:[%s5 + $0x24] sm:$0xf]
          %v947 = vld [vmem:[%s5 + $0x28] sm:$0xf]
          %v948 = vld [vmem:[%s5 + $0x2c] sm:$0xf]
          %v949 = vld [vmem:[%s5 + $0x30] sm:$0xf]
          %v950 = vld [vmem:[%s5 + $0x34] sm:$0xf]
          %v951 = vld [vmem:[%s5 + $0x38] sm:$0xf]
          %v952 = vld [vmem:[%s5 + $0x3c] sm:$0xf]
          %v969 = vunpack.c.l.b16 %v937
          %v970 = vunpack.c.l.b16 %v938
          %v971 = vunpack.c.l.b16 %v939
          %v972 = vunpack.c.l.b16 %v940
          %v973 = vunpack.c.l.b16 %v941
          %v974 = vunpack.c.l.b16 %v942
          %v975 = vunpack.c.l.b16 %v943
          %v976 = vunpack.c.l.b16 %v944
          %v977 = vunpack.c.l.b16 %v945
          %v978 = vunpack.c.l.b16 %v946
          %v979 = vunpack.c.l.b16 %v947
          %v980 = vunpack.c.l.b16 %v948
          %v981 = vunpack.c.l.b16 %v949
          %v982 = vunpack.c.l.b16 %v950
          %v983 = vunpack.c.l.b16 %v951
          %v984 = vunpack.c.l.b16 %v952
          %v985 = vpack.c.b16 %v970, %v969
          %v986 = vpack.c.b16 %v972, %v971
          %v987 = vpack.c.b16 %v974, %v973
          %v988 = vpack.c.b16 %v976, %v975
          %v989 = vpack.c.b16 %v978, %v977
          %v990 = vpack.c.b16 %v980, %v979
          %v991 = vpack.c.b16 %v982, %v981
          %v992 = vpack.c.b16 %v984, %v983
          %1001 = vmatprep.subr.bf16.mxu0 0
          %1002 = vmatpush1.bf16.msra.mxu0 %v992
          %1003 = vmatprep.subr.bf16.mxu0 0
          %1004 = vmatpush1.bf16.msra.mxu0 %v991
          %1005 = vmatprep.subr.bf16.mxu0 0
          %1006 = vmatpush1.bf16.msra.mxu0 %v990
          %1007 = vmatprep.subr.bf16.mxu0 0
          %1008 = vmatpush1.bf16.msra.mxu0 %v989
          %1009 = vmatprep.subr.bf16.mxu0 0
          %1010 = vmatpush1.bf16.msra.mxu0 %v988
          %1011 = vmatprep.subr.bf16.mxu0 0
          %1012 = vmatpush1.bf16.msra.mxu0 %v987
          %1013 = vmatprep.subr.bf16.mxu0 0
          %1014 = vmatpush1.bf16.msra.mxu0 %v986
          %1015 = vmatprep.subr.bf16.mxu0 0
          %1016 = vmatpush1.bf16.msra.mxu0 %v985
          %1017 = vmatprep.subr.bf16.mxu0 0
          %1018 = vmatpush2.bf16.msra.mxu0 0
          %1019 = vmatprep.subr.bf16.mxu0 0
          %1020 = vmatpush2.bf16.msra.mxu0 0
          %1021 = vmatprep.subr.bf16.mxu0 0
          %1022 = vmatpush2.bf16.msra.mxu0 0
          %1023 = vmatprep.subr.bf16.mxu0 0
          %1024 = vmatpush2.bf16.msra.mxu0 0
          %1025 = vmatprep.subr.bf16.mxu0 0
          %1026 = vmatpush2.bf16.msra.mxu0 0
          %1027 = vmatprep.subr.bf16.mxu0 0
          %1028 = vmatpush2.bf16.msra.mxu0 0
          %1029 = vmatprep.subr.bf16.mxu0 0
          %1030 = vmatpush2.bf16.msra.mxu0 0
          %1031 = vmatprep.subr.bf16.mxu0 0
          %1032 = vmatpush2.bf16.msra.mxu0 0
          %1033 = vmatprep.mubr.bf16.mxu0 0
          %1034 = vmatmul.mubr.bf16.gmra.mxu0 %v532
          %v1035 = vpop.f32.mrf.mxu0
          %v1036 = vadd.f32 0.0, %v1035
          %v1037 = vpop.f32.mrf.mxu0
          %v1038 = vpop.f32.mrf.mxu0
          %v1039 = vadd.f32 0.0, %v1038
          %v1040 = vpop.f32.mrf.mxu0
          %1041 = vmatprep.mubr.bf16.mxu0 0
          %1042 = vmatmul.mubr.bf16.gmra.mxu0 %v533
          %v1043 = vpop.f32.mrf.mxu0
          %v1044 = vadd.f32 0.0, %v1043
          %v1045 = vpop.f32.mrf.mxu0
          %v1046 = vpop.f32.mrf.mxu0
          %v1047 = vadd.f32 0.0, %v1046
          %v1048 = vpop.f32.mrf.mxu0
          %1049 = vmatprep.mubr.bf16.mxu0 0
          %1050 = vmatmul.mubr.bf16.gmra.mxu0 %v534
          %v1051 = vpop.f32.mrf.mxu0
          %v1052 = vadd.f32 0.0, %v1051
          %v1053 = vpop.f32.mrf.mxu0
          %v1054 = vpop.f32.mrf.mxu0
          %v1055 = vadd.f32 0.0, %v1054
          %v1056 = vpop.f32.mrf.mxu0
          %1057 = vmatprep.mubr.bf16.mxu0 0
          %1058 = vmatmul.mubr.bf16.gmra.mxu0 %v535
          %v1059 = vpop.f32.mrf.mxu0
          %v1060 = vadd.f32 0.0, %v1059
          %v1061 = vpop.f32.mrf.mxu0
          %v1062 = vpop.f32.mrf.mxu0
          %v1063 = vadd.f32 0.0, %v1062
          %v1064 = vpop.f32.mrf.mxu0
          %1065 = vmatprep.mubr.bf16.mxu0 0
          %1066 = vmatmul.mubr.bf16.gmra.mxu0 %v536
          %v1067 = vpop.f32.mrf.mxu0
          %v1068 = vadd.f32 0.0, %v1067
          %v1069 = vpop.f32.mrf.mxu0
          %v1070 = vpop.f32.mrf.mxu0
          %v1071 = vadd.f32 0.0, %v1070
          %v1072 = vpop.f32.mrf.mxu0
          %1073 = vmatprep.mubr.bf16.mxu0 0
          %1074 = vmatmul.mubr.bf16.gmra.mxu0 %v537
          %v1075 = vpop.f32.mrf.mxu0
          %v1076 = vadd.f32 0.0, %v1075
          %v1077 = vpop.f32.mrf.mxu0
          %v1078 = vpop.f32.mrf.mxu0
          %v1079 = vadd.f32 0.0, %v1078
          %v1080 = vpop.f32.mrf.mxu0
          %1081 = vmatprep.mubr.bf16.mxu0 0
          %1082 = vmatmul.mubr.bf16.gmra.mxu0 %v538
          %v1083 = vpop.f32.mrf.mxu0
          %v1084 = vadd.f32 0.0, %v1083
          %v1085 = vpop.f32.mrf.mxu0
          %v1086 = vpop.f32.mrf.mxu0
          %v1087 = vadd.f32 0.0, %v1086
          %v1088 = vpop.f32.mrf.mxu0
          %1089 = vmatprep.mubr.bf16.mxu0 0
          %1090 = vmatmul.mubr.bf16.gmra.mxu0 %v539
          %v1091 = vpop.f32.mrf.mxu0
          %v1092 = vadd.f32 0.0, %v1091
          %v1093 = vpop.f32.mrf.mxu0
          %v1094 = vpop.f32.mrf.mxu0
          %v1095 = vadd.f32 0.0, %v1094
          %v1096 = vpop.f32.mrf.mxu0
          %1097 = vmatprep.mubr.bf16.mxu0 0
          %1098 = vmatmul.mubr.bf16.gmra.mxu0 %v540
          %v1099 = vpop.f32.mrf.mxu0
          %v1100 = vadd.f32 0.0, %v1099
          %v1101 = vpop.f32.mrf.mxu0
          %v1102 = vpop.f32.mrf.mxu0
          %v1103 = vadd.f32 0.0, %v1102
          %v1104 = vpop.f32.mrf.mxu0
          %1105 = vmatprep.mubr.bf16.mxu0 0
          %1106 = vmatmul.mubr.bf16.gmra.mxu0 %v541
          %v1107 = vpop.f32.mrf.mxu0
          %v1108 = vadd.f32 0.0, %v1107
          %v1109 = vpop.f32.mrf.mxu0
          %v1110 = vpop.f32.mrf.mxu0
          %v1111 = vadd.f32 0.0, %v1110
          %v1112 = vpop.f32.mrf.mxu0
          %1113 = vmatprep.mubr.bf16.mxu0 0
          %1114 = vmatmul.mubr.bf16.gmra.mxu0 %v542
          %v1115 = vpop.f32.mrf.mxu0
          %v1116 = vadd.f32 0.0, %v1115
          %v1117 = vpop.f32.mrf.mxu0
          %v1118 = vpop.f32.mrf.mxu0
          %v1119 = vadd.f32 0.0, %v1118
          %v1120 = vpop.f32.mrf.mxu0
          %1121 = vmatprep.mubr.bf16.mxu0 0
          %1122 = vmatmul.mubr.bf16.gmra.mxu0 %v543
          %v1123 = vpop.f32.mrf.mxu0
          %v1124 = vadd.f32 0.0, %v1123
          %v1125 = vpop.f32.mrf.mxu0
          %v1126 = vpop.f32.mrf.mxu0
          %v1127 = vadd.f32 0.0, %v1126
          %v1128 = vpop.f32.mrf.mxu0
          %1129 = vmatprep.mubr.bf16.mxu0 0
          %1130 = vmatmul.mubr.bf16.gmra.mxu0 %v544
          %v1131 = vpop.f32.mrf.mxu0
          %v1132 = vadd.f32 0.0, %v1131
          %v1133 = vpop.f32.mrf.mxu0
          %v1134 = vpop.f32.mrf.mxu0
          %v1135 = vadd.f32 0.0, %v1134
          %v1136 = vpop.f32.mrf.mxu0
          %1137 = vmatprep.mubr.bf16.mxu0 0
          %1138 = vmatmul.mubr.bf16.gmra.mxu0 %v545
          %v1139 = vpop.f32.mrf.mxu0
          %v1140 = vadd.f32 0.0, %v1139
          %v1141 = vpop.f32.mrf.mxu0
          %v1142 = vpop.f32.mrf.mxu0
          %v1143 = vadd.f32 0.0, %v1142
          %v1144 = vpop.f32.mrf.mxu0
          %1145 = vmatprep.mubr.bf16.mxu0 0
          %1146 = vmatmul.mubr.bf16.gmra.mxu0 %v546
          %v1147 = vpop.f32.mrf.mxu0
          %v1148 = vadd.f32 0.0, %v1147
          %v1149 = vpop.f32.mrf.mxu0
          %v1150 = vpop.f32.mrf.mxu0
          %v1151 = vadd.f32 0.0, %v1150
          %v1152 = vpop.f32.mrf.mxu0
          %1153 = vmatprep.mubr.bf16.mxu0 0
          %1154 = vmatmul.mubr.bf16.gmra.mxu0 %v547
          %v1155 = vpop.f32.mrf.mxu0
          %v1156 = vadd.f32 0.0, %v1155
          %v1157 = vpop.f32.mrf.mxu0
          %v1158 = vpop.f32.mrf.mxu0
          %v1159 = vadd.f32 0.0, %v1158
          %v1160 = vpop.f32.mrf.mxu0
          %1161 = vdwg.mxu0
          %v1162 = vpack.c.bf16 %v1039, %v1036
          %v1163 = vpack.c.bf16 %v1047, %v1044
          %v1164 = vpack.c.bf16 %v1055, %v1052
          %v1165 = vpack.c.bf16 %v1063, %v1060
          %v1166 = vpack.c.bf16 %v1071, %v1068
          %v1167 = vpack.c.bf16 %v1079, %v1076
          %v1168 = vpack.c.bf16 %v1087, %v1084
          %v1169 = vpack.c.bf16 %v1095, %v1092
          %v1170 = vpack.c.bf16 %v1103, %v1100
          %v1171 = vpack.c.bf16 %v1111, %v1108
          %v1172 = vpack.c.bf16 %v1119, %v1116
          %v1173 = vpack.c.bf16 %v1127, %v1124
          %v1174 = vpack.c.bf16 %v1135, %v1132
          %v1175 = vpack.c.bf16 %v1143, %v1140
          %v1176 = vpack.c.bf16 %v1151, %v1148
          %v1177 = vpack.c.bf16 %v1159, %v1156
          %v1194 = vunpack.c.l.b16 %v1162
          %v1195 = vunpack.c.h.b16 %v1162
          %v1196 = vunpack.c.l.b16 %v1163
          %v1197 = vunpack.c.h.b16 %v1163
          %v1198 = vunpack.c.l.b16 %v1164
          %v1199 = vunpack.c.h.b16 %v1164
          %v1200 = vunpack.c.l.b16 %v1165
          %v1201 = vunpack.c.h.b16 %v1165
          %v1202 = vunpack.c.l.b16 %v1166
          %v1203 = vunpack.c.h.b16 %v1166
          %v1204 = vunpack.c.l.b16 %v1167
          %v1205 = vunpack.c.h.b16 %v1167
          %v1206 = vunpack.c.l.b16 %v1168
          %v1207 = vunpack.c.h.b16 %v1168
          %v1208 = vunpack.c.l.b16 %v1169
          %v1209 = vunpack.c.h.b16 %v1169
          %v1210 = vunpack.c.l.b16 %v1170
          %v1211 = vunpack.c.h.b16 %v1170
          %v1212 = vunpack.c.l.b16 %v1171
          %v1213 = vunpack.c.h.b16 %v1171
          %v1214 = vunpack.c.l.b16 %v1172
          %v1215 = vunpack.c.h.b16 %v1172
          %v1216 = vunpack.c.l.b16 %v1173
          %v1217 = vunpack.c.h.b16 %v1173
          %v1218 = vunpack.c.l.b16 %v1174
          %v1219 = vunpack.c.h.b16 %v1174
          %v1220 = vunpack.c.l.b16 %v1175
          %v1221 = vunpack.c.h.b16 %v1175
          %v1222 = vunpack.c.l.b16 %v1176
          %v1223 = vunpack.c.h.b16 %v1176
          %v1224 = vunpack.c.l.b16 %v1177
          %v1225 = vunpack.c.h.b16 %v1177
          %v1226 = vpack.c.b16 %v1194, %v1194
          %v1227 = vpack.c.b16 %v1195, %v1195
          %v1228 = vpack.c.b16 %v1196, %v1196
          %v1229 = vpack.c.b16 %v1197, %v1197
          %v1230 = vpack.c.b16 %v1198, %v1198
          %v1231 = vpack.c.b16 %v1199, %v1199
          %v1232 = vpack.c.b16 %v1200, %v1200
          %v1233 = vpack.c.b16 %v1201, %v1201
          %v1234 = vpack.c.b16 %v1202, %v1202
          %v1235 = vpack.c.b16 %v1203, %v1203
          %v1236 = vpack.c.b16 %v1204, %v1204
          %v1237 = vpack.c.b16 %v1205, %v1205
          %v1238 = vpack.c.b16 %v1206, %v1206
          %v1239 = vpack.c.b16 %v1207, %v1207
          %v1240 = vpack.c.b16 %v1208, %v1208
          %v1241 = vpack.c.b16 %v1209, %v1209
          %v1242 = vpack.c.b16 %v1210, %v1210
          %v1243 = vpack.c.b16 %v1211, %v1211
          %v1244 = vpack.c.b16 %v1212, %v1212
          %v1245 = vpack.c.b16 %v1213, %v1213
          %v1246 = vpack.c.b16 %v1214, %v1214
          %v1247 = vpack.c.b16 %v1215, %v1215
          %v1248 = vpack.c.b16 %v1216, %v1216
          %v1249 = vpack.c.b16 %v1217, %v1217
          %v1250 = vpack.c.b16 %v1218, %v1218
          %v1251 = vpack.c.b16 %v1219, %v1219
          %v1252 = vpack.c.b16 %v1220, %v1220
          %v1253 = vpack.c.b16 %v1221, %v1221
          %v1254 = vpack.c.b16 %v1222, %v1222
          %v1255 = vpack.c.b16 %v1223, %v1223
          %v1256 = vpack.c.b16 %v1224, %v1224
          %v1257 = vpack.c.b16 %v1225, %v1225
          %s1290 = smul.addr %s901, 4
          %s1291 = scalar_lea.vmem [#allocation4], %s1290
          %1292 = vst [vmem:[%s1291] sm:$0xf] %v1226
          %1293 = vst [vmem:[%s1291 + $0x4] sm:$0xf] %v1227
          %1294 = vst [vmem:[%s1291 + $0x8] sm:$0xf] %v1228
          %1295 = vst [vmem:[%s1291 + $0xc] sm:$0xf] %v1229
          %1296 = vst [vmem:[%s1291 + $0x10] sm:$0xf] %v1230
          %1297 = vst [vmem:[%s1291 + $0x14] sm:$0xf] %v1231
          %1298 = vst [vmem:[%s1291 + $0x18] sm:$0xf] %v1232
          %1299 = vst [vmem:[%s1291 + $0x1c] sm:$0xf] %v1233
          %1300 = vst [vmem:[%s1291 + $0x20] sm:$0xf] %v1234
          %1301 = vst [vmem:[%s1291 + $0x24] sm:$0xf] %v1235
          %1302 = vst [vmem:[%s1291 + $0x28] sm:$0xf] %v1236
          %1303 = vst [vmem:[%s1291 + $0x2c] sm:$0xf] %v1237
          %1304 = vst [vmem:[%s1291 + $0x30] sm:$0xf] %v1238
          %1305 = vst [vmem:[%s1291 + $0x34] sm:$0xf] %v1239
          %1306 = vst [vmem:[%s1291 + $0x38] sm:$0xf] %v1240
          %1307 = vst [vmem:[%s1291 + $0x3c] sm:$0xf] %v1241
          %1308 = vst [vmem:[%s1291 + $0x40] sm:$0xf] %v1242
          %1309 = vst [vmem:[%s1291 + $0x44] sm:$0xf] %v1243
          %1310 = vst [vmem:[%s1291 + $0x48] sm:$0xf] %v1244
          %1311 = vst [vmem:[%s1291 + $0x4c] sm:$0xf] %v1245
          %1312 = vst [vmem:[%s1291 + $0x50] sm:$0xf] %v1246
          %1313 = vst [vmem:[%s1291 + $0x54] sm:$0xf] %v1247
          %1314 = vst [vmem:[%s1291 + $0x58] sm:$0xf] %v1248
          %1315 = vst [vmem:[%s1291 + $0x5c] sm:$0xf] %v1249
          %1316 = vst [vmem:[%s1291 + $0x60] sm:$0xf] %v1250
          %1317 = vst [vmem:[%s1291 + $0x64] sm:$0xf] %v1251
          %1318 = vst [vmem:[%s1291 + $0x68] sm:$0xf] %v1252
          %1319 = vst [vmem:[%s1291 + $0x6c] sm:$0xf] %v1253
          %1320 = vst [vmem:[%s1291 + $0x70] sm:$0xf] %v1254
          %1321 = vst [vmem:[%s1291 + $0x74] sm:$0xf] %v1255
          %1322 = vst [vmem:[%s1291 + $0x78] sm:$0xf] %v1256
          %1323 = vst [vmem:[%s1291 + $0x7c] sm:$0xf] %v1257
        $region56: #{cross_attention_forward.1} parent=51 // pred_fallthru
          _
        %p1324 = scmp.eq.s32.totalorder %s29, 0
        // Predicated region
        $region57: #{cross_attention_forward.1} parent=51 // pred_check
          %p1325 = pneg %p1324
        $region58: #{cross_attention_forward.1} parent=51 // pred_check_branch
          %1327 = sbr.rel (%p1325) target = $region60
        $region59: #{cross_attention_forward.1} parent=51 // pred_region
          %v1328 = vld [vmem:[%s391] sm:$0xf]
          %v1329 = vld [vmem:[%s391 + $0x4] sm:$0xf]
          %v1330 = vld [vmem:[%s391 + $0x8] sm:$0xf]
          %v1331 = vld [vmem:[%s391 + $0xc] sm:$0xf]
          %v1332 = vld [vmem:[%s391 + $0x10] sm:$0xf]
          %v1333 = vld [vmem:[%s391 + $0x14] sm:$0xf]
          %v1334 = vld [vmem:[%s391 + $0x18] sm:$0xf]
          %v1335 = vld [vmem:[%s391 + $0x1c] sm:$0xf]
          %v1336 = vld [vmem:[%s391 + $0x20] sm:$0xf]
          %v1337 = vld [vmem:[%s391 + $0x24] sm:$0xf]
          %v1338 = vld [vmem:[%s391 + $0x28] sm:$0xf]
          %v1339 = vld [vmem:[%s391 + $0x2c] sm:$0xf]
          %v1340 = vld [vmem:[%s391 + $0x30] sm:$0xf]
          %v1341 = vld [vmem:[%s391 + $0x34] sm:$0xf]
          %v1342 = vld [vmem:[%s391 + $0x38] sm:$0xf]
          %v1343 = vld [vmem:[%s391 + $0x3c] sm:$0xf]
          %v1344 = vld [vmem:[%s391 + $0x40] sm:$0xf]
          %v1345 = vld [vmem:[%s391 + $0x44] sm:$0xf]
          %v1346 = vld [vmem:[%s391 + $0x48] sm:$0xf]
          %v1347 = vld [vmem:[%s391 + $0x4c] sm:$0xf]
          %v1348 = vld [vmem:[%s391 + $0x50] sm:$0xf]
          %v1349 = vld [vmem:[%s391 + $0x54] sm:$0xf]
          %v1350 = vld [vmem:[%s391 + $0x58] sm:$0xf]
          %v1351 = vld [vmem:[%s391 + $0x5c] sm:$0xf]
          %v1352 = vld [vmem:[%s391 + $0x60] sm:$0xf]
          %v1353 = vld [vmem:[%s391 + $0x64] sm:$0xf]
          %v1354 = vld [vmem:[%s391 + $0x68] sm:$0xf]
          %v1355 = vld [vmem:[%s391 + $0x6c] sm:$0xf]
          %v1356 = vld [vmem:[%s391 + $0x70] sm:$0xf]
          %v1357 = vld [vmem:[%s391 + $0x74] sm:$0xf]
          %v1358 = vld [vmem:[%s391 + $0x78] sm:$0xf]
          %v1359 = vld [vmem:[%s391 + $0x7c] sm:$0xf]
          %v1360 = vld [vmem:[%s3] sm:$0xf]
          %v1361 = vld [vmem:[%s3 + $0x4] sm:$0xf]
          %v1362 = vld [vmem:[%s3 + $0x8] sm:$0xf]
          %v1363 = vld [vmem:[%s3 + $0xc] sm:$0xf]
          %v1364 = vld [vmem:[%s3 + $0x10] sm:$0xf]
          %v1365 = vld [vmem:[%s3 + $0x14] sm:$0xf]
          %v1366 = vld [vmem:[%s3 + $0x18] sm:$0xf]
          %v1367 = vld [vmem:[%s3 + $0x1c] sm:$0xf]
          %v1368 = vld [vmem:[%s3 + $0x20] sm:$0xf]
          %v1369 = vld [vmem:[%s3 + $0x24] sm:$0xf]
          %v1370 = vld [vmem:[%s3 + $0x28] sm:$0xf]
          %v1371 = vld [vmem:[%s3 + $0x2c] sm:$0xf]
          %v1372 = vld [vmem:[%s3 + $0x30] sm:$0xf]
          %v1373 = vld [vmem:[%s3 + $0x34] sm:$0xf]
          %v1374 = vld [vmem:[%s3 + $0x38] sm:$0xf]
          %v1375 = vld [vmem:[%s3 + $0x3c] sm:$0xf]
          %v1408 = vunpack.c.l.b16 %v1328
          %v1409 = vunpack.c.l.b16 %v1329
          %v1410 = vunpack.c.l.b16 %v1330
          %v1411 = vunpack.c.l.b16 %v1331
          %v1412 = vunpack.c.l.b16 %v1332
          %v1413 = vunpack.c.l.b16 %v1333
          %v1414 = vunpack.c.l.b16 %v1334
          %v1415 = vunpack.c.l.b16 %v1335
          %v1416 = vunpack.c.l.b16 %v1336
          %v1417 = vunpack.c.l.b16 %v1337
          %v1418 = vunpack.c.l.b16 %v1338
          %v1419 = vunpack.c.l.b16 %v1339
          %v1420 = vunpack.c.l.b16 %v1340
          %v1421 = vunpack.c.l.b16 %v1341
          %v1422 = vunpack.c.l.b16 %v1342
          %v1423 = vunpack.c.l.b16 %v1343
          %v1424 = vunpack.c.l.b16 %v1344
          %v1425 = vunpack.c.l.b16 %v1345
          %v1426 = vunpack.c.l.b16 %v1346
          %v1427 = vunpack.c.l.b16 %v1347
          %v1428 = vunpack.c.l.b16 %v1348
          %v1429 = vunpack.c.l.b16 %v1349
          %v1430 = vunpack.c.l.b16 %v1350
          %v1431 = vunpack.c.l.b16 %v1351
          %v1432 = vunpack.c.l.b16 %v1352
          %v1433 = vunpack.c.l.b16 %v1353
          %v1434 = vunpack.c.l.b16 %v1354
          %v1435 = vunpack.c.l.b16 %v1355
          %v1436 = vunpack.c.l.b16 %v1356
          %v1437 = vunpack.c.l.b16 %v1357
          %v1438 = vunpack.c.l.b16 %v1358
          %v1439 = vunpack.c.l.b16 %v1359
          %v1440 = vpack.c.b16 %v1409, %v1408
          %v1441 = vpack.c.b16 %v1411, %v1410
          %v1442 = vpack.c.b16 %v1413, %v1412
          %v1443 = vpack.c.b16 %v1415, %v1414
          %v1444 = vpack.c.b16 %v1417, %v1416
          %v1445 = vpack.c.b16 %v1419, %v1418
          %v1446 = vpack.c.b16 %v1421, %v1420
          %v1447 = vpack.c.b16 %v1423, %v1422
          %v1448 = vpack.c.b16 %v1425, %v1424
          %v1449 = vpack.c.b16 %v1427, %v1426
          %v1450 = vpack.c.b16 %v1429, %v1428
          %v1451 = vpack.c.b16 %v1431, %v1430
          %v1452 = vpack.c.b16 %v1433, %v1432
          %v1453 = vpack.c.b16 %v1435, %v1434
          %v1454 = vpack.c.b16 %v1437, %v1436
          %v1455 = vpack.c.b16 %v1439, %v1438
          %v1488 = vunpack.c.l.b16 %v1360
          %v1489 = vunpack.c.l.b16 %v1361
          %v1490 = vunpack.c.l.b16 %v1362
          %v1491 = vunpack.c.l.b16 %v1363
          %v1492 = vunpack.c.l.b16 %v1364
          %v1493 = vunpack.c.l.b16 %v1365
          %v1494 = vunpack.c.l.b16 %v1366
          %v1495 = vunpack.c.l.b16 %v1367
          %v1496 = vunpack.c.l.b16 %v1368
          %v1497 = vunpack.c.l.b16 %v1369
          %v1498 = vunpack.c.l.b16 %v1370
          %v1499 = vunpack.c.l.b16 %v1371
          %v1500 = vunpack.c.l.b16 %v1372
          %v1501 = vunpack.c.l.b16 %v1373
          %v1502 = vunpack.c.l.b16 %v1374
          %v1503 = vunpack.c.l.b16 %v1375
          %v1504 = vpack.c.b16 %v1489, %v1488
          %v1505 = vpack.c.b16 %v1491, %v1490
          %v1506 = vpack.c.b16 %v1493, %v1492
          %v1507 = vpack.c.b16 %v1495, %v1494
          %v1508 = vpack.c.b16 %v1497, %v1496
          %v1509 = vpack.c.b16 %v1499, %v1498
          %v1510 = vpack.c.b16 %v1501, %v1500
          %v1511 = vpack.c.b16 %v1503, %v1502
          %1520 = vmatprep.subr.bf16.mxu0 0
          %1521 = vmatpush1.bf16.msra.mxu0 %v1511
          %1522 = vmatprep.subr.bf16.mxu0 0
          %1523 = vmatpush1.bf16.msra.mxu0 %v1510
          %1524 = vmatprep.subr.bf16.mxu0 0
          %1525 = vmatpush1.bf16.msra.mxu0 %v1509
          %1526 = vmatprep.subr.bf16.mxu0 0
          %1527 = vmatpush1.bf16.msra.mxu0 %v1508
          %1528 = vmatprep.subr.bf16.mxu0 0
          %1529 = vmatpush1.bf16.msra.mxu0 %v1507
          %1530 = vmatprep.subr.bf16.mxu0 0
          %1531 = vmatpush1.bf16.msra.mxu0 %v1506
          %1532 = vmatprep.subr.bf16.mxu0 0
          %1533 = vmatpush1.bf16.msra.mxu0 %v1505
          %1534 = vmatprep.subr.bf16.mxu0 0
          %1535 = vmatpush1.bf16.msra.mxu0 %v1504
          %1536 = vmatprep.subr.bf16.mxu0 0
          %1537 = vmatpush2.bf16.msra.mxu0 0
          %1538 = vmatprep.subr.bf16.mxu0 0
          %1539 = vmatpush2.bf16.msra.mxu0 0
          %1540 = vmatprep.subr.bf16.mxu0 0
          %1541 = vmatpush2.bf16.msra.mxu0 0
          %1542 = vmatprep.subr.bf16.mxu0 0
          %1543 = vmatpush2.bf16.msra.mxu0 0
          %1544 = vmatprep.subr.bf16.mxu0 0
          %1545 = vmatpush2.bf16.msra.mxu0 0
          %1546 = vmatprep.subr.bf16.mxu0 0
          %1547 = vmatpush2.bf16.msra.mxu0 0
          %1548 = vmatprep.subr.bf16.mxu0 0
          %1549 = vmatpush2.bf16.msra.mxu0 0
          %1550 = vmatprep.subr.bf16.mxu0 0
          %1551 = vmatpush2.bf16.msra.mxu0 0
          %1552 = vmatprep.mubr.bf16.mxu0 0
          %1553 = vmatmul.mubr.bf16.gmra.mxu0 %v1440
          %v1554 = vpop.f32.mrf.mxu0
          %v1555 = vadd.f32 0.0, %v1554
          %v1556 = vpop.f32.mrf.mxu0
          %v1557 = vpop.f32.mrf.mxu0
          %v1558 = vadd.f32 0.0, %v1557
          %v1559 = vpop.f32.mrf.mxu0
          %1560 = vmatprep.mubr.bf16.mxu0 0
          %1561 = vmatmul.mubr.bf16.gmra.mxu0 %v1441
          %v1562 = vpop.f32.mrf.mxu0
          %v1563 = vadd.f32 0.0, %v1562
          %v1564 = vpop.f32.mrf.mxu0
          %v1565 = vpop.f32.mrf.mxu0
          %v1566 = vadd.f32 0.0, %v1565
          %v1567 = vpop.f32.mrf.mxu0
          %1568 = vmatprep.mubr.bf16.mxu0 0
          %1569 = vmatmul.mubr.bf16.gmra.mxu0 %v1442
          %v1570 = vpop.f32.mrf.mxu0
          %v1571 = vadd.f32 0.0, %v1570
          %v1572 = vpop.f32.mrf.mxu0
          %v1573 = vpop.f32.mrf.mxu0
          %v1574 = vadd.f32 0.0, %v1573
          %v1575 = vpop.f32.mrf.mxu0
          %1576 = vmatprep.mubr.bf16.mxu0 0
          %1577 = vmatmul.mubr.bf16.gmra.mxu0 %v1443
          %v1578 = vpop.f32.mrf.mxu0
          %v1579 = vadd.f32 0.0, %v1578
          %v1580 = vpop.f32.mrf.mxu0
          %v1581 = vpop.f32.mrf.mxu0
          %v1582 = vadd.f32 0.0, %v1581
          %v1583 = vpop.f32.mrf.mxu0
          %1584 = vmatprep.mubr.bf16.mxu0 0
          %1585 = vmatmul.mubr.bf16.gmra.mxu0 %v1444
          %v1586 = vpop.f32.mrf.mxu0
          %v1587 = vadd.f32 0.0, %v1586
          %v1588 = vpop.f32.mrf.mxu0
          %v1589 = vpop.f32.mrf.mxu0
          %v1590 = vadd.f32 0.0, %v1589
          %v1591 = vpop.f32.mrf.mxu0
          %1592 = vmatprep.mubr.bf16.mxu0 0
          %1593 = vmatmul.mubr.bf16.gmra.mxu0 %v1445
          %v1594 = vpop.f32.mrf.mxu0
          %v1595 = vadd.f32 0.0, %v1594
          %v1596 = vpop.f32.mrf.mxu0
          %v1597 = vpop.f32.mrf.mxu0
          %v1598 = vadd.f32 0.0, %v1597
          %v1599 = vpop.f32.mrf.mxu0
          %1600 = vmatprep.mubr.bf16.mxu0 0
          %1601 = vmatmul.mubr.bf16.gmra.mxu0 %v1446
          %v1602 = vpop.f32.mrf.mxu0
          %v1603 = vadd.f32 0.0, %v1602
          %v1604 = vpop.f32.mrf.mxu0
          %v1605 = vpop.f32.mrf.mxu0
          %v1606 = vadd.f32 0.0, %v1605
          %v1607 = vpop.f32.mrf.mxu0
          %1608 = vmatprep.mubr.bf16.mxu0 0
          %1609 = vmatmul.mubr.bf16.gmra.mxu0 %v1447
          %v1610 = vpop.f32.mrf.mxu0
          %v1611 = vadd.f32 0.0, %v1610
          %v1612 = vpop.f32.mrf.mxu0
          %v1613 = vpop.f32.mrf.mxu0
          %v1614 = vadd.f32 0.0, %v1613
          %v1615 = vpop.f32.mrf.mxu0
          %1616 = vmatprep.mubr.bf16.mxu0 0
          %1617 = vmatmul.mubr.bf16.gmra.mxu0 %v1448
          %v1618 = vpop.f32.mrf.mxu0
          %v1619 = vadd.f32 0.0, %v1618
          %v1620 = vpop.f32.mrf.mxu0
          %v1621 = vpop.f32.mrf.mxu0
          %v1622 = vadd.f32 0.0, %v1621
          %v1623 = vpop.f32.mrf.mxu0
          %1624 = vmatprep.mubr.bf16.mxu0 0
          %1625 = vmatmul.mubr.bf16.gmra.mxu0 %v1449
          %v1626 = vpop.f32.mrf.mxu0
          %v1627 = vadd.f32 0.0, %v1626
          %v1628 = vpop.f32.mrf.mxu0
          %v1629 = vpop.f32.mrf.mxu0
          %v1630 = vadd.f32 0.0, %v1629
          %v1631 = vpop.f32.mrf.mxu0
          %1632 = vmatprep.mubr.bf16.mxu0 0
          %1633 = vmatmul.mubr.bf16.gmra.mxu0 %v1450
          %v1634 = vpop.f32.mrf.mxu0
          %v1635 = vadd.f32 0.0, %v1634
          %v1636 = vpop.f32.mrf.mxu0
          %v1637 = vpop.f32.mrf.mxu0
          %v1638 = vadd.f32 0.0, %v1637
          %v1639 = vpop.f32.mrf.mxu0
          %1640 = vmatprep.mubr.bf16.mxu0 0
          %1641 = vmatmul.mubr.bf16.gmra.mxu0 %v1451
          %v1642 = vpop.f32.mrf.mxu0
          %v1643 = vadd.f32 0.0, %v1642
          %v1644 = vpop.f32.mrf.mxu0
          %v1645 = vpop.f32.mrf.mxu0
          %v1646 = vadd.f32 0.0, %v1645
          %v1647 = vpop.f32.mrf.mxu0
          %1648 = vmatprep.mubr.bf16.mxu0 0
          %1649 = vmatmul.mubr.bf16.gmra.mxu0 %v1452
          %v1650 = vpop.f32.mrf.mxu0
          %v1651 = vadd.f32 0.0, %v1650
          %v1652 = vpop.f32.mrf.mxu0
          %v1653 = vpop.f32.mrf.mxu0
          %v1654 = vadd.f32 0.0, %v1653
          %v1655 = vpop.f32.mrf.mxu0
          %1656 = vmatprep.mubr.bf16.mxu0 0
          %1657 = vmatmul.mubr.bf16.gmra.mxu0 %v1453
          %v1658 = vpop.f32.mrf.mxu0
          %v1659 = vadd.f32 0.0, %v1658
          %v1660 = vpop.f32.mrf.mxu0
          %v1661 = vpop.f32.mrf.mxu0
          %v1662 = vadd.f32 0.0, %v1661
          %v1663 = vpop.f32.mrf.mxu0
          %1664 = vmatprep.mubr.bf16.mxu0 0
          %1665 = vmatmul.mubr.bf16.gmra.mxu0 %v1454
          %v1666 = vpop.f32.mrf.mxu0
          %v1667 = vadd.f32 0.0, %v1666
          %v1668 = vpop.f32.mrf.mxu0
          %v1669 = vpop.f32.mrf.mxu0
          %v1670 = vadd.f32 0.0, %v1669
          %v1671 = vpop.f32.mrf.mxu0
          %1672 = vmatprep.mubr.bf16.mxu0 0
          %1673 = vmatmul.mubr.bf16.gmra.mxu0 %v1455
          %v1674 = vpop.f32.mrf.mxu0
          %v1675 = vadd.f32 0.0, %v1674
          %v1676 = vpop.f32.mrf.mxu0
          %v1677 = vpop.f32.mrf.mxu0
          %v1678 = vadd.f32 0.0, %v1677
          %v1679 = vpop.f32.mrf.mxu0
          %1680 = vdwg.mxu0
          %v1681 = vpack.c.bf16 %v1558, %v1555
          %v1682 = vpack.c.bf16 %v1566, %v1563
          %v1683 = vpack.c.bf16 %v1574, %v1571
          %v1684 = vpack.c.bf16 %v1582, %v1579
          %v1685 = vpack.c.bf16 %v1590, %v1587
          %v1686 = vpack.c.bf16 %v1598, %v1595
          %v1687 = vpack.c.bf16 %v1606, %v1603
          %v1688 = vpack.c.bf16 %v1614, %v1611
          %v1689 = vpack.c.bf16 %v1622, %v1619
          %v1690 = vpack.c.bf16 %v1630, %v1627
          %v1691 = vpack.c.bf16 %v1638, %v1635
          %v1692 = vpack.c.bf16 %v1646, %v1643
          %v1693 = vpack.c.bf16 %v1654, %v1651
          %v1694 = vpack.c.bf16 %v1662, %v1659
          %v1695 = vpack.c.bf16 %v1670, %v1667
          %v1696 = vpack.c.bf16 %v1678, %v1675
          %v1713 = vunpack.c.l.b16 %v1681
          %v1714 = vunpack.c.h.b16 %v1681
          %v1715 = vunpack.c.l.b16 %v1682
          %v1716 = vunpack.c.h.b16 %v1682
          %v1717 = vunpack.c.l.b16 %v1683
          %v1718 = vunpack.c.h.b16 %v1683
          %v1719 = vunpack.c.l.b16 %v1684
          %v1720 = vunpack.c.h.b16 %v1684
          %v1721 = vunpack.c.l.b16 %v1685
          %v1722 = vunpack.c.h.b16 %v1685
          %v1723 = vunpack.c.l.b16 %v1686
          %v1724 = vunpack.c.h.b16 %v1686
          %v1725 = vunpack.c.l.b16 %v1687
          %v1726 = vunpack.c.h.b16 %v1687
          %v1727 = vunpack.c.l.b16 %v1688
          %v1728 = vunpack.c.h.b16 %v1688
          %v1729 = vunpack.c.l.b16 %v1689
          %v1730 = vunpack.c.h.b16 %v1689
          %v1731 = vunpack.c.l.b16 %v1690
          %v1732 = vunpack.c.h.b16 %v1690
          %v1733 = vunpack.c.l.b16 %v1691
          %v1734 = vunpack.c.h.b16 %v1691
          %v1735 = vunpack.c.l.b16 %v1692
          %v1736 = vunpack.c.h.b16 %v1692
          %v1737 = vunpack.c.l.b16 %v1693
          %v1738 = vunpack.c.h.b16 %v1693
          %v1739 = vunpack.c.l.b16 %v1694
          %v1740 = vunpack.c.h.b16 %v1694
          %v1741 = vunpack.c.l.b16 %v1695
          %v1742 = vunpack.c.h.b16 %v1695
          %v1743 = vunpack.c.l.b16 %v1696
          %v1744 = vunpack.c.h.b16 %v1696
          %v1745 = vpack.c.b16 %v1713, %v1713
          %v1746 = vpack.c.b16 %v1714, %v1714
          %v1747 = vpack.c.b16 %v1715, %v1715
          %v1748 = vpack.c.b16 %v1716, %v1716
          %v1749 = vpack.c.b16 %v1717, %v1717
          %v1750 = vpack.c.b16 %v1718, %v1718
          %v1751 = vpack.c.b16 %v1719, %v1719
          %v1752 = vpack.c.b16 %v1720, %v1720
          %v1753 = vpack.c.b16 %v1721, %v1721
          %v1754 = vpack.c.b16 %v1722, %v1722
          %v1755 = vpack.c.b16 %v1723, %v1723
          %v1756 = vpack.c.b16 %v1724, %v1724
          %v1757 = vpack.c.b16 %v1725, %v1725
          %v1758 = vpack.c.b16 %v1726, %v1726
          %v1759 = vpack.c.b16 %v1727, %v1727
          %v1760 = vpack.c.b16 %v1728, %v1728
          %v1761 = vpack.c.b16 %v1729, %v1729
          %v1762 = vpack.c.b16 %v1730, %v1730
          %v1763 = vpack.c.b16 %v1731, %v1731
          %v1764 = vpack.c.b16 %v1732, %v1732
          %v1765 = vpack.c.b16 %v1733, %v1733
          %v1766 = vpack.c.b16 %v1734, %v1734
          %v1767 = vpack.c.b16 %v1735, %v1735
          %v1768 = vpack.c.b16 %v1736, %v1736
          %v1769 = vpack.c.b16 %v1737, %v1737
          %v1770 = vpack.c.b16 %v1738, %v1738
          %v1771 = vpack.c.b16 %v1739, %v1739
          %v1772 = vpack.c.b16 %v1740, %v1740
          %v1773 = vpack.c.b16 %v1741, %v1741
          %v1774 = vpack.c.b16 %v1742, %v1742
          %v1775 = vpack.c.b16 %v1743, %v1743
          %v1776 = vpack.c.b16 %v1744, %v1744
          %1809 = vst [vmem:[#allocation2] sm:$0xf] %v1745
          %1810 = vst [vmem:[#allocation2 + $0x4] sm:$0xf] %v1746
          %1811 = vst [vmem:[#allocation2 + $0x8] sm:$0xf] %v1747
          %1812 = vst [vmem:[#allocation2 + $0xc] sm:$0xf] %v1748
          %1813 = vst [vmem:[#allocation2 + $0x10] sm:$0xf] %v1749
          %1814 = vst [vmem:[#allocation2 + $0x14] sm:$0xf] %v1750
          %1815 = vst [vmem:[#allocation2 + $0x18] sm:$0xf] %v1751
          %1816 = vst [vmem:[#allocation2 + $0x1c] sm:$0xf] %v1752
          %1817 = vst [vmem:[#allocation2 + $0x20] sm:$0xf] %v1753
          %1818 = vst [vmem:[#allocation2 + $0x24] sm:$0xf] %v1754
          %1819 = vst [vmem:[#allocation2 + $0x28] sm:$0xf] %v1755
          %1820 = vst [vmem:[#allocation2 + $0x2c] sm:$0xf] %v1756
          %1821 = vst [vmem:[#allocation2 + $0x30] sm:$0xf] %v1757
          %1822 = vst [vmem:[#allocation2 + $0x34] sm:$0xf] %v1758
          %1823 = vst [vmem:[#allocation2 + $0x38] sm:$0xf] %v1759
          %1824 = vst [vmem:[#allocation2 + $0x3c] sm:$0xf] %v1760
          %1825 = vst [vmem:[#allocation2 + $0x40] sm:$0xf] %v1761
          %1826 = vst [vmem:[#allocation2 + $0x44] sm:$0xf] %v1762
          %1827 = vst [vmem:[#allocation2 + $0x48] sm:$0xf] %v1763
          %1828 = vst [vmem:[#allocation2 + $0x4c] sm:$0xf] %v1764
          %1829 = vst [vmem:[#allocation2 + $0x50] sm:$0xf] %v1765
          %1830 = vst [vmem:[#allocation2 + $0x54] sm:$0xf] %v1766
          %1831 = vst [vmem:[#allocation2 + $0x58] sm:$0xf] %v1767
          %1832 = vst [vmem:[#allocation2 + $0x5c] sm:$0xf] %v1768
          %1833 = vst [vmem:[#allocation2 + $0x60] sm:$0xf] %v1769
          %1834 = vst [vmem:[#allocation2 + $0x64] sm:$0xf] %v1770
          %1835 = vst [vmem:[#allocation2 + $0x68] sm:$0xf] %v1771
          %1836 = vst [vmem:[#allocation2 + $0x6c] sm:$0xf] %v1772
          %1837 = vst [vmem:[#allocation2 + $0x70] sm:$0xf] %v1773
          %1838 = vst [vmem:[#allocation2 + $0x74] sm:$0xf] %v1774
          %1839 = vst [vmem:[#allocation2 + $0x78] sm:$0xf] %v1775
          %1840 = vst [vmem:[#allocation2 + $0x7c] sm:$0xf] %v1776
          %vm1841 = vcmask 7168
          %1842 = vst.msk [vmem:[#allocation5] sm:$0xff] %vm1841, -inf
          %1843 = vst.msk [vmem:[#allocation5 + $0x8] sm:$0xff] %vm1841, -inf
          %1844 = vst.msk [vmem:[#allocation5 + $0x10] sm:$0xff] %vm1841, -inf
          %1845 = vst.msk [vmem:[#allocation5 + $0x18] sm:$0xff] %vm1841, -inf
          %1846 = vst.msk [vmem:[#allocation5 + $0x20] sm:$0xff] %vm1841, -inf
          %1847 = vst.msk [vmem:[#allocation5 + $0x28] sm:$0xff] %vm1841, -inf
          %1848 = vst.msk [vmem:[#allocation5 + $0x30] sm:$0xff] %vm1841, -inf
          %1849 = vst.msk [vmem:[#allocation5 + $0x38] sm:$0xff] %vm1841, -inf
          %1850 = vst.msk [vmem:[#allocation5 + $0x40] sm:$0xff] %vm1841, -inf
          %1851 = vst.msk [vmem:[#allocation5 + $0x48] sm:$0xff] %vm1841, -inf
          %1852 = vst.msk [vmem:[#allocation5 + $0x50] sm:$0xff] %vm1841, -inf
          %1853 = vst.msk [vmem:[#allocation5 + $0x58] sm:$0xff] %vm1841, -inf
          %1854 = vst.msk [vmem:[#allocation5 + $0x60] sm:$0xff] %vm1841, -inf
          %1855 = vst.msk [vmem:[#allocation5 + $0x68] sm:$0xff] %vm1841, -inf
          %1856 = vst.msk [vmem:[#allocation5 + $0x70] sm:$0xff] %vm1841, -inf
          %1857 = vst.msk [vmem:[#allocation5 + $0x78] sm:$0xff] %vm1841, -inf
          %1858 = vst.msk [vmem:[#allocation5 + $0x80] sm:$0xff] %vm1841, -inf
          %1859 = vst.msk [vmem:[#allocation5 + $0x88] sm:$0xff] %vm1841, -inf
          %1860 = vst.msk [vmem:[#allocation5 + $0x90] sm:$0xff] %vm1841, -inf
          %1861 = vst.msk [vmem:[#allocation5 + $0x98] sm:$0xff] %vm1841, -inf
          %1862 = vst.msk [vmem:[#allocation5 + $0xa0] sm:$0xff] %vm1841, -inf
          %1863 = vst.msk [vmem:[#allocation5 + $0xa8] sm:$0xff] %vm1841, -inf
          %1864 = vst.msk [vmem:[#allocation5 + $0xb0] sm:$0xff] %vm1841, -inf
          %1865 = vst.msk [vmem:[#allocation5 + $0xb8] sm:$0xff] %vm1841, -inf
          %1866 = vst.msk [vmem:[#allocation5 + $0xc0] sm:$0xff] %vm1841, -inf
          %1867 = vst.msk [vmem:[#allocation5 + $0xc8] sm:$0xff] %vm1841, -inf
          %1868 = vst.msk [vmem:[#allocation5 + $0xd0] sm:$0xff] %vm1841, -inf
          %1869 = vst.msk [vmem:[#allocation5 + $0xd8] sm:$0xff] %vm1841, -inf
          %1870 = vst.msk [vmem:[#allocation5 + $0xe0] sm:$0xff] %vm1841, -inf
          %1871 = vst.msk [vmem:[#allocation5 + $0xe8] sm:$0xff] %vm1841, -inf
          %1872 = vst.msk [vmem:[#allocation5 + $0xf0] sm:$0xff] %vm1841, -inf
          %1873 = vst.msk [vmem:[#allocation5 + $0xf8] sm:$0xff] %vm1841, -inf
          %1874 = vst.msk [vmem:[#allocation6] sm:$0xff] %vm1841, 0.0
          %1875 = vst.msk [vmem:[#allocation6 + $0x8] sm:$0xff] %vm1841, 0.0
          %1876 = vst.msk [vmem:[#allocation6 + $0x10] sm:$0xff] %vm1841, 0.0
          %1877 = vst.msk [vmem:[#allocation6 + $0x18] sm:$0xff] %vm1841, 0.0
          %1878 = vst.msk [vmem:[#allocation6 + $0x20] sm:$0xff] %vm1841, 0.0
          %1879 = vst.msk [vmem:[#allocation6 + $0x28] sm:$0xff] %vm1841, 0.0
          %1880 = vst.msk [vmem:[#allocation6 + $0x30] sm:$0xff] %vm1841, 0.0
          %1881 = vst.msk [vmem:[#allocation6 + $0x38] sm:$0xff] %vm1841, 0.0
          %1882 = vst.msk [vmem:[#allocation6 + $0x40] sm:$0xff] %vm1841, 0.0
          %1883 = vst.msk [vmem:[#allocation6 + $0x48] sm:$0xff] %vm1841, 0.0
          %1884 = vst.msk [vmem:[#allocation6 + $0x50] sm:$0xff] %vm1841, 0.0
          %1885 = vst.msk [vmem:[#allocation6 + $0x58] sm:$0xff] %vm1841, 0.0
          %1886 = vst.msk [vmem:[#allocation6 + $0x60] sm:$0xff] %vm1841, 0.0
          %1887 = vst.msk [vmem:[#allocation6 + $0x68] sm:$0xff] %vm1841, 0.0
          %1888 = vst.msk [vmem:[#allocation6 + $0x70] sm:$0xff] %vm1841, 0.0
          %1889 = vst.msk [vmem:[#allocation6 + $0x78] sm:$0xff] %vm1841, 0.0
          %1890 = vst.msk [vmem:[#allocation6 + $0x80] sm:$0xff] %vm1841, 0.0
          %1891 = vst.msk [vmem:[#allocation6 + $0x88] sm:$0xff] %vm1841, 0.0
          %1892 = vst.msk [vmem:[#allocation6 + $0x90] sm:$0xff] %vm1841, 0.0
          %1893 = vst.msk [vmem:[#allocation6 + $0x98] sm:$0xff] %vm1841, 0.0
          %1894 = vst.msk [vmem:[#allocation6 + $0xa0] sm:$0xff] %vm1841, 0.0
          %1895 = vst.msk [vmem:[#allocation6 + $0xa8] sm:$0xff] %vm1841, 0.0
          %1896 = vst.msk [vmem:[#allocation6 + $0xb0] sm:$0xff] %vm1841, 0.0
          %1897 = vst.msk [vmem:[#allocation6 + $0xb8] sm:$0xff] %vm1841, 0.0
          %1898 = vst.msk [vmem:[#allocation6 + $0xc0] sm:$0xff] %vm1841, 0.0
          %1899 = vst.msk [vmem:[#allocation6 + $0xc8] sm:$0xff] %vm1841, 0.0
          %1900 = vst.msk [vmem:[#allocation6 + $0xd0] sm:$0xff] %vm1841, 0.0
          %1901 = vst.msk [vmem:[#allocation6 + $0xd8] sm:$0xff] %vm1841, 0.0
          %1902 = vst.msk [vmem:[#allocation6 + $0xe0] sm:$0xff] %vm1841, 0.0
          %1903 = vst.msk [vmem:[#allocation6 + $0xe8] sm:$0xff] %vm1841, 0.0
          %1904 = vst.msk [vmem:[#allocation6 + $0xf0] sm:$0xff] %vm1841, 0.0
          %1905 = vst.msk [vmem:[#allocation6 + $0xf8] sm:$0xff] %vm1841, 0.0
          %1906 = vst [vmem:[#allocation7] sm:$0xff] 0.0
          %1907 = vst [vmem:[#allocation7 + $0x8] sm:$0xff] 0.0
          %1908 = vst [vmem:[#allocation7 + $0x10] sm:$0xff] 0.0
          %1909 = vst [vmem:[#allocation7 + $0x18] sm:$0xff] 0.0
          %1910 = vst [vmem:[#allocation7 + $0x20] sm:$0xff] 0.0
          %1911 = vst [vmem:[#allocation7 + $0x28] sm:$0xff] 0.0
          %1912 = vst [vmem:[#allocation7 + $0x30] sm:$0xff] 0.0
          %1913 = vst [vmem:[#allocation7 + $0x38] sm:$0xff] 0.0
          %1914 = vst [vmem:[#allocation7 + $0x40] sm:$0xff] 0.0
          %1915 = vst [vmem:[#allocation7 + $0x48] sm:$0xff] 0.0
          %1916 = vst [vmem:[#allocation7 + $0x50] sm:$0xff] 0.0
          %1917 = vst [vmem:[#allocation7 + $0x58] sm:$0xff] 0.0
          %1918 = vst [vmem:[#allocation7 + $0x60] sm:$0xff] 0.0
          %1919 = vst [vmem:[#allocation7 + $0x68] sm:$0xff] 0.0
          %1920 = vst [vmem:[#allocation7 + $0x70] sm:$0xff] 0.0
          %1921 = vst [vmem:[#allocation7 + $0x78] sm:$0xff] 0.0
          %1922 = vst [vmem:[#allocation7 + $0x80] sm:$0xff] 0.0
          %1923 = vst [vmem:[#allocation7 + $0x88] sm:$0xff] 0.0
          %1924 = vst [vmem:[#allocation7 + $0x90] sm:$0xff] 0.0
          %1925 = vst [vmem:[#allocation7 + $0x98] sm:$0xff] 0.0
          %1926 = vst [vmem:[#allocation7 + $0xa0] sm:$0xff] 0.0
          %1927 = vst [vmem:[#allocation7 + $0xa8] sm:$0xff] 0.0
          %1928 = vst [vmem:[#allocation7 + $0xb0] sm:$0xff] 0.0
          %1929 = vst [vmem:[#allocation7 + $0xb8] sm:$0xff] 0.0
          %1930 = vst [vmem:[#allocation7 + $0xc0] sm:$0xff] 0.0
          %1931 = vst [vmem:[#allocation7 + $0xc8] sm:$0xff] 0.0
          %1932 = vst [vmem:[#allocation7 + $0xd0] sm:$0xff] 0.0
          %1933 = vst [vmem:[#allocation7 + $0xd8] sm:$0xff] 0.0
          %1934 = vst [vmem:[#allocation7 + $0xe0] sm:$0xff] 0.0
          %1935 = vst [vmem:[#allocation7 + $0xe8] sm:$0xff] 0.0
          %1936 = vst [vmem:[#allocation7 + $0xf0] sm:$0xff] 0.0
          %1937 = vst [vmem:[#allocation7 + $0xf8] sm:$0xff] 0.0
        $region60: #{cross_attention_forward.1} parent=51 // pred_fallthru
          _
        %s1938 = sshra.s32 %s415, 3
        %s1939 = sand.u32 %s415, 7
        %s1940 = smul.addr %s1938, 4
        %s1941 = scalar_lea.vmem [#allocation3], %s1940
        %v1942 = vld [vmem:[%s1941] sm:$0xf]
        %v1943 = vld [vmem:[%s1941 + $0x4] sm:$0xf]
        %v1944 = vld [vmem:[%s1941 + $0x8] sm:$0xf]
        %v1945 = vld [vmem:[%s1941 + $0xc] sm:$0xf]
        %v1946 = vld [vmem:[%s1941 + $0x10] sm:$0xf]
        %v1947 = vld [vmem:[%s1941 + $0x14] sm:$0xf]
        %v1948 = vld [vmem:[%s1941 + $0x18] sm:$0xf]
        %v1949 = vld [vmem:[%s1941 + $0x1c] sm:$0xf]
        %v1950 = vld [vmem:[%s1941 + $0x20] sm:$0xf]
        %v1951 = vld [vmem:[%s1941 + $0x24] sm:$0xf]
        %v1952 = vld [vmem:[%s1941 + $0x28] sm:$0xf]
        %v1953 = vld [vmem:[%s1941 + $0x2c] sm:$0xf]
        %v1954 = vld [vmem:[%s1941 + $0x30] sm:$0xf]
        %v1955 = vld [vmem:[%s1941 + $0x34] sm:$0xf]
        %v1956 = vld [vmem:[%s1941 + $0x38] sm:$0xf]
        %v1957 = vld [vmem:[%s1941 + $0x3c] sm:$0xf]
        %v1958 = vld [vmem:[%s1941 + $0x40] sm:$0xf]
        %v1959 = vld [vmem:[%s1941 + $0x44] sm:$0xf]
        %v1960 = vld [vmem:[%s1941 + $0x48] sm:$0xf]
        %v1961 = vld [vmem:[%s1941 + $0x4c] sm:$0xf]
        %v1962 = vld [vmem:[%s1941 + $0x50] sm:$0xf]
        %v1963 = vld [vmem:[%s1941 + $0x54] sm:$0xf]
        %v1964 = vld [vmem:[%s1941 + $0x58] sm:$0xf]
        %v1965 = vld [vmem:[%s1941 + $0x5c] sm:$0xf]
        %v1966 = vld [vmem:[%s1941 + $0x60] sm:$0xf]
        %v1967 = vld [vmem:[%s1941 + $0x64] sm:$0xf]
        %v1968 = vld [vmem:[%s1941 + $0x68] sm:$0xf]
        %v1969 = vld [vmem:[%s1941 + $0x6c] sm:$0xf]
        %v1970 = vld [vmem:[%s1941 + $0x70] sm:$0xf]
        %v1971 = vld [vmem:[%s1941 + $0x74] sm:$0xf]
        %v1972 = vld [vmem:[%s1941 + $0x78] sm:$0xf]
        %v1973 = vld [vmem:[%s1941 + $0x7c] sm:$0xf]
        %s1974 = smul.addr %s1938, 4
        %s1975 = scalar_lea.vmem [#allocation4], %s1974
        %v1976 = vld [vmem:[%s1975] sm:$0xf]
        %v1977 = vld [vmem:[%s1975 + $0x4] sm:$0xf]
        %v1978 = vld [vmem:[%s1975 + $0x8] sm:$0xf]
        %v1979 = vld [vmem:[%s1975 + $0xc] sm:$0xf]
        %v1980 = vld [vmem:[%s1975 + $0x10] sm:$0xf]
        %v1981 = vld [vmem:[%s1975 + $0x14] sm:$0xf]
        %v1982 = vld [vmem:[%s1975 + $0x18] sm:$0xf]
        %v1983 = vld [vmem:[%s1975 + $0x1c] sm:$0xf]
        %v1984 = vld [vmem:[%s1975 + $0x20] sm:$0xf]
        %v1985 = vld [vmem:[%s1975 + $0x24] sm:$0xf]
        %v1986 = vld [vmem:[%s1975 + $0x28] sm:$0xf]
        %v1987 = vld [vmem:[%s1975 + $0x2c] sm:$0xf]
        %v1988 = vld [vmem:[%s1975 + $0x30] sm:$0xf]
        %v1989 = vld [vmem:[%s1975 + $0x34] sm:$0xf]
        %v1990 = vld [vmem:[%s1975 + $0x38] sm:$0xf]
        %v1991 = vld [vmem:[%s1975 + $0x3c] sm:$0xf]
        %v1992 = vld [vmem:[%s1975 + $0x40] sm:$0xf]
        %v1993 = vld [vmem:[%s1975 + $0x44] sm:$0xf]
        %v1994 = vld [vmem:[%s1975 + $0x48] sm:$0xf]
        %v1995 = vld [vmem:[%s1975 + $0x4c] sm:$0xf]
        %v1996 = vld [vmem:[%s1975 + $0x50] sm:$0xf]
        %v1997 = vld [vmem:[%s1975 + $0x54] sm:$0xf]
        %v1998 = vld [vmem:[%s1975 + $0x58] sm:$0xf]
        %v1999 = vld [vmem:[%s1975 + $0x5c] sm:$0xf]
        %v2000 = vld [vmem:[%s1975 + $0x60] sm:$0xf]
        %v2001 = vld [vmem:[%s1975 + $0x64] sm:$0xf]
        %v2002 = vld [vmem:[%s1975 + $0x68] sm:$0xf]
        %v2003 = vld [vmem:[%s1975 + $0x6c] sm:$0xf]
        %v2004 = vld [vmem:[%s1975 + $0x70] sm:$0xf]
        %v2005 = vld [vmem:[%s1975 + $0x74] sm:$0xf]
        %v2006 = vld [vmem:[%s1975 + $0x78] sm:$0xf]
        %v2007 = vld [vmem:[%s1975 + $0x7c] sm:$0xf]
        %v2008 = vld [vmem:[#allocation2] sm:$0xf]
        %v2009 = vld [vmem:[#allocation2 + $0x4] sm:$0xf]
        %v2010 = vld [vmem:[#allocation2 + $0x8] sm:$0xf]
        %v2011 = vld [vmem:[#allocation2 + $0xc] sm:$0xf]
        %v2012 = vld [vmem:[#allocation2 + $0x10] sm:$0xf]
        %v2013 = vld [vmem:[#allocation2 + $0x14] sm:$0xf]
        %v2014 = vld [vmem:[#allocation2 + $0x18] sm:$0xf]
        %v2015 = vld [vmem:[#allocation2 + $0x1c] sm:$0xf]
        %v2016 = vld [vmem:[#allocation2 + $0x20] sm:$0xf]
        %v2017 = vld [vmem:[#allocation2 + $0x24] sm:$0xf]
        %v2018 = vld [vmem:[#allocation2 + $0x28] sm:$0xf]
        %v2019 = vld [vmem:[#allocation2 + $0x2c] sm:$0xf]
        %v2020 = vld [vmem:[#allocation2 + $0x30] sm:$0xf]
        %v2021 = vld [vmem:[#allocation2 + $0x34] sm:$0xf]
        %v2022 = vld [vmem:[#allocation2 + $0x38] sm:$0xf]
        %v2023 = vld [vmem:[#allocation2 + $0x3c] sm:$0xf]
        %v2024 = vld [vmem:[#allocation2 + $0x40] sm:$0xf]
        %v2025 = vld [vmem:[#allocation2 + $0x44] sm:$0xf]
        %v2026 = vld [vmem:[#allocation2 + $0x48] sm:$0xf]
        %v2027 = vld [vmem:[#allocation2 + $0x4c] sm:$0xf]
        %v2028 = vld [vmem:[#allocation2 + $0x50] sm:$0xf]
        %v2029 = vld [vmem:[#allocation2 + $0x54] sm:$0xf]
        %v2030 = vld [vmem:[#allocation2 + $0x58] sm:$0xf]
        %v2031 = vld [vmem:[#allocation2 + $0x5c] sm:$0xf]
        %v2032 = vld [vmem:[#allocation2 + $0x60] sm:$0xf]
        %v2033 = vld [vmem:[#allocation2 + $0x64] sm:$0xf]
        %v2034 = vld [vmem:[#allocation2 + $0x68] sm:$0xf]
        %v2035 = vld [vmem:[#allocation2 + $0x6c] sm:$0xf]
        %v2036 = vld [vmem:[#allocation2 + $0x70] sm:$0xf]
        %v2037 = vld [vmem:[#allocation2 + $0x74] sm:$0xf]
        %v2038 = vld [vmem:[#allocation2 + $0x78] sm:$0xf]
        %v2039 = vld [vmem:[#allocation2 + $0x7c] sm:$0xf]
        %v2072 = vunpack.c.l.b16 %v2008
        %v2073 = vunpack.c.l.b16 %v2009
        %v2074 = vunpack.c.l.b16 %v2010
        %v2075 = vunpack.c.l.b16 %v2011
        %v2076 = vunpack.c.l.b16 %v2012
        %v2077 = vunpack.c.l.b16 %v2013
        %v2078 = vunpack.c.l.b16 %v2014
        %v2079 = vunpack.c.l.b16 %v2015
        %v2080 = vunpack.c.l.b16 %v2016
        %v2081 = vunpack.c.l.b16 %v2017
        %v2082 = vunpack.c.l.b16 %v2018
        %v2083 = vunpack.c.l.b16 %v2019
        %v2084 = vunpack.c.l.b16 %v2020
        %v2085 = vunpack.c.l.b16 %v2021
        %v2086 = vunpack.c.l.b16 %v2022
        %v2087 = vunpack.c.l.b16 %v2023
        %v2088 = vunpack.c.l.b16 %v2024
        %v2089 = vunpack.c.l.b16 %v2025
        %v2090 = vunpack.c.l.b16 %v2026
        %v2091 = vunpack.c.l.b16 %v2027
        %v2092 = vunpack.c.l.b16 %v2028
        %v2093 = vunpack.c.l.b16 %v2029
        %v2094 = vunpack.c.l.b16 %v2030
        %v2095 = vunpack.c.l.b16 %v2031
        %v2096 = vunpack.c.l.b16 %v2032
        %v2097 = vunpack.c.l.b16 %v2033
        %v2098 = vunpack.c.l.b16 %v2034
        %v2099 = vunpack.c.l.b16 %v2035
        %v2100 = vunpack.c.l.b16 %v2036
        %v2101 = vunpack.c.l.b16 %v2037
        %v2102 = vunpack.c.l.b16 %v2038
        %v2103 = vunpack.c.l.b16 %v2039
        %v2104 = vpack.c.b16 %v2073, %v2072
        %v2105 = vpack.c.b16 %v2075, %v2074
        %v2106 = vpack.c.b16 %v2077, %v2076
        %v2107 = vpack.c.b16 %v2079, %v2078
        %v2108 = vpack.c.b16 %v2081, %v2080
        %v2109 = vpack.c.b16 %v2083, %v2082
        %v2110 = vpack.c.b16 %v2085, %v2084
        %v2111 = vpack.c.b16 %v2087, %v2086
        %v2112 = vpack.c.b16 %v2089, %v2088
        %v2113 = vpack.c.b16 %v2091, %v2090
        %v2114 = vpack.c.b16 %v2093, %v2092
        %v2115 = vpack.c.b16 %v2095, %v2094
        %v2116 = vpack.c.b16 %v2097, %v2096
        %v2117 = vpack.c.b16 %v2099, %v2098
        %v2118 = vpack.c.b16 %v2101, %v2100
        %v2119 = vpack.c.b16 %v2103, %v2102
        %v2168 = vunpack.c.l.b16 %v1942
        %v2169 = vunpack.c.l.b16 %v1943
        %v2170 = vunpack.c.l.b16 %v1944
        %v2171 = vunpack.c.l.b16 %v1945
        %v2172 = vunpack.c.l.b16 %v1946
        %v2173 = vunpack.c.l.b16 %v1947
        %v2174 = vunpack.c.l.b16 %v1948
        %v2175 = vunpack.c.l.b16 %v1949
        %v2176 = vunpack.c.l.b16 %v1950
        %v2177 = vunpack.c.l.b16 %v1951
        %v2178 = vunpack.c.l.b16 %v1952
        %v2179 = vunpack.c.l.b16 %v1953
        %v2180 = vunpack.c.l.b16 %v1954
        %v2181 = vunpack.c.l.b16 %v1955
        %v2182 = vunpack.c.l.b16 %v1956
        %v2183 = vunpack.c.l.b16 %v1957
        %v2184 = vunpack.c.l.b16 %v1958
        %v2185 = vunpack.c.l.b16 %v1959
        %v2186 = vunpack.c.l.b16 %v1960
        %v2187 = vunpack.c.l.b16 %v1961
        %v2188 = vunpack.c.l.b16 %v1962
        %v2189 = vunpack.c.l.b16 %v1963
        %v2190 = vunpack.c.l.b16 %v1964
        %v2191 = vunpack.c.l.b16 %v1965
        %v2192 = vunpack.c.l.b16 %v1966
        %v2193 = vunpack.c.l.b16 %v1967
        %v2194 = vunpack.c.l.b16 %v1968
        %v2195 = vunpack.c.l.b16 %v1969
        %v2196 = vunpack.c.l.b16 %v1970
        %v2197 = vunpack.c.l.b16 %v1971
        %v2198 = vunpack.c.l.b16 %v1972
        %v2199 = vunpack.c.l.b16 %v1973
        %v2200 = vpack.c.b16 %v2169, %v2168
        %v2201 = vpack.c.b16 %v2171, %v2170
        %v2202 = vpack.c.b16 %v2173, %v2172
        %v2203 = vpack.c.b16 %v2175, %v2174
        %v2204 = vpack.c.b16 %v2177, %v2176
        %v2205 = vpack.c.b16 %v2179, %v2178
        %v2206 = vpack.c.b16 %v2181, %v2180
        %v2207 = vpack.c.b16 %v2183, %v2182
        %v2208 = vpack.c.b16 %v2185, %v2184
        %v2209 = vpack.c.b16 %v2187, %v2186
        %v2210 = vpack.c.b16 %v2189, %v2188
        %v2211 = vpack.c.b16 %v2191, %v2190
        %v2212 = vpack.c.b16 %v2193, %v2192
        %v2213 = vpack.c.b16 %v2195, %v2194
        %v2214 = vpack.c.b16 %v2197, %v2196
        %v2215 = vpack.c.b16 %v2199, %v2198
        %2232 = vmatprep.subr.bf16.mxu0 0
        %2233 = vmatpush1.bf16.xpose.msra.mxu0 %v2207
        %2234 = vmatprep.subr.bf16.mxu0 0
        %2235 = vmatpush1.bf16.xpose.msra.mxu0 %v2206
        %2236 = vmatprep.subr.bf16.mxu0 0
        %2237 = vmatpush1.bf16.xpose.msra.mxu0 %v2205
        %2238 = vmatprep.subr.bf16.mxu0 0
        %2239 = vmatpush1.bf16.xpose.msra.mxu0 %v2204
        %2240 = vmatprep.subr.bf16.mxu0 0
        %2241 = vmatpush1.bf16.xpose.msra.mxu0 %v2203
        %2242 = vmatprep.subr.bf16.mxu0 0
        %2243 = vmatpush1.bf16.xpose.msra.mxu0 %v2202
        %2244 = vmatprep.subr.bf16.mxu0 0
        %2245 = vmatpush1.bf16.xpose.msra.mxu0 %v2201
        %2246 = vmatprep.subr.bf16.mxu0 0
        %2247 = vmatpush1.bf16.xpose.msra.mxu0 %v2200
        %2248 = vmatprep.subr.bf16.mxu0 0
        %2249 = vmatpush2.bf16.xpose.msra.mxu0 %v2215
        %2250 = vmatprep.subr.bf16.mxu0 0
        %2251 = vmatpush2.bf16.xpose.msra.mxu0 %v2214
        %2252 = vmatprep.subr.bf16.mxu0 0
        %2253 = vmatpush2.bf16.xpose.msra.mxu0 %v2213
        %2254 = vmatprep.subr.bf16.mxu0 0
        %2255 = vmatpush2.bf16.xpose.msra.mxu0 %v2212
        %2256 = vmatprep.subr.bf16.mxu0 0
        %2257 = vmatpush2.bf16.xpose.msra.mxu0 %v2211
        %2258 = vmatprep.subr.bf16.mxu0 0
        %2259 = vmatpush2.bf16.xpose.msra.mxu0 %v2210
        %2260 = vmatprep.subr.bf16.mxu0 0
        %2261 = vmatpush2.bf16.xpose.msra.mxu0 %v2209
        %2262 = vmatprep.subr.bf16.mxu0 0
        %2263 = vmatpush2.bf16.xpose.msra.mxu0 %v2208
        %2264 = vmatprep.mubr.bf16.mxu0 0
        %2265 = vmatmul.mubr.bf16.gmra.mxu0 %v2104
        %v2266 = vpop.f32.mrf.mxu0
        %v2267 = vadd.f32 0.0, %v2266
        %v2268 = vpop.f32.mrf.mxu0
        %v2269 = vadd.f32 0.0, %v2268
        %v2270 = vpop.f32.mrf.mxu0
        %v2271 = vadd.f32 0.0, %v2270
        %v2272 = vpop.f32.mrf.mxu0
        %v2273 = vadd.f32 0.0, %v2272
        %2274 = vmatprep.mubr.bf16.mxu0 0
        %2275 = vmatmul.mubr.bf16.gmra.mxu0 %v2105
        %v2276 = vpop.f32.mrf.mxu0
        %v2277 = vadd.f32 0.0, %v2276
        %v2278 = vpop.f32.mrf.mxu0
        %v2279 = vadd.f32 0.0, %v2278
        %v2280 = vpop.f32.mrf.mxu0
        %v2281 = vadd.f32 0.0, %v2280
        %v2282 = vpop.f32.mrf.mxu0
        %v2283 = vadd.f32 0.0, %v2282
        %2284 = vmatprep.mubr.bf16.mxu0 0
        %2285 = vmatmul.mubr.bf16.gmra.mxu0 %v2106
        %v2286 = vpop.f32.mrf.mxu0
        %v2287 = vadd.f32 0.0, %v2286
        %v2288 = vpop.f32.mrf.mxu0
        %v2289 = vadd.f32 0.0, %v2288
        %v2290 = vpop.f32.mrf.mxu0
        %v2291 = vadd.f32 0.0, %v2290
        %v2292 = vpop.f32.mrf.mxu0
        %v2293 = vadd.f32 0.0, %v2292
        %2294 = vmatprep.mubr.bf16.mxu0 0
        %2295 = vmatmul.mubr.bf16.gmra.mxu0 %v2107
        %v2296 = vpop.f32.mrf.mxu0
        %v2297 = vadd.f32 0.0, %v2296
        %v2298 = vpop.f32.mrf.mxu0
        %v2299 = vadd.f32 0.0, %v2298
        %v2300 = vpop.f32.mrf.mxu0
        %v2301 = vadd.f32 0.0, %v2300
        %v2302 = vpop.f32.mrf.mxu0
        %v2303 = vadd.f32 0.0, %v2302
        %2304 = vmatprep.mubr.bf16.mxu0 0
        %2305 = vmatmul.mubr.bf16.gmra.mxu0 %v2108
        %v2306 = vpop.f32.mrf.mxu0
        %v2307 = vadd.f32 0.0, %v2306
        %v2308 = vpop.f32.mrf.mxu0
        %v2309 = vadd.f32 0.0, %v2308
        %v2310 = vpop.f32.mrf.mxu0
        %v2311 = vadd.f32 0.0, %v2310
        %v2312 = vpop.f32.mrf.mxu0
        %v2313 = vadd.f32 0.0, %v2312
        %2314 = vmatprep.mubr.bf16.mxu0 0
        %2315 = vmatmul.mubr.bf16.gmra.mxu0 %v2109
        %v2316 = vpop.f32.mrf.mxu0
        %v2317 = vadd.f32 0.0, %v2316
        %v2318 = vpop.f32.mrf.mxu0
        %v2319 = vadd.f32 0.0, %v2318
        %v2320 = vpop.f32.mrf.mxu0
        %v2321 = vadd.f32 0.0, %v2320
        %v2322 = vpop.f32.mrf.mxu0
        %v2323 = vadd.f32 0.0, %v2322
        %2324 = vmatprep.mubr.bf16.mxu0 0
        %2325 = vmatmul.mubr.bf16.gmra.mxu0 %v2110
        %v2326 = vpop.f32.mrf.mxu0
        %v2327 = vadd.f32 0.0, %v2326
        %v2328 = vpop.f32.mrf.mxu0
        %v2329 = vadd.f32 0.0, %v2328
        %v2330 = vpop.f32.mrf.mxu0
        %v2331 = vadd.f32 0.0, %v2330
        %v2332 = vpop.f32.mrf.mxu0
        %v2333 = vadd.f32 0.0, %v2332
        %2334 = vmatprep.mubr.bf16.mxu0 0
        %2335 = vmatmul.mubr.bf16.gmra.mxu0 %v2111
        %v2336 = vpop.f32.mrf.mxu0
        %v2337 = vadd.f32 0.0, %v2336
        %v2338 = vpop.f32.mrf.mxu0
        %v2339 = vadd.f32 0.0, %v2338
        %v2340 = vpop.f32.mrf.mxu0
        %v2341 = vadd.f32 0.0, %v2340
        %v2342 = vpop.f32.mrf.mxu0
        %v2343 = vadd.f32 0.0, %v2342
        %2344 = vmatprep.mubr.bf16.mxu0 0
        %2345 = vmatmul.mubr.bf16.gmra.mxu0 %v2112
        %v2346 = vpop.f32.mrf.mxu0
        %v2347 = vadd.f32 0.0, %v2346
        %v2348 = vpop.f32.mrf.mxu0
        %v2349 = vadd.f32 0.0, %v2348
        %v2350 = vpop.f32.mrf.mxu0
        %v2351 = vadd.f32 0.0, %v2350
        %v2352 = vpop.f32.mrf.mxu0
        %v2353 = vadd.f32 0.0, %v2352
        %2354 = vmatprep.mubr.bf16.mxu0 0
        %2355 = vmatmul.mubr.bf16.gmra.mxu0 %v2113
        %v2356 = vpop.f32.mrf.mxu0
        %v2357 = vadd.f32 0.0, %v2356
        %v2358 = vpop.f32.mrf.mxu0
        %v2359 = vadd.f32 0.0, %v2358
        %v2360 = vpop.f32.mrf.mxu0
        %v2361 = vadd.f32 0.0, %v2360
        %v2362 = vpop.f32.mrf.mxu0
        %v2363 = vadd.f32 0.0, %v2362
        %2364 = vmatprep.mubr.bf16.mxu0 0
        %2365 = vmatmul.mubr.bf16.gmra.mxu0 %v2114
        %v2366 = vpop.f32.mrf.mxu0
        %v2367 = vadd.f32 0.0, %v2366
        %v2368 = vpop.f32.mrf.mxu0
        %v2369 = vadd.f32 0.0, %v2368
        %v2370 = vpop.f32.mrf.mxu0
        %v2371 = vadd.f32 0.0, %v2370
        %v2372 = vpop.f32.mrf.mxu0
        %v2373 = vadd.f32 0.0, %v2372
        %2374 = vmatprep.mubr.bf16.mxu0 0
        %2375 = vmatmul.mubr.bf16.gmra.mxu0 %v2115
        %v2376 = vpop.f32.mrf.mxu0
        %v2377 = vadd.f32 0.0, %v2376
        %v2378 = vpop.f32.mrf.mxu0
        %v2379 = vadd.f32 0.0, %v2378
        %v2380 = vpop.f32.mrf.mxu0
        %v2381 = vadd.f32 0.0, %v2380
        %v2382 = vpop.f32.mrf.mxu0
        %v2383 = vadd.f32 0.0, %v2382
        %2384 = vmatprep.mubr.bf16.mxu0 0
        %2385 = vmatmul.mubr.bf16.gmra.mxu0 %v2116
        %v2386 = vpop.f32.mrf.mxu0
        %v2387 = vadd.f32 0.0, %v2386
        %v2388 = vpop.f32.mrf.mxu0
        %v2389 = vadd.f32 0.0, %v2388
        %v2390 = vpop.f32.mrf.mxu0
        %v2391 = vadd.f32 0.0, %v2390
        %v2392 = vpop.f32.mrf.mxu0
        %v2393 = vadd.f32 0.0, %v2392
        %2394 = vmatprep.mubr.bf16.mxu0 0
        %2395 = vmatmul.mubr.bf16.gmra.mxu0 %v2117
        %v2396 = vpop.f32.mrf.mxu0
        %v2397 = vadd.f32 0.0, %v2396
        %v2398 = vpop.f32.mrf.mxu0
        %v2399 = vadd.f32 0.0, %v2398
        %v2400 = vpop.f32.mrf.mxu0
        %v2401 = vadd.f32 0.0, %v2400
        %v2402 = vpop.f32.mrf.mxu0
        %v2403 = vadd.f32 0.0, %v2402
        %2404 = vmatprep.mubr.bf16.mxu0 0
        %2405 = vmatmul.mubr.bf16.gmra.mxu0 %v2118
        %v2406 = vpop.f32.mrf.mxu0
        %v2407 = vadd.f32 0.0, %v2406
        %v2408 = vpop.f32.mrf.mxu0
        %v2409 = vadd.f32 0.0, %v2408
        %v2410 = vpop.f32.mrf.mxu0
        %v2411 = vadd.f32 0.0, %v2410
        %v2412 = vpop.f32.mrf.mxu0
        %v2413 = vadd.f32 0.0, %v2412
        %2414 = vmatprep.mubr.bf16.mxu0 0
        %2415 = vmatmul.mubr.bf16.gmra.mxu0 %v2119
        %v2416 = vpop.f32.mrf.mxu0
        %v2417 = vadd.f32 0.0, %v2416
        %v2418 = vpop.f32.mrf.mxu0
        %v2419 = vadd.f32 0.0, %v2418
        %v2420 = vpop.f32.mrf.mxu0
        %v2421 = vadd.f32 0.0, %v2420
        %v2422 = vpop.f32.mrf.mxu0
        %v2423 = vadd.f32 0.0, %v2422
        %2424 = vdwg.mxu0
        %v2425 = vld [vmem:[#allocation5] sm:$0xff]
        %v2426 = vld [vmem:[#allocation5 + $0x8] sm:$0xff]
        %v2427 = vld [vmem:[#allocation5 + $0x10] sm:$0xff]
        %v2428 = vld [vmem:[#allocation5 + $0x18] sm:$0xff]
        %v2429 = vld [vmem:[#allocation5 + $0x20] sm:$0xff]
        %v2430 = vld [vmem:[#allocation5 + $0x28] sm:$0xff]
        %v2431 = vld [vmem:[#allocation5 + $0x30] sm:$0xff]
        %v2432 = vld [vmem:[#allocation5 + $0x38] sm:$0xff]
        %v2433 = vld [vmem:[#allocation5 + $0x40] sm:$0xff]
        %v2434 = vld [vmem:[#allocation5 + $0x48] sm:$0xff]
        %v2435 = vld [vmem:[#allocation5 + $0x50] sm:$0xff]
        %v2436 = vld [vmem:[#allocation5 + $0x58] sm:$0xff]
        %v2437 = vld [vmem:[#allocation5 + $0x60] sm:$0xff]
        %v2438 = vld [vmem:[#allocation5 + $0x68] sm:$0xff]
        %v2439 = vld [vmem:[#allocation5 + $0x70] sm:$0xff]
        %v2440 = vld [vmem:[#allocation5 + $0x78] sm:$0xff]
        %v2441 = vld [vmem:[#allocation5 + $0x80] sm:$0xff]
        %v2442 = vld [vmem:[#allocation5 + $0x88] sm:$0xff]
        %v2443 = vld [vmem:[#allocation5 + $0x90] sm:$0xff]
        %v2444 = vld [vmem:[#allocation5 + $0x98] sm:$0xff]
        %v2445 = vld [vmem:[#allocation5 + $0xa0] sm:$0xff]
        %v2446 = vld [vmem:[#allocation5 + $0xa8] sm:$0xff]
        %v2447 = vld [vmem:[#allocation5 + $0xb0] sm:$0xff]
        %v2448 = vld [vmem:[#allocation5 + $0xb8] sm:$0xff]
        %v2449 = vld [vmem:[#allocation5 + $0xc0] sm:$0xff]
        %v2450 = vld [vmem:[#allocation5 + $0xc8] sm:$0xff]
        %v2451 = vld [vmem:[#allocation5 + $0xd0] sm:$0xff]
        %v2452 = vld [vmem:[#allocation5 + $0xd8] sm:$0xff]
        %v2453 = vld [vmem:[#allocation5 + $0xe0] sm:$0xff]
        %v2454 = vld [vmem:[#allocation5 + $0xe8] sm:$0xff]
        %v2455 = vld [vmem:[#allocation5 + $0xf0] sm:$0xff]
        %v2456 = vld [vmem:[#allocation5 + $0xf8] sm:$0xff]
        %v2457 = vmax.f32 %v2267, %v2269
        %2458 = vmax.xlane.f32.xlu0 %v2457
        %v2459 = vpop.xlane.xlu0 %2458
        %v2460 = vmax.f32 %v2271, %v2273
        %2461 = vmax.xlane.f32.xlu0 %v2460
        %v2462 = vpop.xlane.xlu0 %2461
        %v2463 = vmax.f32 %v2277, %v2279
        %2464 = vmax.xlane.f32.xlu0 %v2463
        %v2465 = vpop.xlane.xlu0 %2464
        %v2466 = vmax.f32 %v2281, %v2283
        %2467 = vmax.xlane.f32.xlu0 %v2466
        %v2468 = vpop.xlane.xlu0 %2467
        %v2469 = vmax.f32 %v2287, %v2289
        %2470 = vmax.xlane.f32.xlu0 %v2469
        %v2471 = vpop.xlane.xlu0 %2470
        %v2472 = vmax.f32 %v2291, %v2293
        %2473 = vmax.xlane.f32.xlu0 %v2472
        %v2474 = vpop.xlane.xlu0 %2473
        %v2475 = vmax.f32 %v2297, %v2299
        %2476 = vmax.xlane.f32.xlu0 %v2475
        %v2477 = vpop.xlane.xlu0 %2476
        %v2478 = vmax.f32 %v2301, %v2303
        %2479 = vmax.xlane.f32.xlu0 %v2478
        %v2480 = vpop.xlane.xlu0 %2479
        %v2481 = vmax.f32 %v2307, %v2309
        %2482 = vmax.xlane.f32.xlu0 %v2481
        %v2483 = vpop.xlane.xlu0 %2482
        %v2484 = vmax.f32 %v2311, %v2313
        %2485 = vmax.xlane.f32.xlu0 %v2484
        %v2486 = vpop.xlane.xlu0 %2485
        %v2487 = vmax.f32 %v2317, %v2319
        %2488 = vmax.xlane.f32.xlu0 %v2487
        %v2489 = vpop.xlane.xlu0 %2488
        %v2490 = vmax.f32 %v2321, %v2323
        %2491 = vmax.xlane.f32.xlu0 %v2490
        %v2492 = vpop.xlane.xlu0 %2491
        %v2493 = vmax.f32 %v2327, %v2329
        %2494 = vmax.xlane.f32.xlu0 %v2493
        %v2495 = vpop.xlane.xlu0 %2494
        %v2496 = vmax.f32 %v2331, %v2333
        %2497 = vmax.xlane.f32.xlu0 %v2496
        %v2498 = vpop.xlane.xlu0 %2497
        %v2499 = vmax.f32 %v2337, %v2339
        %2500 = vmax.xlane.f32.xlu0 %v2499
        %v2501 = vpop.xlane.xlu0 %2500
        %v2502 = vmax.f32 %v2341, %v2343
        %2503 = vmax.xlane.f32.xlu0 %v2502
        %v2504 = vpop.xlane.xlu0 %2503
        %v2505 = vmax.f32 %v2347, %v2349
        %2506 = vmax.xlane.f32.xlu0 %v2505
        %v2507 = vpop.xlane.xlu0 %2506
        %v2508 = vmax.f32 %v2351, %v2353
        %2509 = vmax.xlane.f32.xlu0 %v2508
        %v2510 = vpop.xlane.xlu0 %2509
        %v2511 = vmax.f32 %v2357, %v2359
        %2512 = vmax.xlane.f32.xlu0 %v2511
        %v2513 = vpop.xlane.xlu0 %2512
        %v2514 = vmax.f32 %v2361, %v2363
        %2515 = vmax.xlane.f32.xlu0 %v2514
        %v2516 = vpop.xlane.xlu0 %2515
        %v2517 = vmax.f32 %v2367, %v2369
        %2518 = vmax.xlane.f32.xlu0 %v2517
        %v2519 = vpop.xlane.xlu0 %2518
        %v2520 = vmax.f32 %v2371, %v2373
        %2521 = vmax.xlane.f32.xlu0 %v2520
        %v2522 = vpop.xlane.xlu0 %2521
        %v2523 = vmax.f32 %v2377, %v2379
        %2524 = vmax.xlane.f32.xlu0 %v2523
        %v2525 = vpop.xlane.xlu0 %2524
        %v2526 = vmax.f32 %v2381, %v2383
        %2527 = vmax.xlane.f32.xlu0 %v2526
        %v2528 = vpop.xlane.xlu0 %2527
        %v2529 = vmax.f32 %v2387, %v2389
        %2530 = vmax.xlane.f32.xlu0 %v2529
        %v2531 = vpop.xlane.xlu0 %2530
        %v2532 = vmax.f32 %v2391, %v2393
        %2533 = vmax.xlane.f32.xlu0 %v2532
        %v2534 = vpop.xlane.xlu0 %2533
        %v2535 = vmax.f32 %v2397, %v2399
        %2536 = vmax.xlane.f32.xlu0 %v2535
        %v2537 = vpop.xlane.xlu0 %2536
        %v2538 = vmax.f32 %v2401, %v2403
        %2539 = vmax.xlane.f32.xlu0 %v2538
        %v2540 = vpop.xlane.xlu0 %2539
        %v2541 = vmax.f32 %v2407, %v2409
        %2542 = vmax.xlane.f32.xlu0 %v2541
        %v2543 = vpop.xlane.xlu0 %2542
        %v2544 = vmax.f32 %v2411, %v2413
        %2545 = vmax.xlane.f32.xlu0 %v2544
        %v2546 = vpop.xlane.xlu0 %2545
        %v2547 = vmax.f32 %v2417, %v2419
        %2548 = vmax.xlane.f32.xlu0 %v2547
        %v2549 = vpop.xlane.xlu0 %2548
        %v2550 = vmax.f32 %v2421, %v2423
        %2551 = vmax.xlane.f32.xlu0 %v2550
        %v2552 = vpop.xlane.xlu0 %2551
        %v2553 = vmax.f32 %v2425, %v2459
        %v2554 = vmax.f32 %v2426, %v2462
        %v2555 = vmax.f32 %v2427, %v2465
        %v2556 = vmax.f32 %v2428, %v2468
        %v2557 = vmax.f32 %v2429, %v2471
        %v2558 = vmax.f32 %v2430, %v2474
        %v2559 = vmax.f32 %v2431, %v2477
        %v2560 = vmax.f32 %v2432, %v2480
        %v2561 = vmax.f32 %v2433, %v2483
        %v2562 = vmax.f32 %v2434, %v2486
        %v2563 = vmax.f32 %v2435, %v2489
        %v2564 = vmax.f32 %v2436, %v2492
        %v2565 = vmax.f32 %v2437, %v2495
        %v2566 = vmax.f32 %v2438, %v2498
        %v2567 = vmax.f32 %v2439, %v2501
        %v2568 = vmax.f32 %v2440, %v2504
        %v2569 = vmax.f32 %v2441, %v2507
        %v2570 = vmax.f32 %v2442, %v2510
        %v2571 = vmax.f32 %v2443, %v2513
        %v2572 = vmax.f32 %v2444, %v2516
        %v2573 = vmax.f32 %v2445, %v2519
        %v2574 = vmax.f32 %v2446, %v2522
        %v2575 = vmax.f32 %v2447, %v2525
        %v2576 = vmax.f32 %v2448, %v2528
        %v2577 = vmax.f32 %v2449, %v2531
        %v2578 = vmax.f32 %v2450, %v2534
        %v2579 = vmax.f32 %v2451, %v2537
        %v2580 = vmax.f32 %v2452, %v2540
        %v2581 = vmax.f32 %v2453, %v2543
        %v2582 = vmax.f32 %v2454, %v2546
        %v2583 = vmax.f32 %v2455, %v2549
        %v2584 = vmax.f32 %v2456, %v2552
        %v2585 = vsub.f32 %v2425, %v2553
        %v2586 = vsub.f32 %v2426, %v2554
        %v2587 = vsub.f32 %v2427, %v2555
        %v2588 = vsub.f32 %v2428, %v2556
        %v2589 = vsub.f32 %v2429, %v2557
        %v2590 = vsub.f32 %v2430, %v2558
        %v2591 = vsub.f32 %v2431, %v2559
        %v2592 = vsub.f32 %v2432, %v2560
        %v2593 = vsub.f32 %v2433, %v2561
        %v2594 = vsub.f32 %v2434, %v2562
        %v2595 = vsub.f32 %v2435, %v2563
        %v2596 = vsub.f32 %v2436, %v2564
        %v2597 = vsub.f32 %v2437, %v2565
        %v2598 = vsub.f32 %v2438, %v2566
        %v2599 = vsub.f32 %v2439, %v2567
        %v2600 = vsub.f32 %v2440, %v2568
        %v2601 = vsub.f32 %v2441, %v2569
        %v2602 = vsub.f32 %v2442, %v2570
        %v2603 = vsub.f32 %v2443, %v2571
        %v2604 = vsub.f32 %v2444, %v2572
        %v2605 = vsub.f32 %v2445, %v2573
        %v2606 = vsub.f32 %v2446, %v2574
        %v2607 = vsub.f32 %v2447, %v2575
        %v2608 = vsub.f32 %v2448, %v2576
        %v2609 = vsub.f32 %v2449, %v2577
        %v2610 = vsub.f32 %v2450, %v2578
        %v2611 = vsub.f32 %v2451, %v2579
        %v2612 = vsub.f32 %v2452, %v2580
        %v2613 = vsub.f32 %v2453, %v2581
        %v2614 = vsub.f32 %v2454, %v2582
        %v2615 = vsub.f32 %v2455, %v2583
        %v2616 = vsub.f32 %v2456, %v2584
        %v2617 = vmul.f32 %v2585, 1.442695
        %v2618 = vpow.pop %v2617
        %v2619 = vmul.f32 %v2586, 1.442695
        %v2620 = vpow.pop %v2619
        %v2621 = vmul.f32 %v2587, 1.442695
        %v2622 = vpow.pop %v2621
        %v2623 = vmul.f32 %v2588, 1.442695
        %v2624 = vpow.pop %v2623
        %v2625 = vmul.f32 %v2589, 1.442695
        %v2626 = vpow.pop %v2625
        %v2627 = vmul.f32 %v2590, 1.442695
        %v2628 = vpow.pop %v2627
        %v2629 = vmul.f32 %v2591, 1.442695
        %v2630 = vpow.pop %v2629
        %v2631 = vmul.f32 %v2592, 1.442695
        %v2632 = vpow.pop %v2631
        %v2633 = vmul.f32 %v2593, 1.442695
        %v2634 = vpow.pop %v2633
        %v2635 = vmul.f32 %v2594, 1.442695
        %v2636 = vpow.pop %v2635
        %v2637 = vmul.f32 %v2595, 1.442695
        %v2638 = vpow.pop %v2637
        %v2639 = vmul.f32 %v2596, 1.442695
        %v2640 = vpow.pop %v2639
        %v2641 = vmul.f32 %v2597, 1.442695
        %v2642 = vpow.pop %v2641
        %v2643 = vmul.f32 %v2598, 1.442695
        %v2644 = vpow.pop %v2643
        %v2645 = vmul.f32 %v2599, 1.442695
        %v2646 = vpow.pop %v2645
        %v2647 = vmul.f32 %v2600, 1.442695
        %v2648 = vpow.pop %v2647
        %v2649 = vmul.f32 %v2601, 1.442695
        %v2650 = vpow.pop %v2649
        %v2651 = vmul.f32 %v2602, 1.442695
        %v2652 = vpow.pop %v2651
        %v2653 = vmul.f32 %v2603, 1.442695
        %v2654 = vpow.pop %v2653
        %v2655 = vmul.f32 %v2604, 1.442695
        %v2656 = vpow.pop %v2655
        %v2657 = vmul.f32 %v2605, 1.442695
        %v2658 = vpow.pop %v2657
        %v2659 = vmul.f32 %v2606, 1.442695
        %v2660 = vpow.pop %v2659
        %v2661 = vmul.f32 %v2607, 1.442695
        %v2662 = vpow.pop %v2661
        %v2663 = vmul.f32 %v2608, 1.442695
        %v2664 = vpow.pop %v2663
        %v2665 = vmul.f32 %v2609, 1.442695
        %v2666 = vpow.pop %v2665
        %v2667 = vmul.f32 %v2610, 1.442695
        %v2668 = vpow.pop %v2667
        %v2669 = vmul.f32 %v2611, 1.442695
        %v2670 = vpow.pop %v2669
        %v2671 = vmul.f32 %v2612, 1.442695
        %v2672 = vpow.pop %v2671
        %v2673 = vmul.f32 %v2613, 1.442695
        %v2674 = vpow.pop %v2673
        %v2675 = vmul.f32 %v2614, 1.442695
        %v2676 = vpow.pop %v2675
        %v2677 = vmul.f32 %v2615, 1.442695
        %v2678 = vpow.pop %v2677
        %v2679 = vmul.f32 %v2616, 1.442695
        %v2680 = vpow.pop %v2679
        %2682 = vset.pattern.permute.xlu0 0
        %2683 = vperm.xlu0 %2682, %v2553
        %v2684 = vpop.permute.xlu0 %2683
        %2687 = vset.pattern.permute.xlu0 0
        %2688 = vperm.xlu0 %2687, %v2554
        %v2689 = vpop.permute.xlu0 %2688
        %2692 = vset.pattern.permute.xlu0 0
        %2693 = vperm.xlu0 %2692, %v2555
        %v2694 = vpop.permute.xlu0 %2693
        %2697 = vset.pattern.permute.xlu0 0
        %2698 = vperm.xlu0 %2697, %v2556
        %v2699 = vpop.permute.xlu0 %2698
        %2702 = vset.pattern.permute.xlu0 0
        %2703 = vperm.xlu0 %2702, %v2557
        %v2704 = vpop.permute.xlu0 %2703
        %2707 = vset.pattern.permute.xlu0 0
        %2708 = vperm.xlu0 %2707, %v2558
        %v2709 = vpop.permute.xlu0 %2708
        %2712 = vset.pattern.permute.xlu0 0
        %2713 = vperm.xlu0 %2712, %v2559
        %v2714 = vpop.permute.xlu0 %2713
        %2717 = vset.pattern.permute.xlu0 0
        %2718 = vperm.xlu0 %2717, %v2560
        %v2719 = vpop.permute.xlu0 %2718
        %2722 = vset.pattern.permute.xlu0 0
        %2723 = vperm.xlu0 %2722, %v2561
        %v2724 = vpop.permute.xlu0 %2723
        %2727 = vset.pattern.permute.xlu0 0
        %2728 = vperm.xlu0 %2727, %v2562
        %v2729 = vpop.permute.xlu0 %2728
        %2732 = vset.pattern.permute.xlu0 0
        %2733 = vperm.xlu0 %2732, %v2563
        %v2734 = vpop.permute.xlu0 %2733
        %2737 = vset.pattern.permute.xlu0 0
        %2738 = vperm.xlu0 %2737, %v2564
        %v2739 = vpop.permute.xlu0 %2738
        %2742 = vset.pattern.permute.xlu0 0
        %2743 = vperm.xlu0 %2742, %v2565
        %v2744 = vpop.permute.xlu0 %2743
        %2747 = vset.pattern.permute.xlu0 0
        %2748 = vperm.xlu0 %2747, %v2566
        %v2749 = vpop.permute.xlu0 %2748
        %2752 = vset.pattern.permute.xlu0 0
        %2753 = vperm.xlu0 %2752, %v2567
        %v2754 = vpop.permute.xlu0 %2753
        %2757 = vset.pattern.permute.xlu0 0
        %2758 = vperm.xlu0 %2757, %v2568
        %v2759 = vpop.permute.xlu0 %2758
        %2762 = vset.pattern.permute.xlu0 0
        %2763 = vperm.xlu0 %2762, %v2569
        %v2764 = vpop.permute.xlu0 %2763
        %2767 = vset.pattern.permute.xlu0 0
        %2768 = vperm.xlu0 %2767, %v2570
        %v2769 = vpop.permute.xlu0 %2768
        %2772 = vset.pattern.permute.xlu0 0
        %2773 = vperm.xlu0 %2772, %v2571
        %v2774 = vpop.permute.xlu0 %2773
        %2777 = vset.pattern.permute.xlu0 0
        %2778 = vperm.xlu0 %2777, %v2572
        %v2779 = vpop.permute.xlu0 %2778
        %2782 = vset.pattern.permute.xlu0 0
        %2783 = vperm.xlu0 %2782, %v2573
        %v2784 = vpop.permute.xlu0 %2783
        %2787 = vset.pattern.permute.xlu0 0
        %2788 = vperm.xlu0 %2787, %v2574
        %v2789 = vpop.permute.xlu0 %2788
        %2792 = vset.pattern.permute.xlu0 0
        %2793 = vperm.xlu0 %2792, %v2575
        %v2794 = vpop.permute.xlu0 %2793
        %2797 = vset.pattern.permute.xlu0 0
        %2798 = vperm.xlu0 %2797, %v2576
        %v2799 = vpop.permute.xlu0 %2798
        %2802 = vset.pattern.permute.xlu0 0
        %2803 = vperm.xlu0 %2802, %v2577
        %v2804 = vpop.permute.xlu0 %2803
        %2807 = vset.pattern.permute.xlu0 0
        %2808 = vperm.xlu0 %2807, %v2578
        %v2809 = vpop.permute.xlu0 %2808
        %2812 = vset.pattern.permute.xlu0 0
        %2813 = vperm.xlu0 %2812, %v2579
        %v2814 = vpop.permute.xlu0 %2813
        %2817 = vset.pattern.permute.xlu0 0
        %2818 = vperm.xlu0 %2817, %v2580
        %v2819 = vpop.permute.xlu0 %2818
        %2822 = vset.pattern.permute.xlu0 0
        %2823 = vperm.xlu0 %2822, %v2581
        %v2824 = vpop.permute.xlu0 %2823
        %2827 = vset.pattern.permute.xlu0 0
        %2828 = vperm.xlu0 %2827, %v2582
        %v2829 = vpop.permute.xlu0 %2828
        %2832 = vset.pattern.permute.xlu0 0
        %2833 = vperm.xlu0 %2832, %v2583
        %v2834 = vpop.permute.xlu0 %2833
        %2837 = vset.pattern.permute.xlu0 0
        %2838 = vperm.xlu0 %2837, %v2584
        %v2839 = vpop.permute.xlu0 %2838
        %v2841 = vsub.f32 %v2267, %v2684
        %v2842 = vsub.f32 %v2269, %v2684
        %v2843 = vsub.f32 %v2271, %v2689
        %v2844 = vsub.f32 %v2273, %v2689
        %v2845 = vsub.f32 %v2277, %v2694
        %v2846 = vsub.f32 %v2279, %v2694
        %v2847 = vsub.f32 %v2281, %v2699
        %v2848 = vsub.f32 %v2283, %v2699
        %v2849 = vsub.f32 %v2287, %v2704
        %v2850 = vsub.f32 %v2289, %v2704
        %v2851 = vsub.f32 %v2291, %v2709
        %v2852 = vsub.f32 %v2293, %v2709
        %v2853 = vsub.f32 %v2297, %v2714
        %v2854 = vsub.f32 %v2299, %v2714
        %v2855 = vsub.f32 %v2301, %v2719
        %v2856 = vsub.f32 %v2303, %v2719
        %v2857 = vsub.f32 %v2307, %v2724
        %v2858 = vsub.f32 %v2309, %v2724
        %v2859 = vsub.f32 %v2311, %v2729
        %v2860 = vsub.f32 %v2313, %v2729
        %v2861 = vsub.f32 %v2317, %v2734
        %v2862 = vsub.f32 %v2319, %v2734
        %v2863 = vsub.f32 %v2321, %v2739
        %v2864 = vsub.f32 %v2323, %v2739
        %v2865 = vsub.f32 %v2327, %v2744
        %v2866 = vsub.f32 %v2329, %v2744
        %v2867 = vsub.f32 %v2331, %v2749
        %v2868 = vsub.f32 %v2333, %v2749
        %v2869 = vsub.f32 %v2337, %v2754
        %v2870 = vsub.f32 %v2339, %v2754
        %v2871 = vsub.f32 %v2341, %v2759
        %v2872 = vsub.f32 %v2343, %v2759
        %v2873 = vsub.f32 %v2347, %v2764
        %v2874 = vsub.f32 %v2349, %v2764
        %v2875 = vsub.f32 %v2351, %v2769
        %v2876 = vsub.f32 %v2353, %v2769
        %v2877 = vsub.f32 %v2357, %v2774
        %v2878 = vsub.f32 %v2359, %v2774
        %v2879 = vsub.f32 %v2361, %v2779
        %v2880 = vsub.f32 %v2363, %v2779
        %v2881 = vsub.f32 %v2367, %v2784
        %v2882 = vsub.f32 %v2369, %v2784
        %v2883 = vsub.f32 %v2371, %v2789
        %v2884 = vsub.f32 %v2373, %v2789
        %v2885 = vsub.f32 %v2377, %v2794
        %v2886 = vsub.f32 %v2379, %v2794
        %v2887 = vsub.f32 %v2381, %v2799
        %v2888 = vsub.f32 %v2383, %v2799
        %v2889 = vsub.f32 %v2387, %v2804
        %v2890 = vsub.f32 %v2389, %v2804
        %v2891 = vsub.f32 %v2391, %v2809
        %v2892 = vsub.f32 %v2393, %v2809
        %v2893 = vsub.f32 %v2397, %v2814
        %v2894 = vsub.f32 %v2399, %v2814
        %v2895 = vsub.f32 %v2401, %v2819
        %v2896 = vsub.f32 %v2403, %v2819
        %v2897 = vsub.f32 %v2407, %v2824
        %v2898 = vsub.f32 %v2409, %v2824
        %v2899 = vsub.f32 %v2411, %v2829
        %v2900 = vsub.f32 %v2413, %v2829
        %v2901 = vsub.f32 %v2417, %v2834
        %v2902 = vsub.f32 %v2419, %v2834
        %v2903 = vsub.f32 %v2421, %v2839
        %v2904 = vsub.f32 %v2423, %v2839
        %v2905 = vmul.f32 %v2841, 1.442695
        %v2906 = vpow.pop %v2905
        %v2907 = vmul.f32 %v2842, 1.442695
        %v2908 = vpow.pop %v2907
        %v2909 = vmul.f32 %v2843, 1.442695
        %v2910 = vpow.pop %v2909
        %v2911 = vmul.f32 %v2844, 1.442695
        %v2912 = vpow.pop %v2911
        %v2913 = vmul.f32 %v2845, 1.442695
        %v2914 = vpow.pop %v2913
        %v2915 = vmul.f32 %v2846, 1.442695
        %v2916 = vpow.pop %v2915
        %v2917 = vmul.f32 %v2847, 1.442695
        %v2918 = vpow.pop %v2917
        %v2919 = vmul.f32 %v2848, 1.442695
        %v2920 = vpow.pop %v2919
        %v2921 = vmul.f32 %v2849, 1.442695
        %v2922 = vpow.pop %v2921
        %v2923 = vmul.f32 %v2850, 1.442695
        %v2924 = vpow.pop %v2923
        %v2925 = vmul.f32 %v2851, 1.442695
        %v2926 = vpow.pop %v2925
        %v2927 = vmul.f32 %v2852, 1.442695
        %v2928 = vpow.pop %v2927
        %v2929 = vmul.f32 %v2853, 1.442695
        %v2930 = vpow.pop %v2929
        %v2931 = vmul.f32 %v2854, 1.442695
        %v2932 = vpow.pop %v2931
        %v2933 = vmul.f32 %v2855, 1.442695
        %v2934 = vpow.pop %v2933
        %v2935 = vmul.f32 %v2856, 1.442695
        %v2936 = vpow.pop %v2935
        %v2937 = vmul.f32 %v2857, 1.442695
        %v2938 = vpow.pop %v2937
        %v2939 = vmul.f32 %v2858, 1.442695
        %v2940 = vpow.pop %v2939
        %v2941 = vmul.f32 %v2859, 1.442695
        %v2942 = vpow.pop %v2941
        %v2943 = vmul.f32 %v2860, 1.442695
        %v2944 = vpow.pop %v2943
        %v2945 = vmul.f32 %v2861, 1.442695
        %v2946 = vpow.pop %v2945
        %v2947 = vmul.f32 %v2862, 1.442695
        %v2948 = vpow.pop %v2947
        %v2949 = vmul.f32 %v2863, 1.442695
        %v2950 = vpow.pop %v2949
        %v2951 = vmul.f32 %v2864, 1.442695
        %v2952 = vpow.pop %v2951
        %v2953 = vmul.f32 %v2865, 1.442695
        %v2954 = vpow.pop %v2953
        %v2955 = vmul.f32 %v2866, 1.442695
        %v2956 = vpow.pop %v2955
        %v2957 = vmul.f32 %v2867, 1.442695
        %v2958 = vpow.pop %v2957
        %v2959 = vmul.f32 %v2868, 1.442695
        %v2960 = vpow.pop %v2959
        %v2961 = vmul.f32 %v2869, 1.442695
        %v2962 = vpow.pop %v2961
        %v2963 = vmul.f32 %v2870, 1.442695
        %v2964 = vpow.pop %v2963
        %v2965 = vmul.f32 %v2871, 1.442695
        %v2966 = vpow.pop %v2965
        %v2967 = vmul.f32 %v2872, 1.442695
        %v2968 = vpow.pop %v2967
        %v2969 = vmul.f32 %v2873, 1.442695
        %v2970 = vpow.pop %v2969
        %v2971 = vmul.f32 %v2874, 1.442695
        %v2972 = vpow.pop %v2971
        %v2973 = vmul.f32 %v2875, 1.442695
        %v2974 = vpow.pop %v2973
        %v2975 = vmul.f32 %v2876, 1.442695
        %v2976 = vpow.pop %v2975
        %v2977 = vmul.f32 %v2877, 1.442695
        %v2978 = vpow.pop %v2977
        %v2979 = vmul.f32 %v2878, 1.442695
        %v2980 = vpow.pop %v2979
        %v2981 = vmul.f32 %v2879, 1.442695
        %v2982 = vpow.pop %v2981
        %v2983 = vmul.f32 %v2880, 1.442695
        %v2984 = vpow.pop %v2983
        %v2985 = vmul.f32 %v2881, 1.442695
        %v2986 = vpow.pop %v2985
        %v2987 = vmul.f32 %v2882, 1.442695
        %v2988 = vpow.pop %v2987
        %v2989 = vmul.f32 %v2883, 1.442695
        %v2990 = vpow.pop %v2989
        %v2991 = vmul.f32 %v2884, 1.442695
        %v2992 = vpow.pop %v2991
        %v2993 = vmul.f32 %v2885, 1.442695
        %v2994 = vpow.pop %v2993
        %v2995 = vmul.f32 %v2886, 1.442695
        %v2996 = vpow.pop %v2995
        %v2997 = vmul.f32 %v2887, 1.442695
        %v2998 = vpow.pop %v2997
        %v2999 = vmul.f32 %v2888, 1.442695
        %v3000 = vpow.pop %v2999
        %v3001 = vmul.f32 %v2889, 1.442695
        %v3002 = vpow.pop %v3001
        %v3003 = vmul.f32 %v2890, 1.442695
        %v3004 = vpow.pop %v3003
        %v3005 = vmul.f32 %v2891, 1.442695
        %v3006 = vpow.pop %v3005
        %v3007 = vmul.f32 %v2892, 1.442695
        %v3008 = vpow.pop %v3007
        %v3009 = vmul.f32 %v2893, 1.442695
        %v3010 = vpow.pop %v3009
        %v3011 = vmul.f32 %v2894, 1.442695
        %v3012 = vpow.pop %v3011
        %v3013 = vmul.f32 %v2895, 1.442695
        %v3014 = vpow.pop %v3013
        %v3015 = vmul.f32 %v2896, 1.442695
        %v3016 = vpow.pop %v3015
        %v3017 = vmul.f32 %v2897, 1.442695
        %v3018 = vpow.pop %v3017
        %v3019 = vmul.f32 %v2898, 1.442695
        %v3020 = vpow.pop %v3019
        %v3021 = vmul.f32 %v2899, 1.442695
        %v3022 = vpow.pop %v3021
        %v3023 = vmul.f32 %v2900, 1.442695
        %v3024 = vpow.pop %v3023
        %v3025 = vmul.f32 %v2901, 1.442695
        %v3026 = vpow.pop %v3025
        %v3027 = vmul.f32 %v2902, 1.442695
        %v3028 = vpow.pop %v3027
        %v3029 = vmul.f32 %v2903, 1.442695
        %v3030 = vpow.pop %v3029
        %v3031 = vmul.f32 %v2904, 1.442695
        %v3032 = vpow.pop %v3031
        %v3033 = vld [vmem:[#allocation6] sm:$0xff]
        %v3034 = vld [vmem:[#allocation6 + $0x8] sm:$0xff]
        %v3035 = vld [vmem:[#allocation6 + $0x10] sm:$0xff]
        %v3036 = vld [vmem:[#allocation6 + $0x18] sm:$0xff]
        %v3037 = vld [vmem:[#allocation6 + $0x20] sm:$0xff]
        %v3038 = vld [vmem:[#allocation6 + $0x28] sm:$0xff]
        %v3039 = vld [vmem:[#allocation6 + $0x30] sm:$0xff]
        %v3040 = vld [vmem:[#allocation6 + $0x38] sm:$0xff]
        %v3041 = vld [vmem:[#allocation6 + $0x40] sm:$0xff]
        %v3042 = vld [vmem:[#allocation6 + $0x48] sm:$0xff]
        %v3043 = vld [vmem:[#allocation6 + $0x50] sm:$0xff]
        %v3044 = vld [vmem:[#allocation6 + $0x58] sm:$0xff]
        %v3045 = vld [vmem:[#allocation6 + $0x60] sm:$0xff]
        %v3046 = vld [vmem:[#allocation6 + $0x68] sm:$0xff]
        %v3047 = vld [vmem:[#allocation6 + $0x70] sm:$0xff]
        %v3048 = vld [vmem:[#allocation6 + $0x78] sm:$0xff]
        %v3049 = vld [vmem:[#allocation6 + $0x80] sm:$0xff]
        %v3050 = vld [vmem:[#allocation6 + $0x88] sm:$0xff]
        %v3051 = vld [vmem:[#allocation6 + $0x90] sm:$0xff]
        %v3052 = vld [vmem:[#allocation6 + $0x98] sm:$0xff]
        %v3053 = vld [vmem:[#allocation6 + $0xa0] sm:$0xff]
        %v3054 = vld [vmem:[#allocation6 + $0xa8] sm:$0xff]
        %v3055 = vld [vmem:[#allocation6 + $0xb0] sm:$0xff]
        %v3056 = vld [vmem:[#allocation6 + $0xb8] sm:$0xff]
        %v3057 = vld [vmem:[#allocation6 + $0xc0] sm:$0xff]
        %v3058 = vld [vmem:[#allocation6 + $0xc8] sm:$0xff]
        %v3059 = vld [vmem:[#allocation6 + $0xd0] sm:$0xff]
        %v3060 = vld [vmem:[#allocation6 + $0xd8] sm:$0xff]
        %v3061 = vld [vmem:[#allocation6 + $0xe0] sm:$0xff]
        %v3062 = vld [vmem:[#allocation6 + $0xe8] sm:$0xff]
        %v3063 = vld [vmem:[#allocation6 + $0xf0] sm:$0xff]
        %v3064 = vld [vmem:[#allocation6 + $0xf8] sm:$0xff]
        %v3065 = vmul.f32 %v2618, %v3033
        %v3066 = vmul.f32 %v2620, %v3034
        %v3067 = vmul.f32 %v2622, %v3035
        %v3068 = vmul.f32 %v2624, %v3036
        %v3069 = vmul.f32 %v2626, %v3037
        %v3070 = vmul.f32 %v2628, %v3038
        %v3071 = vmul.f32 %v2630, %v3039
        %v3072 = vmul.f32 %v2632, %v3040
        %v3073 = vmul.f32 %v2634, %v3041
        %v3074 = vmul.f32 %v2636, %v3042
        %v3075 = vmul.f32 %v2638, %v3043
        %v3076 = vmul.f32 %v2640, %v3044
        %v3077 = vmul.f32 %v2642, %v3045
        %v3078 = vmul.f32 %v2644, %v3046
        %v3079 = vmul.f32 %v2646, %v3047
        %v3080 = vmul.f32 %v2648, %v3048
        %v3081 = vmul.f32 %v2650, %v3049
        %v3082 = vmul.f32 %v2652, %v3050
        %v3083 = vmul.f32 %v2654, %v3051
        %v3084 = vmul.f32 %v2656, %v3052
        %v3085 = vmul.f32 %v2658, %v3053
        %v3086 = vmul.f32 %v2660, %v3054
        %v3087 = vmul.f32 %v2662, %v3055
        %v3088 = vmul.f32 %v2664, %v3056
        %v3089 = vmul.f32 %v2666, %v3057
        %v3090 = vmul.f32 %v2668, %v3058
        %v3091 = vmul.f32 %v2670, %v3059
        %v3092 = vmul.f32 %v2672, %v3060
        %v3093 = vmul.f32 %v2674, %v3061
        %v3094 = vmul.f32 %v2676, %v3062
        %v3095 = vmul.f32 %v2678, %v3063
        %v3096 = vmul.f32 %v2680, %v3064
        %v3097 = vadd.f32 %v2906, %v2908
        %3098 = vadd.xlane.f32.xlu0 %v3097
        %v3099 = vpop.xlane.xlu0 %3098
        %v3100 = vadd.f32 %v2910, %v2912
        %3101 = vadd.xlane.f32.xlu0 %v3100
        %v3102 = vpop.xlane.xlu0 %3101
        %v3103 = vadd.f32 %v2914, %v2916
        %3104 = vadd.xlane.f32.xlu0 %v3103
        %v3105 = vpop.xlane.xlu0 %3104
        %v3106 = vadd.f32 %v2918, %v2920
        %3107 = vadd.xlane.f32.xlu0 %v3106
        %v3108 = vpop.xlane.xlu0 %3107
        %v3109 = vadd.f32 %v2922, %v2924
        %3110 = vadd.xlane.f32.xlu0 %v3109
        %v3111 = vpop.xlane.xlu0 %3110
        %v3112 = vadd.f32 %v2926, %v2928
        %3113 = vadd.xlane.f32.xlu0 %v3112
        %v3114 = vpop.xlane.xlu0 %3113
        %v3115 = vadd.f32 %v2930, %v2932
        %3116 = vadd.xlane.f32.xlu0 %v3115
        %v3117 = vpop.xlane.xlu0 %3116
        %v3118 = vadd.f32 %v2934, %v2936
        %3119 = vadd.xlane.f32.xlu0 %v3118
        %v3120 = vpop.xlane.xlu0 %3119
        %v3121 = vadd.f32 %v2938, %v2940
        %3122 = vadd.xlane.f32.xlu0 %v3121
        %v3123 = vpop.xlane.xlu0 %3122
        %v3124 = vadd.f32 %v2942, %v2944
        %3125 = vadd.xlane.f32.xlu0 %v3124
        %v3126 = vpop.xlane.xlu0 %3125
        %v3127 = vadd.f32 %v2946, %v2948
        %3128 = vadd.xlane.f32.xlu0 %v3127
        %v3129 = vpop.xlane.xlu0 %3128
        %v3130 = vadd.f32 %v2950, %v2952
        %3131 = vadd.xlane.f32.xlu0 %v3130
        %v3132 = vpop.xlane.xlu0 %3131
        %v3133 = vadd.f32 %v2954, %v2956
        %3134 = vadd.xlane.f32.xlu0 %v3133
        %v3135 = vpop.xlane.xlu0 %3134
        %v3136 = vadd.f32 %v2958, %v2960
        %3137 = vadd.xlane.f32.xlu0 %v3136
        %v3138 = vpop.xlane.xlu0 %3137
        %v3139 = vadd.f32 %v2962, %v2964
        %3140 = vadd.xlane.f32.xlu0 %v3139
        %v3141 = vpop.xlane.xlu0 %3140
        %v3142 = vadd.f32 %v2966, %v2968
        %3143 = vadd.xlane.f32.xlu0 %v3142
        %v3144 = vpop.xlane.xlu0 %3143
        %v3145 = vadd.f32 %v2970, %v2972
        %3146 = vadd.xlane.f32.xlu0 %v3145
        %v3147 = vpop.xlane.xlu0 %3146
        %v3148 = vadd.f32 %v2974, %v2976
        %3149 = vadd.xlane.f32.xlu0 %v3148
        %v3150 = vpop.xlane.xlu0 %3149
        %v3151 = vadd.f32 %v2978, %v2980
        %3152 = vadd.xlane.f32.xlu0 %v3151
        %v3153 = vpop.xlane.xlu0 %3152
        %v3154 = vadd.f32 %v2982, %v2984
        %3155 = vadd.xlane.f32.xlu0 %v3154
        %v3156 = vpop.xlane.xlu0 %3155
        %v3157 = vadd.f32 %v2986, %v2988
        %3158 = vadd.xlane.f32.xlu0 %v3157
        %v3159 = vpop.xlane.xlu0 %3158
        %v3160 = vadd.f32 %v2990, %v2992
        %3161 = vadd.xlane.f32.xlu0 %v3160
        %v3162 = vpop.xlane.xlu0 %3161
        %v3163 = vadd.f32 %v2994, %v2996
        %3164 = vadd.xlane.f32.xlu0 %v3163
        %v3165 = vpop.xlane.xlu0 %3164
        %v3166 = vadd.f32 %v2998, %v3000
        %3167 = vadd.xlane.f32.xlu0 %v3166
        %v3168 = vpop.xlane.xlu0 %3167
        %v3169 = vadd.f32 %v3002, %v3004
        %3170 = vadd.xlane.f32.xlu0 %v3169
        %v3171 = vpop.xlane.xlu0 %3170
        %v3172 = vadd.f32 %v3006, %v3008
        %3173 = vadd.xlane.f32.xlu0 %v3172
        %v3174 = vpop.xlane.xlu0 %3173
        %v3175 = vadd.f32 %v3010, %v3012
        %3176 = vadd.xlane.f32.xlu0 %v3175
        %v3177 = vpop.xlane.xlu0 %3176
        %v3178 = vadd.f32 %v3014, %v3016
        %3179 = vadd.xlane.f32.xlu0 %v3178
        %v3180 = vpop.xlane.xlu0 %3179
        %v3181 = vadd.f32 %v3018, %v3020
        %3182 = vadd.xlane.f32.xlu0 %v3181
        %v3183 = vpop.xlane.xlu0 %3182
        %v3184 = vadd.f32 %v3022, %v3024
        %3185 = vadd.xlane.f32.xlu0 %v3184
        %v3186 = vpop.xlane.xlu0 %3185
        %v3187 = vadd.f32 %v3026, %v3028
        %3188 = vadd.xlane.f32.xlu0 %v3187
        %v3189 = vpop.xlane.xlu0 %3188
        %v3190 = vadd.f32 %v3030, %v3032
        %3191 = vadd.xlane.f32.xlu0 %v3190
        %v3192 = vpop.xlane.xlu0 %3191
        %v3193 = vadd.f32 %v3065, %v3099
        %v3194 = vadd.f32 %v3066, %v3102
        %v3195 = vadd.f32 %v3067, %v3105
        %v3196 = vadd.f32 %v3068, %v3108
        %v3197 = vadd.f32 %v3069, %v3111
        %v3198 = vadd.f32 %v3070, %v3114
        %v3199 = vadd.f32 %v3071, %v3117
        %v3200 = vadd.f32 %v3072, %v3120
        %v3201 = vadd.f32 %v3073, %v3123
        %v3202 = vadd.f32 %v3074, %v3126
        %v3203 = vadd.f32 %v3075, %v3129
        %v3204 = vadd.f32 %v3076, %v3132
        %v3205 = vadd.f32 %v3077, %v3135
        %v3206 = vadd.f32 %v3078, %v3138
        %v3207 = vadd.f32 %v3079, %v3141
        %v3208 = vadd.f32 %v3080, %v3144
        %v3209 = vadd.f32 %v3081, %v3147
        %v3210 = vadd.f32 %v3082, %v3150
        %v3211 = vadd.f32 %v3083, %v3153
        %v3212 = vadd.f32 %v3084, %v3156
        %v3213 = vadd.f32 %v3085, %v3159
        %v3214 = vadd.f32 %v3086, %v3162
        %v3215 = vadd.f32 %v3087, %v3165
        %v3216 = vadd.f32 %v3088, %v3168
        %v3217 = vadd.f32 %v3089, %v3171
        %v3218 = vadd.f32 %v3090, %v3174
        %v3219 = vadd.f32 %v3091, %v3177
        %v3220 = vadd.f32 %v3092, %v3180
        %v3221 = vadd.f32 %v3093, %v3183
        %v3222 = vadd.f32 %v3094, %v3186
        %v3223 = vadd.f32 %v3095, %v3189
        %v3224 = vadd.f32 %v3096, %v3192
        %vm3225 = vcmask 7168
        %3226 = vst.msk [vmem:[#allocation6] sm:$0xff] %vm3225, %v3193
        %3227 = vst.msk [vmem:[#allocation6 + $0x8] sm:$0xff] %vm3225, %v3194
        %3228 = vst.msk [vmem:[#allocation6 + $0x10] sm:$0xff] %vm3225, %v3195
        %3229 = vst.msk [vmem:[#allocation6 + $0x18] sm:$0xff] %vm3225, %v3196
        %3230 = vst.msk [vmem:[#allocation6 + $0x20] sm:$0xff] %vm3225, %v3197
        %3231 = vst.msk [vmem:[#allocation6 + $0x28] sm:$0xff] %vm3225, %v3198
        %3232 = vst.msk [vmem:[#allocation6 + $0x30] sm:$0xff] %vm3225, %v3199
        %3233 = vst.msk [vmem:[#allocation6 + $0x38] sm:$0xff] %vm3225, %v3200
        %3234 = vst.msk [vmem:[#allocation6 + $0x40] sm:$0xff] %vm3225, %v3201
        %3235 = vst.msk [vmem:[#allocation6 + $0x48] sm:$0xff] %vm3225, %v3202
        %3236 = vst.msk [vmem:[#allocation6 + $0x50] sm:$0xff] %vm3225, %v3203
        %3237 = vst.msk [vmem:[#allocation6 + $0x58] sm:$0xff] %vm3225, %v3204
        %3238 = vst.msk [vmem:[#allocation6 + $0x60] sm:$0xff] %vm3225, %v3205
        %3239 = vst.msk [vmem:[#allocation6 + $0x68] sm:$0xff] %vm3225, %v3206
        %3240 = vst.msk [vmem:[#allocation6 + $0x70] sm:$0xff] %vm3225, %v3207
        %3241 = vst.msk [vmem:[#allocation6 + $0x78] sm:$0xff] %vm3225, %v3208
        %3242 = vst.msk [vmem:[#allocation6 + $0x80] sm:$0xff] %vm3225, %v3209
        %3243 = vst.msk [vmem:[#allocation6 + $0x88] sm:$0xff] %vm3225, %v3210
        %3244 = vst.msk [vmem:[#allocation6 + $0x90] sm:$0xff] %vm3225, %v3211
        %3245 = vst.msk [vmem:[#allocation6 + $0x98] sm:$0xff] %vm3225, %v3212
        %3246 = vst.msk [vmem:[#allocation6 + $0xa0] sm:$0xff] %vm3225, %v3213
        %3247 = vst.msk [vmem:[#allocation6 + $0xa8] sm:$0xff] %vm3225, %v3214
        %3248 = vst.msk [vmem:[#allocation6 + $0xb0] sm:$0xff] %vm3225, %v3215
        %3249 = vst.msk [vmem:[#allocation6 + $0xb8] sm:$0xff] %vm3225, %v3216
        %3250 = vst.msk [vmem:[#allocation6 + $0xc0] sm:$0xff] %vm3225, %v3217
        %3251 = vst.msk [vmem:[#allocation6 + $0xc8] sm:$0xff] %vm3225, %v3218
        %3252 = vst.msk [vmem:[#allocation6 + $0xd0] sm:$0xff] %vm3225, %v3219
        %3253 = vst.msk [vmem:[#allocation6 + $0xd8] sm:$0xff] %vm3225, %v3220
        %3254 = vst.msk [vmem:[#allocation6 + $0xe0] sm:$0xff] %vm3225, %v3221
        %3255 = vst.msk [vmem:[#allocation6 + $0xe8] sm:$0xff] %vm3225, %v3222
        %3256 = vst.msk [vmem:[#allocation6 + $0xf0] sm:$0xff] %vm3225, %v3223
        %3257 = vst.msk [vmem:[#allocation6 + $0xf8] sm:$0xff] %vm3225, %v3224
        %v3258 = vld [vmem:[#allocation7] sm:$0xff]
        %v3259 = vld [vmem:[#allocation7 + $0x8] sm:$0xff]
        %v3260 = vld [vmem:[#allocation7 + $0x10] sm:$0xff]
        %v3261 = vld [vmem:[#allocation7 + $0x18] sm:$0xff]
        %v3262 = vld [vmem:[#allocation7 + $0x20] sm:$0xff]
        %v3263 = vld [vmem:[#allocation7 + $0x28] sm:$0xff]
        %v3264 = vld [vmem:[#allocation7 + $0x30] sm:$0xff]
        %v3265 = vld [vmem:[#allocation7 + $0x38] sm:$0xff]
        %v3266 = vld [vmem:[#allocation7 + $0x40] sm:$0xff]
        %v3267 = vld [vmem:[#allocation7 + $0x48] sm:$0xff]
        %v3268 = vld [vmem:[#allocation7 + $0x50] sm:$0xff]
        %v3269 = vld [vmem:[#allocation7 + $0x58] sm:$0xff]
        %v3270 = vld [vmem:[#allocation7 + $0x60] sm:$0xff]
        %v3271 = vld [vmem:[#allocation7 + $0x68] sm:$0xff]
        %v3272 = vld [vmem:[#allocation7 + $0x70] sm:$0xff]
        %v3273 = vld [vmem:[#allocation7 + $0x78] sm:$0xff]
        %v3274 = vld [vmem:[#allocation7 + $0x80] sm:$0xff]
        %v3275 = vld [vmem:[#allocation7 + $0x88] sm:$0xff]
        %v3276 = vld [vmem:[#allocation7 + $0x90] sm:$0xff]
        %v3277 = vld [vmem:[#allocation7 + $0x98] sm:$0xff]
        %v3278 = vld [vmem:[#allocation7 + $0xa0] sm:$0xff]
        %v3279 = vld [vmem:[#allocation7 + $0xa8] sm:$0xff]
        %v3280 = vld [vmem:[#allocation7 + $0xb0] sm:$0xff]
        %v3281 = vld [vmem:[#allocation7 + $0xb8] sm:$0xff]
        %v3282 = vld [vmem:[#allocation7 + $0xc0] sm:$0xff]
        %v3283 = vld [vmem:[#allocation7 + $0xc8] sm:$0xff]
        %v3284 = vld [vmem:[#allocation7 + $0xd0] sm:$0xff]
        %v3285 = vld [vmem:[#allocation7 + $0xd8] sm:$0xff]
        %v3286 = vld [vmem:[#allocation7 + $0xe0] sm:$0xff]
        %v3287 = vld [vmem:[#allocation7 + $0xe8] sm:$0xff]
        %v3288 = vld [vmem:[#allocation7 + $0xf0] sm:$0xff]
        %v3289 = vld [vmem:[#allocation7 + $0xf8] sm:$0xff]
        %3291 = vset.pattern.permute.xlu0 0
        %3292 = vperm.xlu0 %3291, %v2618
        %v3293 = vpop.permute.xlu0 %3292
        %3296 = vset.pattern.permute.xlu0 0
        %3297 = vperm.xlu0 %3296, %v2620
        %v3298 = vpop.permute.xlu0 %3297
        %3301 = vset.pattern.permute.xlu0 0
        %3302 = vperm.xlu0 %3301, %v2622
        %v3303 = vpop.permute.xlu0 %3302
        %3306 = vset.pattern.permute.xlu0 0
        %3307 = vperm.xlu0 %3306, %v2624
        %v3308 = vpop.permute.xlu0 %3307
        %3311 = vset.pattern.permute.xlu0 0
        %3312 = vperm.xlu0 %3311, %v2626
        %v3313 = vpop.permute.xlu0 %3312
        %3316 = vset.pattern.permute.xlu0 0
        %3317 = vperm.xlu0 %3316, %v2628
        %v3318 = vpop.permute.xlu0 %3317
        %3321 = vset.pattern.permute.xlu0 0
        %3322 = vperm.xlu0 %3321, %v2630
        %v3323 = vpop.permute.xlu0 %3322
        %3326 = vset.pattern.permute.xlu0 0
        %3327 = vperm.xlu0 %3326, %v2632
        %v3328 = vpop.permute.xlu0 %3327
        %3331 = vset.pattern.permute.xlu0 0
        %3332 = vperm.xlu0 %3331, %v2634
        %v3333 = vpop.permute.xlu0 %3332
        %3336 = vset.pattern.permute.xlu0 0
        %3337 = vperm.xlu0 %3336, %v2636
        %v3338 = vpop.permute.xlu0 %3337
        %3341 = vset.pattern.permute.xlu0 0
        %3342 = vperm.xlu0 %3341, %v2638
        %v3343 = vpop.permute.xlu0 %3342
        %3346 = vset.pattern.permute.xlu0 0
        %3347 = vperm.xlu0 %3346, %v2640
        %v3348 = vpop.permute.xlu0 %3347
        %3351 = vset.pattern.permute.xlu0 0
        %3352 = vperm.xlu0 %3351, %v2642
        %v3353 = vpop.permute.xlu0 %3352
        %3356 = vset.pattern.permute.xlu0 0
        %3357 = vperm.xlu0 %3356, %v2644
        %v3358 = vpop.permute.xlu0 %3357
        %3361 = vset.pattern.permute.xlu0 0
        %3362 = vperm.xlu0 %3361, %v2646
        %v3363 = vpop.permute.xlu0 %3362
        %3366 = vset.pattern.permute.xlu0 0
        %3367 = vperm.xlu0 %3366, %v2648
        %v3368 = vpop.permute.xlu0 %3367
        %3371 = vset.pattern.permute.xlu0 0
        %3372 = vperm.xlu0 %3371, %v2650
        %v3373 = vpop.permute.xlu0 %3372
        %3376 = vset.pattern.permute.xlu0 0
        %3377 = vperm.xlu0 %3376, %v2652
        %v3378 = vpop.permute.xlu0 %3377
        %3381 = vset.pattern.permute.xlu0 0
        %3382 = vperm.xlu0 %3381, %v2654
        %v3383 = vpop.permute.xlu0 %3382
        %3386 = vset.pattern.permute.xlu0 0
        %3387 = vperm.xlu0 %3386, %v2656
        %v3388 = vpop.permute.xlu0 %3387
        %3391 = vset.pattern.permute.xlu0 0
        %3392 = vperm.xlu0 %3391, %v2658
        %v3393 = vpop.permute.xlu0 %3392
        %3396 = vset.pattern.permute.xlu0 0
        %3397 = vperm.xlu0 %3396, %v2660
        %v3398 = vpop.permute.xlu0 %3397
        %3401 = vset.pattern.permute.xlu0 0
        %3402 = vperm.xlu0 %3401, %v2662
        %v3403 = vpop.permute.xlu0 %3402
        %3406 = vset.pattern.permute.xlu0 0
        %3407 = vperm.xlu0 %3406, %v2664
        %v3408 = vpop.permute.xlu0 %3407
        %3411 = vset.pattern.permute.xlu0 0
        %3412 = vperm.xlu0 %3411, %v2666
        %v3413 = vpop.permute.xlu0 %3412
        %3416 = vset.pattern.permute.xlu0 0
        %3417 = vperm.xlu0 %3416, %v2668
        %v3418 = vpop.permute.xlu0 %3417
        %3421 = vset.pattern.permute.xlu0 0
        %3422 = vperm.xlu0 %3421, %v2670
        %v3423 = vpop.permute.xlu0 %3422
        %3426 = vset.pattern.permute.xlu0 0
        %3427 = vperm.xlu0 %3426, %v2672
        %v3428 = vpop.permute.xlu0 %3427
        %3431 = vset.pattern.permute.xlu0 0
        %3432 = vperm.xlu0 %3431, %v2674
        %v3433 = vpop.permute.xlu0 %3432
        %3436 = vset.pattern.permute.xlu0 0
        %3437 = vperm.xlu0 %3436, %v2676
        %v3438 = vpop.permute.xlu0 %3437
        %3441 = vset.pattern.permute.xlu0 0
        %3442 = vperm.xlu0 %3441, %v2678
        %v3443 = vpop.permute.xlu0 %3442
        %3446 = vset.pattern.permute.xlu0 0
        %3447 = vperm.xlu0 %3446, %v2680
        %v3448 = vpop.permute.xlu0 %3447
        %v3450 = vmul.f32 %v3293, %v3258
        %v3451 = vmul.f32 %v3298, %v3259
        %v3452 = vmul.f32 %v3303, %v3260
        %v3453 = vmul.f32 %v3308, %v3261
        %v3454 = vmul.f32 %v3313, %v3262
        %v3455 = vmul.f32 %v3318, %v3263
        %v3456 = vmul.f32 %v3323, %v3264
        %v3457 = vmul.f32 %v3328, %v3265
        %v3458 = vmul.f32 %v3333, %v3266
        %v3459 = vmul.f32 %v3338, %v3267
        %v3460 = vmul.f32 %v3343, %v3268
        %v3461 = vmul.f32 %v3348, %v3269
        %v3462 = vmul.f32 %v3353, %v3270
        %v3463 = vmul.f32 %v3358, %v3271
        %v3464 = vmul.f32 %v3363, %v3272
        %v3465 = vmul.f32 %v3368, %v3273
        %v3466 = vmul.f32 %v3373, %v3274
        %v3467 = vmul.f32 %v3378, %v3275
        %v3468 = vmul.f32 %v3383, %v3276
        %v3469 = vmul.f32 %v3388, %v3277
        %v3470 = vmul.f32 %v3393, %v3278
        %v3471 = vmul.f32 %v3398, %v3279
        %v3472 = vmul.f32 %v3403, %v3280
        %v3473 = vmul.f32 %v3408, %v3281
        %v3474 = vmul.f32 %v3413, %v3282
        %v3475 = vmul.f32 %v3418, %v3283
        %v3476 = vmul.f32 %v3423, %v3284
        %v3477 = vmul.f32 %v3428, %v3285
        %v3478 = vmul.f32 %v3433, %v3286
        %v3479 = vmul.f32 %v3438, %v3287
        %v3480 = vmul.f32 %v3443, %v3288
        %v3481 = vmul.f32 %v3448, %v3289
        %v3482 = vpack.c.bf16 %v2910, %v2906
        %v3483 = vpack.c.bf16 %v2912, %v2908
        %v3484 = vpack.c.bf16 %v2918, %v2914
        %v3485 = vpack.c.bf16 %v2920, %v2916
        %v3486 = vpack.c.bf16 %v2926, %v2922
        %v3487 = vpack.c.bf16 %v2928, %v2924
        %v3488 = vpack.c.bf16 %v2934, %v2930
        %v3489 = vpack.c.bf16 %v2936, %v2932
        %v3490 = vpack.c.bf16 %v2942, %v2938
        %v3491 = vpack.c.bf16 %v2944, %v2940
        %v3492 = vpack.c.bf16 %v2950, %v2946
        %v3493 = vpack.c.bf16 %v2952, %v2948
        %v3494 = vpack.c.bf16 %v2958, %v2954
        %v3495 = vpack.c.bf16 %v2960, %v2956
        %v3496 = vpack.c.bf16 %v2966, %v2962
        %v3497 = vpack.c.bf16 %v2968, %v2964
        %v3498 = vpack.c.bf16 %v2974, %v2970
        %v3499 = vpack.c.bf16 %v2976, %v2972
        %v3500 = vpack.c.bf16 %v2982, %v2978
        %v3501 = vpack.c.bf16 %v2984, %v2980
        %v3502 = vpack.c.bf16 %v2990, %v2986
        %v3503 = vpack.c.bf16 %v2992, %v2988
        %v3504 = vpack.c.bf16 %v2998, %v2994
        %v3505 = vpack.c.bf16 %v3000, %v2996
        %v3506 = vpack.c.bf16 %v3006, %v3002
        %v3507 = vpack.c.bf16 %v3008, %v3004
        %v3508 = vpack.c.bf16 %v3014, %v3010
        %v3509 = vpack.c.bf16 %v3016, %v3012
        %v3510 = vpack.c.bf16 %v3022, %v3018
        %v3511 = vpack.c.bf16 %v3024, %v3020
        %v3512 = vpack.c.bf16 %v3030, %v3026
        %v3513 = vpack.c.bf16 %v3032, %v3028
        %v3546 = vunpack.c.l.b16 %v1976
        %v3547 = vunpack.c.l.b16 %v1977
        %v3548 = vunpack.c.l.b16 %v1978
        %v3549 = vunpack.c.l.b16 %v1979
        %v3550 = vunpack.c.l.b16 %v1980
        %v3551 = vunpack.c.l.b16 %v1981
        %v3552 = vunpack.c.l.b16 %v1982
        %v3553 = vunpack.c.l.b16 %v1983
        %v3554 = vunpack.c.l.b16 %v1984
        %v3555 = vunpack.c.l.b16 %v1985
        %v3556 = vunpack.c.l.b16 %v1986
        %v3557 = vunpack.c.l.b16 %v1987
        %v3558 = vunpack.c.l.b16 %v1988
        %v3559 = vunpack.c.l.b16 %v1989
        %v3560 = vunpack.c.l.b16 %v1990
        %v3561 = vunpack.c.l.b16 %v1991
        %v3562 = vunpack.c.l.b16 %v1992
        %v3563 = vunpack.c.l.b16 %v1993
        %v3564 = vunpack.c.l.b16 %v1994
        %v3565 = vunpack.c.l.b16 %v1995
        %v3566 = vunpack.c.l.b16 %v1996
        %v3567 = vunpack.c.l.b16 %v1997
        %v3568 = vunpack.c.l.b16 %v1998
        %v3569 = vunpack.c.l.b16 %v1999
        %v3570 = vunpack.c.l.b16 %v2000
        %v3571 = vunpack.c.l.b16 %v2001
        %v3572 = vunpack.c.l.b16 %v2002
        %v3573 = vunpack.c.l.b16 %v2003
        %v3574 = vunpack.c.l.b16 %v2004
        %v3575 = vunpack.c.l.b16 %v2005
        %v3576 = vunpack.c.l.b16 %v2006
        %v3577 = vunpack.c.l.b16 %v2007
        %v3578 = vpack.c.b16 %v3547, %v3546
        %v3579 = vpack.c.b16 %v3549, %v3548
        %v3580 = vpack.c.b16 %v3551, %v3550
        %v3581 = vpack.c.b16 %v3553, %v3552
        %v3582 = vpack.c.b16 %v3555, %v3554
        %v3583 = vpack.c.b16 %v3557, %v3556
        %v3584 = vpack.c.b16 %v3559, %v3558
        %v3585 = vpack.c.b16 %v3561, %v3560
        %v3586 = vpack.c.b16 %v3563, %v3562
        %v3587 = vpack.c.b16 %v3565, %v3564
        %v3588 = vpack.c.b16 %v3567, %v3566
        %v3589 = vpack.c.b16 %v3569, %v3568
        %v3590 = vpack.c.b16 %v3571, %v3570
        %v3591 = vpack.c.b16 %v3573, %v3572
        %v3592 = vpack.c.b16 %v3575, %v3574
        %v3593 = vpack.c.b16 %v3577, %v3576
        %3610 = vmatprep.subr.bf16.mxu0 0
        %3611 = vmatpush1.bf16.msra.mxu0 %v3585
        %3612 = vmatprep.subr.bf16.mxu0 0
        %3613 = vmatpush1.bf16.msra.mxu0 %v3584
        %3614 = vmatprep.subr.bf16.mxu0 0
        %3615 = vmatpush1.bf16.msra.mxu0 %v3583
        %3616 = vmatprep.subr.bf16.mxu0 0
        %3617 = vmatpush1.bf16.msra.mxu0 %v3582
        %3618 = vmatprep.subr.bf16.mxu0 0
        %3619 = vmatpush1.bf16.msra.mxu0 %v3581
        %3620 = vmatprep.subr.bf16.mxu0 0
        %3621 = vmatpush1.bf16.msra.mxu0 %v3580
        %3622 = vmatprep.subr.bf16.mxu0 0
        %3623 = vmatpush1.bf16.msra.mxu0 %v3579
        %3624 = vmatprep.subr.bf16.mxu0 0
        %3625 = vmatpush1.bf16.msra.mxu0 %v3578
        %3626 = vmatprep.subr.bf16.mxu0 0
        %3627 = vmatpush2.bf16.msra.mxu0 %v3593
        %3628 = vmatprep.subr.bf16.mxu0 0
        %3629 = vmatpush2.bf16.msra.mxu0 %v3592
        %3630 = vmatprep.subr.bf16.mxu0 0
        %3631 = vmatpush2.bf16.msra.mxu0 %v3591
        %3632 = vmatprep.subr.bf16.mxu0 0
        %3633 = vmatpush2.bf16.msra.mxu0 %v3590
        %3634 = vmatprep.subr.bf16.mxu0 0
        %3635 = vmatpush2.bf16.msra.mxu0 %v3589
        %3636 = vmatprep.subr.bf16.mxu0 0
        %3637 = vmatpush2.bf16.msra.mxu0 %v3588
        %3638 = vmatprep.subr.bf16.mxu0 0
        %3639 = vmatpush2.bf16.msra.mxu0 %v3587
        %3640 = vmatprep.subr.bf16.mxu0 0
        %3641 = vmatpush2.bf16.msra.mxu0 %v3586
        %3642 = vmatprep.mubr.bf16.mxu0 %v3483
        %3643 = vmatmul.mubr.bf16.gmra.mxu0 %v3482
        %v3644 = vpop.f32.mrf.mxu0
        %v3645 = vadd.f32 0.0, %v3644
        %v3646 = vpop.f32.mrf.mxu0
        %v3647 = vpop.f32.mrf.mxu0
        %v3648 = vadd.f32 0.0, %v3647
        %v3649 = vpop.f32.mrf.mxu0
        %3650 = vmatprep.mubr.bf16.mxu0 %v3485
        %3651 = vmatmul.mubr.bf16.gmra.mxu0 %v3484
        %v3652 = vpop.f32.mrf.mxu0
        %v3653 = vadd.f32 0.0, %v3652
        %v3654 = vpop.f32.mrf.mxu0
        %v3655 = vpop.f32.mrf.mxu0
        %v3656 = vadd.f32 0.0, %v3655
        %v3657 = vpop.f32.mrf.mxu0
        %3658 = vmatprep.mubr.bf16.mxu0 %v3487
        %3659 = vmatmul.mubr.bf16.gmra.mxu0 %v3486
        %v3660 = vpop.f32.mrf.mxu0
        %v3661 = vadd.f32 0.0, %v3660
        %v3662 = vpop.f32.mrf.mxu0
        %v3663 = vpop.f32.mrf.mxu0
        %v3664 = vadd.f32 0.0, %v3663
        %v3665 = vpop.f32.mrf.mxu0
        %3666 = vmatprep.mubr.bf16.mxu0 %v3489
        %3667 = vmatmul.mubr.bf16.gmra.mxu0 %v3488
        %v3668 = vpop.f32.mrf.mxu0
        %v3669 = vadd.f32 0.0, %v3668
        %v3670 = vpop.f32.mrf.mxu0
        %v3671 = vpop.f32.mrf.mxu0
        %v3672 = vadd.f32 0.0, %v3671
        %v3673 = vpop.f32.mrf.mxu0
        %3674 = vmatprep.mubr.bf16.mxu0 %v3491
        %3675 = vmatmul.mubr.bf16.gmra.mxu0 %v3490
        %v3676 = vpop.f32.mrf.mxu0
        %v3677 = vadd.f32 0.0, %v3676
        %v3678 = vpop.f32.mrf.mxu0
        %v3679 = vpop.f32.mrf.mxu0
        %v3680 = vadd.f32 0.0, %v3679
        %v3681 = vpop.f32.mrf.mxu0
        %3682 = vmatprep.mubr.bf16.mxu0 %v3493
        %3683 = vmatmul.mubr.bf16.gmra.mxu0 %v3492
        %v3684 = vpop.f32.mrf.mxu0
        %v3685 = vadd.f32 0.0, %v3684
        %v3686 = vpop.f32.mrf.mxu0
        %v3687 = vpop.f32.mrf.mxu0
        %v3688 = vadd.f32 0.0, %v3687
        %v3689 = vpop.f32.mrf.mxu0
        %3690 = vmatprep.mubr.bf16.mxu0 %v3495
        %3691 = vmatmul.mubr.bf16.gmra.mxu0 %v3494
        %v3692 = vpop.f32.mrf.mxu0
        %v3693 = vadd.f32 0.0, %v3692
        %v3694 = vpop.f32.mrf.mxu0
        %v3695 = vpop.f32.mrf.mxu0
        %v3696 = vadd.f32 0.0, %v3695
        %v3697 = vpop.f32.mrf.mxu0
        %3698 = vmatprep.mubr.bf16.mxu0 %v3497
        %3699 = vmatmul.mubr.bf16.gmra.mxu0 %v3496
        %v3700 = vpop.f32.mrf.mxu0
        %v3701 = vadd.f32 0.0, %v3700
        %v3702 = vpop.f32.mrf.mxu0
        %v3703 = vpop.f32.mrf.mxu0
        %v3704 = vadd.f32 0.0, %v3703
        %v3705 = vpop.f32.mrf.mxu0
        %3706 = vmatprep.mubr.bf16.mxu0 %v3499
        %3707 = vmatmul.mubr.bf16.gmra.mxu0 %v3498
        %v3708 = vpop.f32.mrf.mxu0
        %v3709 = vadd.f32 0.0, %v3708
        %v3710 = vpop.f32.mrf.mxu0
        %v3711 = vpop.f32.mrf.mxu0
        %v3712 = vadd.f32 0.0, %v3711
        %v3713 = vpop.f32.mrf.mxu0
        %3714 = vmatprep.mubr.bf16.mxu0 %v3501
        %3715 = vmatmul.mubr.bf16.gmra.mxu0 %v3500
        %v3716 = vpop.f32.mrf.mxu0
        %v3717 = vadd.f32 0.0, %v3716
        %v3718 = vpop.f32.mrf.mxu0
        %v3719 = vpop.f32.mrf.mxu0
        %v3720 = vadd.f32 0.0, %v3719
        %v3721 = vpop.f32.mrf.mxu0
        %3722 = vmatprep.mubr.bf16.mxu0 %v3503
        %3723 = vmatmul.mubr.bf16.gmra.mxu0 %v3502
        %v3724 = vpop.f32.mrf.mxu0
        %v3725 = vadd.f32 0.0, %v3724
        %v3726 = vpop.f32.mrf.mxu0
        %v3727 = vpop.f32.mrf.mxu0
        %v3728 = vadd.f32 0.0, %v3727
        %v3729 = vpop.f32.mrf.mxu0
        %3730 = vmatprep.mubr.bf16.mxu0 %v3505
        %3731 = vmatmul.mubr.bf16.gmra.mxu0 %v3504
        %v3732 = vpop.f32.mrf.mxu0
        %v3733 = vadd.f32 0.0, %v3732
        %v3734 = vpop.f32.mrf.mxu0
        %v3735 = vpop.f32.mrf.mxu0
        %v3736 = vadd.f32 0.0, %v3735
        %v3737 = vpop.f32.mrf.mxu0
        %3738 = vmatprep.mubr.bf16.mxu0 %v3507
        %3739 = vmatmul.mubr.bf16.gmra.mxu0 %v3506
        %v3740 = vpop.f32.mrf.mxu0
        %v3741 = vadd.f32 0.0, %v3740
        %v3742 = vpop.f32.mrf.mxu0
        %v3743 = vpop.f32.mrf.mxu0
        %v3744 = vadd.f32 0.0, %v3743
        %v3745 = vpop.f32.mrf.mxu0
        %3746 = vmatprep.mubr.bf16.mxu0 %v3509
        %3747 = vmatmul.mubr.bf16.gmra.mxu0 %v3508
        %v3748 = vpop.f32.mrf.mxu0
        %v3749 = vadd.f32 0.0, %v3748
        %v3750 = vpop.f32.mrf.mxu0
        %v3751 = vpop.f32.mrf.mxu0
        %v3752 = vadd.f32 0.0, %v3751
        %v3753 = vpop.f32.mrf.mxu0
        %3754 = vmatprep.mubr.bf16.mxu0 %v3511
        %3755 = vmatmul.mubr.bf16.gmra.mxu0 %v3510
        %v3756 = vpop.f32.mrf.mxu0
        %v3757 = vadd.f32 0.0, %v3756
        %v3758 = vpop.f32.mrf.mxu0
        %v3759 = vpop.f32.mrf.mxu0
        %v3760 = vadd.f32 0.0, %v3759
        %v3761 = vpop.f32.mrf.mxu0
        %3762 = vmatprep.mubr.bf16.mxu0 %v3513
        %3763 = vmatmul.mubr.bf16.gmra.mxu0 %v3512
        %v3764 = vpop.f32.mrf.mxu0
        %v3765 = vadd.f32 0.0, %v3764
        %v3766 = vpop.f32.mrf.mxu0
        %v3767 = vpop.f32.mrf.mxu0
        %v3768 = vadd.f32 0.0, %v3767
        %v3769 = vpop.f32.mrf.mxu0
        %3770 = vdwg.mxu0
        %v3771 = vadd.f32 %v3450, %v3645
        %v3772 = vadd.f32 %v3451, %v3648
        %v3773 = vadd.f32 %v3452, %v3653
        %v3774 = vadd.f32 %v3453, %v3656
        %v3775 = vadd.f32 %v3454, %v3661
        %v3776 = vadd.f32 %v3455, %v3664
        %v3777 = vadd.f32 %v3456, %v3669
        %v3778 = vadd.f32 %v3457, %v3672
        %v3779 = vadd.f32 %v3458, %v3677
        %v3780 = vadd.f32 %v3459, %v3680
        %v3781 = vadd.f32 %v3460, %v3685
        %v3782 = vadd.f32 %v3461, %v3688
        %v3783 = vadd.f32 %v3462, %v3693
        %v3784 = vadd.f32 %v3463, %v3696
        %v3785 = vadd.f32 %v3464, %v3701
        %v3786 = vadd.f32 %v3465, %v3704
        %v3787 = vadd.f32 %v3466, %v3709
        %v3788 = vadd.f32 %v3467, %v3712
        %v3789 = vadd.f32 %v3468, %v3717
        %v3790 = vadd.f32 %v3469, %v3720
        %v3791 = vadd.f32 %v3470, %v3725
        %v3792 = vadd.f32 %v3471, %v3728
        %v3793 = vadd.f32 %v3472, %v3733
        %v3794 = vadd.f32 %v3473, %v3736
        %v3795 = vadd.f32 %v3474, %v3741
        %v3796 = vadd.f32 %v3475, %v3744
        %v3797 = vadd.f32 %v3476, %v3749
        %v3798 = vadd.f32 %v3477, %v3752
        %v3799 = vadd.f32 %v3478, %v3757
        %v3800 = vadd.f32 %v3479, %v3760
        %v3801 = vadd.f32 %v3480, %v3765
        %v3802 = vadd.f32 %v3481, %v3768
        %3803 = vst [vmem:[#allocation7] sm:$0xff] %v3771
        %3804 = vst [vmem:[#allocation7 + $0x8] sm:$0xff] %v3772
        %3805 = vst [vmem:[#allocation7 + $0x10] sm:$0xff] %v3773
        %3806 = vst [vmem:[#allocation7 + $0x18] sm:$0xff] %v3774
        %3807 = vst [vmem:[#allocation7 + $0x20] sm:$0xff] %v3775
        %3808 = vst [vmem:[#allocation7 + $0x28] sm:$0xff] %v3776
        %3809 = vst [vmem:[#allocation7 + $0x30] sm:$0xff] %v3777
        %3810 = vst [vmem:[#allocation7 + $0x38] sm:$0xff] %v3778
        %3811 = vst [vmem:[#allocation7 + $0x40] sm:$0xff] %v3779
        %3812 = vst [vmem:[#allocation7 + $0x48] sm:$0xff] %v3780
        %3813 = vst [vmem:[#allocation7 + $0x50] sm:$0xff] %v3781
        %3814 = vst [vmem:[#allocation7 + $0x58] sm:$0xff] %v3782
        %3815 = vst [vmem:[#allocation7 + $0x60] sm:$0xff] %v3783
        %3816 = vst [vmem:[#allocation7 + $0x68] sm:$0xff] %v3784
        %3817 = vst [vmem:[#allocation7 + $0x70] sm:$0xff] %v3785
        %3818 = vst [vmem:[#allocation7 + $0x78] sm:$0xff] %v3786
        %3819 = vst [vmem:[#allocation7 + $0x80] sm:$0xff] %v3787
        %3820 = vst [vmem:[#allocation7 + $0x88] sm:$0xff] %v3788
        %3821 = vst [vmem:[#allocation7 + $0x90] sm:$0xff] %v3789
        %3822 = vst [vmem:[#allocation7 + $0x98] sm:$0xff] %v3790
        %3823 = vst [vmem:[#allocation7 + $0xa0] sm:$0xff] %v3791
        %3824 = vst [vmem:[#allocation7 + $0xa8] sm:$0xff] %v3792
        %3825 = vst [vmem:[#allocation7 + $0xb0] sm:$0xff] %v3793
        %3826 = vst [vmem:[#allocation7 + $0xb8] sm:$0xff] %v3794
        %3827 = vst [vmem:[#allocation7 + $0xc0] sm:$0xff] %v3795
        %3828 = vst [vmem:[#allocation7 + $0xc8] sm:$0xff] %v3796
        %3829 = vst [vmem:[#allocation7 + $0xd0] sm:$0xff] %v3797
        %3830 = vst [vmem:[#allocation7 + $0xd8] sm:$0xff] %v3798
        %3831 = vst [vmem:[#allocation7 + $0xe0] sm:$0xff] %v3799
        %3832 = vst [vmem:[#allocation7 + $0xe8] sm:$0xff] %v3800
        %3833 = vst [vmem:[#allocation7 + $0xf0] sm:$0xff] %v3801
        %3834 = vst [vmem:[#allocation7 + $0xf8] sm:$0xff] %v3802
        %3835 = vst.msk [vmem:[#allocation5] sm:$0xff] %vm3225, %v2553
        %3836 = vst.msk [vmem:[#allocation5 + $0x8] sm:$0xff] %vm3225, %v2554
        %3837 = vst.msk [vmem:[#allocation5 + $0x10] sm:$0xff] %vm3225, %v2555
        %3838 = vst.msk [vmem:[#allocation5 + $0x18] sm:$0xff] %vm3225, %v2556
        %3839 = vst.msk [vmem:[#allocation5 + $0x20] sm:$0xff] %vm3225, %v2557
        %3840 = vst.msk [vmem:[#allocation5 + $0x28] sm:$0xff] %vm3225, %v2558
        %3841 = vst.msk [vmem:[#allocation5 + $0x30] sm:$0xff] %vm3225, %v2559
        %3842 = vst.msk [vmem:[#allocation5 + $0x38] sm:$0xff] %vm3225, %v2560
        %3843 = vst.msk [vmem:[#allocation5 + $0x40] sm:$0xff] %vm3225, %v2561
        %3844 = vst.msk [vmem:[#allocation5 + $0x48] sm:$0xff] %vm3225, %v2562
        %3845 = vst.msk [vmem:[#allocation5 + $0x50] sm:$0xff] %vm3225, %v2563
        %3846 = vst.msk [vmem:[#allocation5 + $0x58] sm:$0xff] %vm3225, %v2564
        %3847 = vst.msk [vmem:[#allocation5 + $0x60] sm:$0xff] %vm3225, %v2565
        %3848 = vst.msk [vmem:[#allocation5 + $0x68] sm:$0xff] %vm3225, %v2566
        %3849 = vst.msk [vmem:[#allocation5 + $0x70] sm:$0xff] %vm3225, %v2567
        %3850 = vst.msk [vmem:[#allocation5 + $0x78] sm:$0xff] %vm3225, %v2568
        %3851 = vst.msk [vmem:[#allocation5 + $0x80] sm:$0xff] %vm3225, %v2569
        %3852 = vst.msk [vmem:[#allocation5 + $0x88] sm:$0xff] %vm3225, %v2570
        %3853 = vst.msk [vmem:[#allocation5 + $0x90] sm:$0xff] %vm3225, %v2571
        %3854 = vst.msk [vmem:[#allocation5 + $0x98] sm:$0xff] %vm3225, %v2572
        %3855 = vst.msk [vmem:[#allocation5 + $0xa0] sm:$0xff] %vm3225, %v2573
        %3856 = vst.msk [vmem:[#allocation5 + $0xa8] sm:$0xff] %vm3225, %v2574
        %3857 = vst.msk [vmem:[#allocation5 + $0xb0] sm:$0xff] %vm3225, %v2575
        %3858 = vst.msk [vmem:[#allocation5 + $0xb8] sm:$0xff] %vm3225, %v2576
        %3859 = vst.msk [vmem:[#allocation5 + $0xc0] sm:$0xff] %vm3225, %v2577
        %3860 = vst.msk [vmem:[#allocation5 + $0xc8] sm:$0xff] %vm3225, %v2578
        %3861 = vst.msk [vmem:[#allocation5 + $0xd0] sm:$0xff] %vm3225, %v2579
        %3862 = vst.msk [vmem:[#allocation5 + $0xd8] sm:$0xff] %vm3225, %v2580
        %3863 = vst.msk [vmem:[#allocation5 + $0xe0] sm:$0xff] %vm3225, %v2581
        %3864 = vst.msk [vmem:[#allocation5 + $0xe8] sm:$0xff] %vm3225, %v2582
        %3865 = vst.msk [vmem:[#allocation5 + $0xf0] sm:$0xff] %vm3225, %v2583
        %3866 = vst.msk [vmem:[#allocation5 + $0xf8] sm:$0xff] %vm3225, %v2584
        // Predicated region
        $region61: #{cross_attention_forward.1} parent=51 // pred_check
          %p3867 = pneg %p1324
        $region62: #{cross_attention_forward.1} parent=51 // pred_check_branch
          %3869 = sbr.rel (%p3867) target = $region64
        $region63: #{cross_attention_forward.1} parent=51 // pred_region
          %v3870 = vld [vmem:[#allocation7] sm:$0xff]
          %v3871 = vld [vmem:[#allocation7 + $0x8] sm:$0xff]
          %v3872 = vld [vmem:[#allocation7 + $0x10] sm:$0xff]
          %v3873 = vld [vmem:[#allocation7 + $0x18] sm:$0xff]
          %v3874 = vld [vmem:[#allocation7 + $0x20] sm:$0xff]
          %v3875 = vld [vmem:[#allocation7 + $0x28] sm:$0xff]
          %v3876 = vld [vmem:[#allocation7 + $0x30] sm:$0xff]
          %v3877 = vld [vmem:[#allocation7 + $0x38] sm:$0xff]
          %v3878 = vld [vmem:[#allocation7 + $0x40] sm:$0xff]
          %v3879 = vld [vmem:[#allocation7 + $0x48] sm:$0xff]
          %v3880 = vld [vmem:[#allocation7 + $0x50] sm:$0xff]
          %v3881 = vld [vmem:[#allocation7 + $0x58] sm:$0xff]
          %v3882 = vld [vmem:[#allocation7 + $0x60] sm:$0xff]
          %v3883 = vld [vmem:[#allocation7 + $0x68] sm:$0xff]
          %v3884 = vld [vmem:[#allocation7 + $0x70] sm:$0xff]
          %v3885 = vld [vmem:[#allocation7 + $0x78] sm:$0xff]
          %v3886 = vld [vmem:[#allocation7 + $0x80] sm:$0xff]
          %v3887 = vld [vmem:[#allocation7 + $0x88] sm:$0xff]
          %v3888 = vld [vmem:[#allocation7 + $0x90] sm:$0xff]
          %v3889 = vld [vmem:[#allocation7 + $0x98] sm:$0xff]
          %v3890 = vld [vmem:[#allocation7 + $0xa0] sm:$0xff]
          %v3891 = vld [vmem:[#allocation7 + $0xa8] sm:$0xff]
          %v3892 = vld [vmem:[#allocation7 + $0xb0] sm:$0xff]
          %v3893 = vld [vmem:[#allocation7 + $0xb8] sm:$0xff]
          %v3894 = vld [vmem:[#allocation7 + $0xc0] sm:$0xff]
          %v3895 = vld [vmem:[#allocation7 + $0xc8] sm:$0xff]
          %v3896 = vld [vmem:[#allocation7 + $0xd0] sm:$0xff]
          %v3897 = vld [vmem:[#allocation7 + $0xd8] sm:$0xff]
          %v3898 = vld [vmem:[#allocation7 + $0xe0] sm:$0xff]
          %v3899 = vld [vmem:[#allocation7 + $0xe8] sm:$0xff]
          %v3900 = vld [vmem:[#allocation7 + $0xf0] sm:$0xff]
          %v3901 = vld [vmem:[#allocation7 + $0xf8] sm:$0xff]
          %v3902 = vld [vmem:[#allocation6] sm:$0xff]
          %v3903 = vld [vmem:[#allocation6 + $0x8] sm:$0xff]
          %v3904 = vld [vmem:[#allocation6 + $0x10] sm:$0xff]
          %v3905 = vld [vmem:[#allocation6 + $0x18] sm:$0xff]
          %v3906 = vld [vmem:[#allocation6 + $0x20] sm:$0xff]
          %v3907 = vld [vmem:[#allocation6 + $0x28] sm:$0xff]
          %v3908 = vld [vmem:[#allocation6 + $0x30] sm:$0xff]
          %v3909 = vld [vmem:[#allocation6 + $0x38] sm:$0xff]
          %v3910 = vld [vmem:[#allocation6 + $0x40] sm:$0xff]
          %v3911 = vld [vmem:[#allocation6 + $0x48] sm:$0xff]
          %v3912 = vld [vmem:[#allocation6 + $0x50] sm:$0xff]
          %v3913 = vld [vmem:[#allocation6 + $0x58] sm:$0xff]
          %v3914 = vld [vmem:[#allocation6 + $0x60] sm:$0xff]
          %v3915 = vld [vmem:[#allocation6 + $0x68] sm:$0xff]
          %v3916 = vld [vmem:[#allocation6 + $0x70] sm:$0xff]
          %v3917 = vld [vmem:[#allocation6 + $0x78] sm:$0xff]
          %v3918 = vld [vmem:[#allocation6 + $0x80] sm:$0xff]
          %v3919 = vld [vmem:[#allocation6 + $0x88] sm:$0xff]
          %v3920 = vld [vmem:[#allocation6 + $0x90] sm:$0xff]
          %v3921 = vld [vmem:[#allocation6 + $0x98] sm:$0xff]
          %v3922 = vld [vmem:[#allocation6 + $0xa0] sm:$0xff]
          %v3923 = vld [vmem:[#allocation6 + $0xa8] sm:$0xff]
          %v3924 = vld [vmem:[#allocation6 + $0xb0] sm:$0xff]
          %v3925 = vld [vmem:[#allocation6 + $0xb8] sm:$0xff]
          %v3926 = vld [vmem:[#allocation6 + $0xc0] sm:$0xff]
          %v3927 = vld [vmem:[#allocation6 + $0xc8] sm:$0xff]
          %v3928 = vld [vmem:[#allocation6 + $0xd0] sm:$0xff]
          %v3929 = vld [vmem:[#allocation6 + $0xd8] sm:$0xff]
          %v3930 = vld [vmem:[#allocation6 + $0xe0] sm:$0xff]
          %v3931 = vld [vmem:[#allocation6 + $0xe8] sm:$0xff]
          %v3932 = vld [vmem:[#allocation6 + $0xf0] sm:$0xff]
          %v3933 = vld [vmem:[#allocation6 + $0xf8] sm:$0xff]
          %v3934 = vrcp.pop %v3902
          %v3935 = vmul.f32 1.0, %v3934
          %v3936 = vrcp.pop %v3903
          %v3937 = vmul.f32 1.0, %v3936
          %v3938 = vrcp.pop %v3904
          %v3939 = vmul.f32 1.0, %v3938
          %v3940 = vrcp.pop %v3905
          %v3941 = vmul.f32 1.0, %v3940
          %v3942 = vrcp.pop %v3906
          %v3943 = vmul.f32 1.0, %v3942
          %v3944 = vrcp.pop %v3907
          %v3945 = vmul.f32 1.0, %v3944
          %v3946 = vrcp.pop %v3908
          %v3947 = vmul.f32 1.0, %v3946
          %v3948 = vrcp.pop %v3909
          %v3949 = vmul.f32 1.0, %v3948
          %v3950 = vrcp.pop %v3910
          %v3951 = vmul.f32 1.0, %v3950
          %v3952 = vrcp.pop %v3911
          %v3953 = vmul.f32 1.0, %v3952
          %v3954 = vrcp.pop %v3912
          %v3955 = vmul.f32 1.0, %v3954
          %v3956 = vrcp.pop %v3913
          %v3957 = vmul.f32 1.0, %v3956
          %v3958 = vrcp.pop %v3914
          %v3959 = vmul.f32 1.0, %v3958
          %v3960 = vrcp.pop %v3915
          %v3961 = vmul.f32 1.0, %v3960
          %v3962 = vrcp.pop %v3916
          %v3963 = vmul.f32 1.0, %v3962
          %v3964 = vrcp.pop %v3917
          %v3965 = vmul.f32 1.0, %v3964
          %v3966 = vrcp.pop %v3918
          %v3967 = vmul.f32 1.0, %v3966
          %v3968 = vrcp.pop %v3919
          %v3969 = vmul.f32 1.0, %v3968
          %v3970 = vrcp.pop %v3920
          %v3971 = vmul.f32 1.0, %v3970
          %v3972 = vrcp.pop %v3921
          %v3973 = vmul.f32 1.0, %v3972
          %v3974 = vrcp.pop %v3922
          %v3975 = vmul.f32 1.0, %v3974
          %v3976 = vrcp.pop %v3923
          %v3977 = vmul.f32 1.0, %v3976
          %v3978 = vrcp.pop %v3924
          %v3979 = vmul.f32 1.0, %v3978
          %v3980 = vrcp.pop %v3925
          %v3981 = vmul.f32 1.0, %v3980
          %v3982 = vrcp.pop %v3926
          %v3983 = vmul.f32 1.0, %v3982
          %v3984 = vrcp.pop %v3927
          %v3985 = vmul.f32 1.0, %v3984
          %v3986 = vrcp.pop %v3928
          %v3987 = vmul.f32 1.0, %v3986
          %v3988 = vrcp.pop %v3929
          %v3989 = vmul.f32 1.0, %v3988
          %v3990 = vrcp.pop %v3930
          %v3991 = vmul.f32 1.0, %v3990
          %v3992 = vrcp.pop %v3931
          %v3993 = vmul.f32 1.0, %v3992
          %v3994 = vrcp.pop %v3932
          %v3995 = vmul.f32 1.0, %v3994
          %v3996 = vrcp.pop %v3933
          %v3997 = vmul.f32 1.0, %v3996
          %3999 = vset.pattern.permute.xlu0 0
          %4000 = vperm.xlu0 %3999, %v3935
          %v4001 = vpop.permute.xlu0 %4000
          %4004 = vset.pattern.permute.xlu0 0
          %4005 = vperm.xlu0 %4004, %v3937
          %v4006 = vpop.permute.xlu0 %4005
          %4009 = vset.pattern.permute.xlu0 0
          %4010 = vperm.xlu0 %4009, %v3939
          %v4011 = vpop.permute.xlu0 %4010
          %4014 = vset.pattern.permute.xlu0 0
          %4015 = vperm.xlu0 %4014, %v3941
          %v4016 = vpop.permute.xlu0 %4015
          %4019 = vset.pattern.permute.xlu0 0
          %4020 = vperm.xlu0 %4019, %v3943
          %v4021 = vpop.permute.xlu0 %4020
          %4024 = vset.pattern.permute.xlu0 0
          %4025 = vperm.xlu0 %4024, %v3945
          %v4026 = vpop.permute.xlu0 %4025
          %4029 = vset.pattern.permute.xlu0 0
          %4030 = vperm.xlu0 %4029, %v3947
          %v4031 = vpop.permute.xlu0 %4030
          %4034 = vset.pattern.permute.xlu0 0
          %4035 = vperm.xlu0 %4034, %v3949
          %v4036 = vpop.permute.xlu0 %4035
          %4039 = vset.pattern.permute.xlu0 0
          %4040 = vperm.xlu0 %4039, %v3951
          %v4041 = vpop.permute.xlu0 %4040
          %4044 = vset.pattern.permute.xlu0 0
          %4045 = vperm.xlu0 %4044, %v3953
          %v4046 = vpop.permute.xlu0 %4045
          %4049 = vset.pattern.permute.xlu0 0
          %4050 = vperm.xlu0 %4049, %v3955
          %v4051 = vpop.permute.xlu0 %4050
          %4054 = vset.pattern.permute.xlu0 0
          %4055 = vperm.xlu0 %4054, %v3957
          %v4056 = vpop.permute.xlu0 %4055
          %4059 = vset.pattern.permute.xlu0 0
          %4060 = vperm.xlu0 %4059, %v3959
          %v4061 = vpop.permute.xlu0 %4060
          %4064 = vset.pattern.permute.xlu0 0
          %4065 = vperm.xlu0 %4064, %v3961
          %v4066 = vpop.permute.xlu0 %4065
          %4069 = vset.pattern.permute.xlu0 0
          %4070 = vperm.xlu0 %4069, %v3963
          %v4071 = vpop.permute.xlu0 %4070
          %4074 = vset.pattern.permute.xlu0 0
          %4075 = vperm.xlu0 %4074, %v3965
          %v4076 = vpop.permute.xlu0 %4075
          %4079 = vset.pattern.permute.xlu0 0
          %4080 = vperm.xlu0 %4079, %v3967
          %v4081 = vpop.permute.xlu0 %4080
          %4084 = vset.pattern.permute.xlu0 0
          %4085 = vperm.xlu0 %4084, %v3969
          %v4086 = vpop.permute.xlu0 %4085
          %4089 = vset.pattern.permute.xlu0 0
          %4090 = vperm.xlu0 %4089, %v3971
          %v4091 = vpop.permute.xlu0 %4090
          %4094 = vset.pattern.permute.xlu0 0
          %4095 = vperm.xlu0 %4094, %v3973
          %v4096 = vpop.permute.xlu0 %4095
          %4099 = vset.pattern.permute.xlu0 0
          %4100 = vperm.xlu0 %4099, %v3975
          %v4101 = vpop.permute.xlu0 %4100
          %4104 = vset.pattern.permute.xlu0 0
          %4105 = vperm.xlu0 %4104, %v3977
          %v4106 = vpop.permute.xlu0 %4105
          %4109 = vset.pattern.permute.xlu0 0
          %4110 = vperm.xlu0 %4109, %v3979
          %v4111 = vpop.permute.xlu0 %4110
          %4114 = vset.pattern.permute.xlu0 0
          %4115 = vperm.xlu0 %4114, %v3981
          %v4116 = vpop.permute.xlu0 %4115
          %4119 = vset.pattern.permute.xlu0 0
          %4120 = vperm.xlu0 %4119, %v3983
          %v4121 = vpop.permute.xlu0 %4120
          %4124 = vset.pattern.permute.xlu0 0
          %4125 = vperm.xlu0 %4124, %v3985
          %v4126 = vpop.permute.xlu0 %4125
          %4129 = vset.pattern.permute.xlu0 0
          %4130 = vperm.xlu0 %4129, %v3987
          %v4131 = vpop.permute.xlu0 %4130
          %4134 = vset.pattern.permute.xlu0 0
          %4135 = vperm.xlu0 %4134, %v3989
          %v4136 = vpop.permute.xlu0 %4135
          %4139 = vset.pattern.permute.xlu0 0
          %4140 = vperm.xlu0 %4139, %v3991
          %v4141 = vpop.permute.xlu0 %4140
          %4144 = vset.pattern.permute.xlu0 0
          %4145 = vperm.xlu0 %4144, %v3993
          %v4146 = vpop.permute.xlu0 %4145
          %4149 = vset.pattern.permute.xlu0 0
          %4150 = vperm.xlu0 %4149, %v3995
          %v4151 = vpop.permute.xlu0 %4150
          %4154 = vset.pattern.permute.xlu0 0
          %4155 = vperm.xlu0 %4154, %v3997
          %v4156 = vpop.permute.xlu0 %4155
          %v4158 = vmul.f32 %v3870, %v4001
          %v4159 = vmul.f32 %v3871, %v4006
          %v4160 = vmul.f32 %v3872, %v4011
          %v4161 = vmul.f32 %v3873, %v4016
          %v4162 = vmul.f32 %v3874, %v4021
          %v4163 = vmul.f32 %v3875, %v4026
          %v4164 = vmul.f32 %v3876, %v4031
          %v4165 = vmul.f32 %v3877, %v4036
          %v4166 = vmul.f32 %v3878, %v4041
          %v4167 = vmul.f32 %v3879, %v4046
          %v4168 = vmul.f32 %v3880, %v4051
          %v4169 = vmul.f32 %v3881, %v4056
          %v4170 = vmul.f32 %v3882, %v4061
          %v4171 = vmul.f32 %v3883, %v4066
          %v4172 = vmul.f32 %v3884, %v4071
          %v4173 = vmul.f32 %v3885, %v4076
          %v4174 = vmul.f32 %v3886, %v4081
          %v4175 = vmul.f32 %v3887, %v4086
          %v4176 = vmul.f32 %v3888, %v4091
          %v4177 = vmul.f32 %v3889, %v4096
          %v4178 = vmul.f32 %v3890, %v4101
          %v4179 = vmul.f32 %v3891, %v4106
          %v4180 = vmul.f32 %v3892, %v4111
          %v4181 = vmul.f32 %v3893, %v4116
          %v4182 = vmul.f32 %v3894, %v4121
          %v4183 = vmul.f32 %v3895, %v4126
          %v4184 = vmul.f32 %v3896, %v4131
          %v4185 = vmul.f32 %v3897, %v4136
          %v4186 = vmul.f32 %v3898, %v4141
          %v4187 = vmul.f32 %v3899, %v4146
          %v4188 = vmul.f32 %v3900, %v4151
          %v4189 = vmul.f32 %v3901, %v4156
          %v4190 = vpack.c.bf16 %v4159, %v4158
          %v4191 = vpack.c.bf16 %v4161, %v4160
          %v4192 = vpack.c.bf16 %v4163, %v4162
          %v4193 = vpack.c.bf16 %v4165, %v4164
          %v4194 = vpack.c.bf16 %v4167, %v4166
          %v4195 = vpack.c.bf16 %v4169, %v4168
          %v4196 = vpack.c.bf16 %v4171, %v4170
          %v4197 = vpack.c.bf16 %v4173, %v4172
          %v4198 = vpack.c.bf16 %v4175, %v4174
          %v4199 = vpack.c.bf16 %v4177, %v4176
          %v4200 = vpack.c.bf16 %v4179, %v4178
          %v4201 = vpack.c.bf16 %v4181, %v4180
          %v4202 = vpack.c.bf16 %v4183, %v4182
          %v4203 = vpack.c.bf16 %v4185, %v4184
          %v4204 = vpack.c.bf16 %v4187, %v4186
          %v4205 = vpack.c.bf16 %v4189, %v4188
          %v4206 = vld [vmem:[%s6] sm:$0xf]
          %v4207 = vld [vmem:[%s6 + $0x4] sm:$0xf]
          %v4208 = vld [vmem:[%s6 + $0x8] sm:$0xf]
          %v4209 = vld [vmem:[%s6 + $0xc] sm:$0xf]
          %v4210 = vld [vmem:[%s6 + $0x10] sm:$0xf]
          %v4211 = vld [vmem:[%s6 + $0x14] sm:$0xf]
          %v4212 = vld [vmem:[%s6 + $0x18] sm:$0xf]
          %v4213 = vld [vmem:[%s6 + $0x1c] sm:$0xf]
          %v4214 = vld [vmem:[%s6 + $0x20] sm:$0xf]
          %v4215 = vld [vmem:[%s6 + $0x24] sm:$0xf]
          %v4216 = vld [vmem:[%s6 + $0x28] sm:$0xf]
          %v4217 = vld [vmem:[%s6 + $0x2c] sm:$0xf]
          %v4218 = vld [vmem:[%s6 + $0x30] sm:$0xf]
          %v4219 = vld [vmem:[%s6 + $0x34] sm:$0xf]
          %v4220 = vld [vmem:[%s6 + $0x38] sm:$0xf]
          %v4221 = vld [vmem:[%s6 + $0x3c] sm:$0xf]
          %v4222 = vld [vmem:[%s7] sm:$0x1]
          %v4224 = vlaneseq
          %v4225 = vshrl.u32 %v4224, 7
          %v4226 = vsub.s32 0, %v4225
          %v4227 = vrot.slane %v4222, %v4226
          %v4245 = vunpack.c.l.b16 %v4206
          %v4246 = vunpack.c.l.b16 %v4207
          %v4247 = vunpack.c.l.b16 %v4208
          %v4248 = vunpack.c.l.b16 %v4209
          %v4249 = vunpack.c.l.b16 %v4210
          %v4250 = vunpack.c.l.b16 %v4211
          %v4251 = vunpack.c.l.b16 %v4212
          %v4252 = vunpack.c.l.b16 %v4213
          %v4253 = vunpack.c.l.b16 %v4214
          %v4254 = vunpack.c.l.b16 %v4215
          %v4255 = vunpack.c.l.b16 %v4216
          %v4256 = vunpack.c.l.b16 %v4217
          %v4257 = vunpack.c.l.b16 %v4218
          %v4258 = vunpack.c.l.b16 %v4219
          %v4259 = vunpack.c.l.b16 %v4220
          %v4260 = vunpack.c.l.b16 %v4221
          %v4261 = vpack.c.b16 %v4246, %v4245
          %v4262 = vpack.c.b16 %v4248, %v4247
          %v4263 = vpack.c.b16 %v4250, %v4249
          %v4264 = vpack.c.b16 %v4252, %v4251
          %v4265 = vpack.c.b16 %v4254, %v4253
          %v4266 = vpack.c.b16 %v4256, %v4255
          %v4267 = vpack.c.b16 %v4258, %v4257
          %v4268 = vpack.c.b16 %v4260, %v4259
          %4277 = vmatprep.subr.bf16.mxu0 0
          %4278 = vmatpush1.bf16.msra.mxu0 %v4268
          %4279 = vmatprep.subr.bf16.mxu0 0
          %4280 = vmatpush1.bf16.msra.mxu0 %v4267
          %4281 = vmatprep.subr.bf16.mxu0 0
          %4282 = vmatpush1.bf16.msra.mxu0 %v4266
          %4283 = vmatprep.subr.bf16.mxu0 0
          %4284 = vmatpush1.bf16.msra.mxu0 %v4265
          %4285 = vmatprep.subr.bf16.mxu0 0
          %4286 = vmatpush1.bf16.msra.mxu0 %v4264
          %4287 = vmatprep.subr.bf16.mxu0 0
          %4288 = vmatpush1.bf16.msra.mxu0 %v4263
          %4289 = vmatprep.subr.bf16.mxu0 0
          %4290 = vmatpush1.bf16.msra.mxu0 %v4262
          %4291 = vmatprep.subr.bf16.mxu0 0
          %4292 = vmatpush1.bf16.msra.mxu0 %v4261
          %4293 = vmatprep.subr.bf16.mxu0 0
          %4294 = vmatpush2.bf16.msra.mxu0 0
          %4295 = vmatprep.subr.bf16.mxu0 0
          %4296 = vmatpush2.bf16.msra.mxu0 0
          %4297 = vmatprep.subr.bf16.mxu0 0
          %4298 = vmatpush2.bf16.msra.mxu0 0
          %4299 = vmatprep.subr.bf16.mxu0 0
          %4300 = vmatpush2.bf16.msra.mxu0 0
          %4301 = vmatprep.subr.bf16.mxu0 0
          %4302 = vmatpush2.bf16.msra.mxu0 0
          %4303 = vmatprep.subr.bf16.mxu0 0
          %4304 = vmatpush2.bf16.msra.mxu0 0
          %4305 = vmatprep.subr.bf16.mxu0 0
          %4306 = vmatpush2.bf16.msra.mxu0 0
          %4307 = vmatprep.subr.bf16.mxu0 0
          %4308 = vmatpush2.bf16.msra.mxu0 0
          %4309 = vmatprep.mubr.bf16.mxu0 0
          %4310 = vmatmul.mubr.bf16.gmra.mxu0 %v4190
          %v4311 = vpop.f32.mrf.mxu0
          %v4312 = vadd.f32 %v4227, %v4311
          %v4313 = vpop.f32.mrf.mxu0
          %v4314 = vpop.f32.mrf.mxu0
          %v4315 = vadd.f32 %v4227, %v4314
          %v4316 = vpop.f32.mrf.mxu0
          %4317 = vmatprep.mubr.bf16.mxu0 0
          %4318 = vmatmul.mubr.bf16.gmra.mxu0 %v4191
          %v4319 = vpop.f32.mrf.mxu0
          %v4320 = vadd.f32 %v4227, %v4319
          %v4321 = vpop.f32.mrf.mxu0
          %v4322 = vpop.f32.mrf.mxu0
          %v4323 = vadd.f32 %v4227, %v4322
          %v4324 = vpop.f32.mrf.mxu0
          %4325 = vmatprep.mubr.bf16.mxu0 0
          %4326 = vmatmul.mubr.bf16.gmra.mxu0 %v4192
          %v4327 = vpop.f32.mrf.mxu0
          %v4328 = vadd.f32 %v4227, %v4327
          %v4329 = vpop.f32.mrf.mxu0
          %v4330 = vpop.f32.mrf.mxu0
          %v4331 = vadd.f32 %v4227, %v4330
          %v4332 = vpop.f32.mrf.mxu0
          %4333 = vmatprep.mubr.bf16.mxu0 0
          %4334 = vmatmul.mubr.bf16.gmra.mxu0 %v4193
          %v4335 = vpop.f32.mrf.mxu0
          %v4336 = vadd.f32 %v4227, %v4335
          %v4337 = vpop.f32.mrf.mxu0
          %v4338 = vpop.f32.mrf.mxu0
          %v4339 = vadd.f32 %v4227, %v4338
          %v4340 = vpop.f32.mrf.mxu0
          %4341 = vmatprep.mubr.bf16.mxu0 0
          %4342 = vmatmul.mubr.bf16.gmra.mxu0 %v4194
          %v4343 = vpop.f32.mrf.mxu0
          %v4344 = vadd.f32 %v4227, %v4343
          %v4345 = vpop.f32.mrf.mxu0
          %v4346 = vpop.f32.mrf.mxu0
          %v4347 = vadd.f32 %v4227, %v4346
          %v4348 = vpop.f32.mrf.mxu0
          %4349 = vmatprep.mubr.bf16.mxu0 0
          %4350 = vmatmul.mubr.bf16.gmra.mxu0 %v4195
          %v4351 = vpop.f32.mrf.mxu0
          %v4352 = vadd.f32 %v4227, %v4351
          %v4353 = vpop.f32.mrf.mxu0
          %v4354 = vpop.f32.mrf.mxu0
          %v4355 = vadd.f32 %v4227, %v4354
          %v4356 = vpop.f32.mrf.mxu0
          %4357 = vmatprep.mubr.bf16.mxu0 0
          %4358 = vmatmul.mubr.bf16.gmra.mxu0 %v4196
          %v4359 = vpop.f32.mrf.mxu0
          %v4360 = vadd.f32 %v4227, %v4359
          %v4361 = vpop.f32.mrf.mxu0
          %v4362 = vpop.f32.mrf.mxu0
          %v4363 = vadd.f32 %v4227, %v4362
          %v4364 = vpop.f32.mrf.mxu0
          %4365 = vmatprep.mubr.bf16.mxu0 0
          %4366 = vmatmul.mubr.bf16.gmra.mxu0 %v4197
          %v4367 = vpop.f32.mrf.mxu0
          %v4368 = vadd.f32 %v4227, %v4367
          %v4369 = vpop.f32.mrf.mxu0
          %v4370 = vpop.f32.mrf.mxu0
          %v4371 = vadd.f32 %v4227, %v4370
          %v4372 = vpop.f32.mrf.mxu0
          %4373 = vmatprep.mubr.bf16.mxu0 0
          %4374 = vmatmul.mubr.bf16.gmra.mxu0 %v4198
          %v4375 = vpop.f32.mrf.mxu0
          %v4376 = vadd.f32 %v4227, %v4375
          %v4377 = vpop.f32.mrf.mxu0
          %v4378 = vpop.f32.mrf.mxu0
          %v4379 = vadd.f32 %v4227, %v4378
          %v4380 = vpop.f32.mrf.mxu0
          %4381 = vmatprep.mubr.bf16.mxu0 0
          %4382 = vmatmul.mubr.bf16.gmra.mxu0 %v4199
          %v4383 = vpop.f32.mrf.mxu0
          %v4384 = vadd.f32 %v4227, %v4383
          %v4385 = vpop.f32.mrf.mxu0
          %v4386 = vpop.f32.mrf.mxu0
          %v4387 = vadd.f32 %v4227, %v4386
          %v4388 = vpop.f32.mrf.mxu0
          %4389 = vmatprep.mubr.bf16.mxu0 0
          %4390 = vmatmul.mubr.bf16.gmra.mxu0 %v4200
          %v4391 = vpop.f32.mrf.mxu0
          %v4392 = vadd.f32 %v4227, %v4391
          %v4393 = vpop.f32.mrf.mxu0
          %v4394 = vpop.f32.mrf.mxu0
          %v4395 = vadd.f32 %v4227, %v4394
          %v4396 = vpop.f32.mrf.mxu0
          %4397 = vmatprep.mubr.bf16.mxu0 0
          %4398 = vmatmul.mubr.bf16.gmra.mxu0 %v4201
          %v4399 = vpop.f32.mrf.mxu0
          %v4400 = vadd.f32 %v4227, %v4399
          %v4401 = vpop.f32.mrf.mxu0
          %v4402 = vpop.f32.mrf.mxu0
          %v4403 = vadd.f32 %v4227, %v4402
          %v4404 = vpop.f32.mrf.mxu0
          %4405 = vmatprep.mubr.bf16.mxu0 0
          %4406 = vmatmul.mubr.bf16.gmra.mxu0 %v4202
          %v4407 = vpop.f32.mrf.mxu0
          %v4408 = vadd.f32 %v4227, %v4407
          %v4409 = vpop.f32.mrf.mxu0
          %v4410 = vpop.f32.mrf.mxu0
          %v4411 = vadd.f32 %v4227, %v4410
          %v4412 = vpop.f32.mrf.mxu0
          %4413 = vmatprep.mubr.bf16.mxu0 0
          %4414 = vmatmul.mubr.bf16.gmra.mxu0 %v4203
          %v4415 = vpop.f32.mrf.mxu0
          %v4416 = vadd.f32 %v4227, %v4415
          %v4417 = vpop.f32.mrf.mxu0
          %v4418 = vpop.f32.mrf.mxu0
          %v4419 = vadd.f32 %v4227, %v4418
          %v4420 = vpop.f32.mrf.mxu0
          %4421 = vmatprep.mubr.bf16.mxu0 0
          %4422 = vmatmul.mubr.bf16.gmra.mxu0 %v4204
          %v4423 = vpop.f32.mrf.mxu0
          %v4424 = vadd.f32 %v4227, %v4423
          %v4425 = vpop.f32.mrf.mxu0
          %v4426 = vpop.f32.mrf.mxu0
          %v4427 = vadd.f32 %v4227, %v4426
          %v4428 = vpop.f32.mrf.mxu0
          %4429 = vmatprep.mubr.bf16.mxu0 0
          %4430 = vmatmul.mubr.bf16.gmra.mxu0 %v4205
          %v4431 = vpop.f32.mrf.mxu0
          %v4432 = vadd.f32 %v4227, %v4431
          %v4433 = vpop.f32.mrf.mxu0
          %v4434 = vpop.f32.mrf.mxu0
          %v4435 = vadd.f32 %v4227, %v4434
          %v4436 = vpop.f32.mrf.mxu0
          %4437 = vdwg.mxu0
          %v4438 = vld [vmem:[%s411] sm:$0xff]
          %v4439 = vld [vmem:[%s411 + $0x8] sm:$0xff]
          %v4440 = vld [vmem:[%s411 + $0x10] sm:$0xff]
          %v4441 = vld [vmem:[%s411 + $0x18] sm:$0xff]
          %v4442 = vld [vmem:[%s411 + $0x20] sm:$0xff]
          %v4443 = vld [vmem:[%s411 + $0x28] sm:$0xff]
          %v4444 = vld [vmem:[%s411 + $0x30] sm:$0xff]
          %v4445 = vld [vmem:[%s411 + $0x38] sm:$0xff]
          %v4446 = vld [vmem:[%s411 + $0x40] sm:$0xff]
          %v4447 = vld [vmem:[%s411 + $0x48] sm:$0xff]
          %v4448 = vld [vmem:[%s411 + $0x50] sm:$0xff]
          %v4449 = vld [vmem:[%s411 + $0x58] sm:$0xff]
          %v4450 = vld [vmem:[%s411 + $0x60] sm:$0xff]
          %v4451 = vld [vmem:[%s411 + $0x68] sm:$0xff]
          %v4452 = vld [vmem:[%s411 + $0x70] sm:$0xff]
          %v4453 = vld [vmem:[%s411 + $0x78] sm:$0xff]
          %v4454 = vld [vmem:[%s411 + $0x80] sm:$0xff]
          %v4455 = vld [vmem:[%s411 + $0x88] sm:$0xff]
          %v4456 = vld [vmem:[%s411 + $0x90] sm:$0xff]
          %v4457 = vld [vmem:[%s411 + $0x98] sm:$0xff]
          %v4458 = vld [vmem:[%s411 + $0xa0] sm:$0xff]
          %v4459 = vld [vmem:[%s411 + $0xa8] sm:$0xff]
          %v4460 = vld [vmem:[%s411 + $0xb0] sm:$0xff]
          %v4461 = vld [vmem:[%s411 + $0xb8] sm:$0xff]
          %v4462 = vld [vmem:[%s411 + $0xc0] sm:$0xff]
          %v4463 = vld [vmem:[%s411 + $0xc8] sm:$0xff]
          %v4464 = vld [vmem:[%s411 + $0xd0] sm:$0xff]
          %v4465 = vld [vmem:[%s411 + $0xd8] sm:$0xff]
          %v4466 = vld [vmem:[%s411 + $0xe0] sm:$0xff]
          %v4467 = vld [vmem:[%s411 + $0xe8] sm:$0xff]
          %v4468 = vld [vmem:[%s411 + $0xf0] sm:$0xff]
          %v4469 = vld [vmem:[%s411 + $0xf8] sm:$0xff]
          %v4470 = vadd.f32 %v4312, %v4438
          %v4471 = vadd.f32 %v4315, %v4439
          %v4472 = vadd.f32 %v4320, %v4440
          %v4473 = vadd.f32 %v4323, %v4441
          %v4474 = vadd.f32 %v4328, %v4442
          %v4475 = vadd.f32 %v4331, %v4443
          %v4476 = vadd.f32 %v4336, %v4444
          %v4477 = vadd.f32 %v4339, %v4445
          %v4478 = vadd.f32 %v4344, %v4446
          %v4479 = vadd.f32 %v4347, %v4447
          %v4480 = vadd.f32 %v4352, %v4448
          %v4481 = vadd.f32 %v4355, %v4449
          %v4482 = vadd.f32 %v4360, %v4450
          %v4483 = vadd.f32 %v4363, %v4451
          %v4484 = vadd.f32 %v4368, %v4452
          %v4485 = vadd.f32 %v4371, %v4453
          %v4486 = vadd.f32 %v4376, %v4454
          %v4487 = vadd.f32 %v4379, %v4455
          %v4488 = vadd.f32 %v4384, %v4456
          %v4489 = vadd.f32 %v4387, %v4457
          %v4490 = vadd.f32 %v4392, %v4458
          %v4491 = vadd.f32 %v4395, %v4459
          %v4492 = vadd.f32 %v4400, %v4460
          %v4493 = vadd.f32 %v4403, %v4461
          %v4494 = vadd.f32 %v4408, %v4462
          %v4495 = vadd.f32 %v4411, %v4463
          %v4496 = vadd.f32 %v4416, %v4464
          %v4497 = vadd.f32 %v4419, %v4465
          %v4498 = vadd.f32 %v4424, %v4466
          %v4499 = vadd.f32 %v4427, %v4467
          %v4500 = vadd.f32 %v4432, %v4468
          %v4501 = vadd.f32 %v4435, %v4469
          %4502 = vst [vmem:[%s382] sm:$0xff] %v4470
          %4503 = vst [vmem:[%s382 + $0x8] sm:$0xff] %v4471
          %4504 = vst [vmem:[%s382 + $0x10] sm:$0xff] %v4472
          %4505 = vst [vmem:[%s382 + $0x18] sm:$0xff] %v4473
          %4506 = vst [vmem:[%s382 + $0x20] sm:$0xff] %v4474
          %4507 = vst [vmem:[%s382 + $0x28] sm:$0xff] %v4475
          %4508 = vst [vmem:[%s382 + $0x30] sm:$0xff] %v4476
          %4509 = vst [vmem:[%s382 + $0x38] sm:$0xff] %v4477
          %4510 = vst [vmem:[%s382 + $0x40] sm:$0xff] %v4478
          %4511 = vst [vmem:[%s382 + $0x48] sm:$0xff] %v4479
          %4512 = vst [vmem:[%s382 + $0x50] sm:$0xff] %v4480
          %4513 = vst [vmem:[%s382 + $0x58] sm:$0xff] %v4481
          %4514 = vst [vmem:[%s382 + $0x60] sm:$0xff] %v4482
          %4515 = vst [vmem:[%s382 + $0x68] sm:$0xff] %v4483
          %4516 = vst [vmem:[%s382 + $0x70] sm:$0xff] %v4484
          %4517 = vst [vmem:[%s382 + $0x78] sm:$0xff] %v4485
          %4518 = vst [vmem:[%s382 + $0x80] sm:$0xff] %v4486
          %4519 = vst [vmem:[%s382 + $0x88] sm:$0xff] %v4487
          %4520 = vst [vmem:[%s382 + $0x90] sm:$0xff] %v4488
          %4521 = vst [vmem:[%s382 + $0x98] sm:$0xff] %v4489
          %4522 = vst [vmem:[%s382 + $0xa0] sm:$0xff] %v4490
          %4523 = vst [vmem:[%s382 + $0xa8] sm:$0xff] %v4491
          %4524 = vst [vmem:[%s382 + $0xb0] sm:$0xff] %v4492
          %4525 = vst [vmem:[%s382 + $0xb8] sm:$0xff] %v4493
          %4526 = vst [vmem:[%s382 + $0xc0] sm:$0xff] %v4494
          %4527 = vst [vmem:[%s382 + $0xc8] sm:$0xff] %v4495
          %4528 = vst [vmem:[%s382 + $0xd0] sm:$0xff] %v4496
          %4529 = vst [vmem:[%s382 + $0xd8] sm:$0xff] %v4497
          %4530 = vst [vmem:[%s382 + $0xe0] sm:$0xff] %v4498
          %4531 = vst [vmem:[%s382 + $0xe8] sm:$0xff] %v4499
          %4532 = vst [vmem:[%s382 + $0xf0] sm:$0xff] %v4500
          %4533 = vst [vmem:[%s382 + $0xf8] sm:$0xff] %v4501
        $region64: #{cross_attention_forward.1} parent=51 // pred_fallthru
          _
        %s4534 = sand.u32 %s240, 1
        %s4535 = scalar_lea.sflag [#allocation9], %s4534
        %s4536 = sand.u32 %s240, 1
        %s4537 = smul.addr %s4536, 256
        %s4538 = scalar_lea.vmem [#allocation8], %s4537
        // Predicated region
        $region65: #{cross_attention_forward.1} parent=51 // pred_check
          %p4539 = pneg %p250
        $region66: #{cross_attention_forward.1} parent=51 // pred_check_branch
          %4541 = sbr.rel (%p4539) target = $region68
        $region67: #{cross_attention_forward.1} parent=51 // pred_region
          %s4542 = smul.u32 32, %s28
          %s4544 = ssub.s32 4096, 4096
          %4545 = vsyncadd %s4535, %s4544
          %s4546 = smul.addr %s27, 32
          %s4547 = sadd.s32 %s4542, %s4546
          %s4548 = smul.addr %s4547, 128
          %s4549 = scalar_lea.hbm %s8, %s4548
          %s4550 = sshll.u32 %s4538, 4
          %s4551 = int_to_ptr.vmem [resolvable:$true] %s4550
          %4556 = dma.vmem_to_hbm [thread:$0]  %s4551, 4096, %s4549, %s4535, 128, 128, 8
        $region68: #{cross_attention_forward.1} parent=51 // pred_fallthru
          _
      $region52: #{cross_attention_forward.1} parent=5 // pred_fallthru
        _
      %p4557 = scmp.le.s32.totalorder 2, %s17
      // Predicated region
      $region69: #{cross_attention_forward.1} parent=5 // pred_check
        %p4558 = pneg %p4557
      $region70: #{cross_attention_forward.1} parent=5 // pred_check_branch
        %4560 = sbr.rel (%p4558) target = $region72
      $region71: #{cross_attention_forward.1} parent=5 // pred_region
        %s4561 = ssub.s32 %s17, 2
        // Predicated region
        $region73: #{cross_attention_forward.1} parent=71 // pred_check
          %p4562 = pneg %p256
        $region74: #{cross_attention_forward.1} parent=71 // pred_check_branch
          %4564 = sbr.rel (%p4562) target = $region76
        $region75: #{cross_attention_forward.1} parent=71 // pred_region
          %s4565 = sand.u32 %s241, 1
          %s4566 = scalar_lea.sflag [#allocation9], %s4565
          %s4567 = sand.u32 %s241, 1
          %s4568 = smul.addr %s4567, 256
          %s4569 = scalar_lea.vmem [#allocation8], %s4568
          %4570 = dma.done %s4566, 4096
        $region76: #{cross_attention_forward.1} parent=71 // pred_fallthru
          _
      $region72: #{cross_attention_forward.1} parent=5 // pred_fallthru
        _
    $region6: #{cross_attention_forward.1} parent=1 // loop_footer
      %s21 = sadd.s32 1, %s17
    $region7: #{cross_attention_forward.1} parent=1 // loop_footer_branch
      %16 = sbr.rel target = $region3
    $region8: #{cross_attention_forward.1} parent=1 // loop_exit
      _
    %4571 = vsyncpa [#allocation9], 1
    %s4572 = scalar_lea.sflag [#allocation9], 1
    %4573 = vsyncpa %s4572, 1

</llo_original>
